<compile_context>
chip_gen: v7x
topology: tpu7x:2x2x1
jax: 0.10.0
libtpu: 0.0.40
codegen_flags: <defaults>
</compile_context>

<pallas_src>
import functools

import jax
import jax.numpy as jnp
from jax.experimental import pallas as pl
from jax.experimental.pallas import tpu as pltpu

# TODO(synk): `self.lower_bound` is referenced in the reference forward() but
# never defined in __init__; we fix it deterministically to 0.5 here.
LOWER_BOUND = 0.5

_VMEM_LIMIT = 48 * 1024 * 1024   # scoped VMEM limit handed to Mosaic (safe on v5e/v6e/v7x)
_TB_BUDGET = 24 * 1024 * 1024    # VMEM budget used to size images-per-grid-step


def _width_idft_mats(w):
    """(W, W) bf16 matrices for the width-stage half-spectrum inverse DFT.

    With the half spectrum packed as RI = [R | I] (each (H, W/2), Nyquist
    column omitted because the module zero-pads it):
        A = RI @ Wre ,  B = RI @ Wim
    where the Hermitian mirror is folded in via weight 2 on columns 1..W/2-1.
    """
    hw = w // 2
    l = jnp.arange(hw, dtype=jnp.float32)
    n = jnp.arange(w, dtype=jnp.float32)
    ang = (2.0 * jnp.pi / w) * jnp.outer(l, n)          # (W/2, W)
    wt = jnp.where(l == 0, 1.0, 2.0)[:, None]           # DC weight 1, rest 2
    c = wt * jnp.cos(ang)
    s = wt * jnp.sin(ang)
    wre = jnp.concatenate([c, -s], axis=0)               # multiplies [R | I]
    wim = jnp.concatenate([s, c], axis=0)
    return wre.astype(jnp.bfloat16), wim.astype(jnp.bfloat16)


def _height_idft_mats(h):
    """(H, H) bf16 cos/sin matrices for the height-stage inverse DFT."""
    k = jnp.arange(h, dtype=jnp.float32)
    ang = (2.0 * jnp.pi / h) * jnp.outer(k, k)
    return jnp.cos(ang).astype(jnp.bfloat16), jnp.sin(ang).astype(jnp.bfloat16)


def _afa_kernel(x_ref, ri_ref, wre_ref, wim_ref, ch_ref, sh_ref, s_ref, o_ref):
    """One block of TB images per grid step.

    aug   = Ch @ (RI @ Wre) - Sh @ (RI @ Wim)      (== irfft2 up to a global
                                                     scale that cancels below)
    out_t = clamp(x_t + strength_t * aug_t * rsqrt(||aug_t||_F^2 + eps), 0, 1)
    """
    tb, h, w = o_ref.shape
    wre = wre_ref[...]
    wim = wim_ref[...]
    ch = ch_ref[...]
    sh = sh_ref[...]
    eps = 1e-12 * h * w                      # matches torch's +1e-6 on the ortho norm
    base = pl.program_id(0) * tb

    if h % 16 == 0:
        # Collapse (TB, H) -> M for one big, lane/sublane-dense width matmul.
        # (h % 16 == 0 keeps the bf16 reshape a pure relabeling, no copy.)
        ri2 = ri_ref[...].reshape(tb * h, w)
        a_all = jnp.dot(ri2, wre, preferred_element_type=jnp.float32)
        b_all = jnp.dot(ri2, wim, preferred_element_type=jnp.float32)
        a_all = a_all.reshape(tb, h, w).astype(jnp.bfloat16)
        b_all = b_all.reshape(tb, h, w).astype(jnp.bfloat16)
    else:
        a_all = b_all = None

    for t in range(tb):                      # TB is small and static
        if a_all is None:
            ri_t = ri_ref[t]
            a_t = jnp.dot(ri_t, wre, preferred_element_type=jnp.float32).astype(jnp.bfloat16)
            b_t = jnp.dot(ri_t, wim, preferred_element_type=jnp.float32).astype(jnp.bfloat16)
        else:
            a_t, b_t = a_all[t], b_all[t]

        aug = (jnp.dot(ch, a_t, preferred_element_type=jnp.float32)
               - jnp.dot(sh, b_t, preferred_element_type=jnp.float32))

        ssq = jnp.sum(aug * aug)             # per-image Frobenius norm^2
        scale = s_ref[base + t] * jax.lax.rsqrt(ssq + eps)   # SMEM scalar + EUP rsqrt
        o_ref[t] = jnp.clip(x_ref[t] + scale * aug, 0.0, 1.0)


def complex_afa_apply(x, ri_half, strengths):
    """x: (B,C,H,W); ri_half: (B,C,H,W) = [Re | Im] half spectrum (W/2 columns
    each, Nyquist omitted); strengths: (B,C)."""
    b, c, h, w = x.shape
    assert w % 2 == 0, "AFA requires an even image width"
    bc = b * c

    # Images per grid step: amortize the ~0.35us/step pipeline overhead while
    # keeping the per-step working set comfortably inside VMEM everywhere.
    tb = int(max(1, min(8, _TB_BUDGET // (40 * h * w))))
    n_blocks = -(-bc // tb)
    bc_pad = n_blocks * tb

    x2 = x.reshape(bc, h, w).astype(jnp.float32)
    ri2 = ri_half.reshape(bc, h, w).astype(jnp.bfloat16)
    s1 = strengths.reshape(bc).astype(jnp.float32)
    if bc_pad != bc:
        pad = bc_pad - bc
        x2 = jnp.concatenate([x2, jnp.zeros((pad, h, w), x2.dtype)])
        ri2 = jnp.concatenate([ri2, jnp.zeros((pad, h, w), ri2.dtype)])
        s1 = jnp.concatenate([s1, jnp.zeros((pad,), s1.dtype)])

    wre, wim = _width_idft_mats(w)
    ch, sh = _height_idft_mats(h)

    img_spec = pl.BlockSpec((tb, h, w), lambda i: (i, 0, 0))

    def build(single_buffer_consts):
        extra = {"pipeline_mode": pl.Buffered(1)} if single_buffer_consts else {}
        w_spec = pl.BlockSpec((w, w), lambda i: (0, 0), **extra)
        h_spec = pl.BlockSpec((h, h), lambda i: (0, 0), **extra)
        return pl.pallas_call(
            _afa_kernel,
            out_shape=jax.ShapeDtypeStruct((bc_pad, h, w), jnp.float32),
            grid=(n_blocks,),
            in_specs=[
                img_spec,                                           # x
                img_spec,                                           # [Re|Im] half spectrum
                w_spec, w_spec,                                     # width IDFT (re / im)
                h_spec, h_spec,                                     # height IDFT (cos / sin)
                pl.BlockSpec(memory_space=pltpu.MemorySpace.SMEM),  # per-image strengths
            ],
            out_specs=img_spec,
            compiler_params=pltpu.CompilerParams(
                dimension_semantics=("parallel",),
                vmem_limit_bytes=_VMEM_LIMIT,
            ),
        )

    args = (x2, ri2, wre, wim, ch, sh, s1)
    try:
        # Preferred: single-buffer the grid-invariant DFT matrices.
        out = build(True)(*args)
    except Exception:
        # Fallback for jax versions where pl.Buffered(1) is not accepted by
        # the TPU pipeline; constants just stay double-buffered.
        out = build(False)(*args)
    return out[:bc].reshape(b, c, h, w)


def _sample_afa_randomness(key, b, c, h, w, eps_scale, mean_str):
    """torch uniform_/rand/exponential_ equivalents (host-side glue)."""
    k_re, k_im, k_drop, k_th, k_str = jax.random.split(key, 5)
    re = jnp.sign(jax.random.uniform(k_re, (b, c, h, w // 2), minval=-1.0, maxval=1.0))
    im = jnp.pi * jax.random.uniform(k_im, (b, c, h, w // 2), minval=-1.0, maxval=1.0)
    thresh = jax.random.uniform(k_th, (b, c, 1, 1), minval=LOWER_BOUND, maxval=1.0)
    drop = jax.random.uniform(k_drop, (b, c, h, w // 2)) < thresh
    re = jnp.where(drop, 0.0, re)
    im = jnp.where(drop, 0.0, im)
    strengths = eps_scale * mean_str * jax.random.exponential(k_str, (b, c))
    return re, im, strengths


def complex_afa_forward(key, x, img_size, mean_str=5):
    """Functional equivalent of ComplexAFA.forward (randomness via jax.random)."""
    eps_scale = img_size / 32
    init_shape = x.shape
    if x.ndim < 4:
        x = x[None]
    b, c, h, w = x.shape
    re, im, strengths = _sample_afa_randomness(key, b, c, h, w, eps_scale, mean_str)
    # Half spectrum packed as [Re | Im]; Hermitian mirror folded into the
    # kernel's width-IDFT matrices (no full-spectrum materialization in HBM).
    ri_half = jnp.concatenate([re, im], axis=-1).astype(jnp.bfloat16)
    out = complex_afa_apply(x, ri_half, strengths)
    return out.reshape(init_shape)


if __name__ == "__main__":
    key = jax.random.PRNGKey(0)
    kx, kf = jax.random.split(key)

    B, C, IMG = 2, 4, 16
    x = jax.random.uniform(kx, (B, C, IMG, IMG), dtype=jnp.float32)

    out = complex_afa_forward(kf, x, img_size=IMG, mean_str=5)
    out = jax.block_until_ready(out)
    assert out.shape == x.shape and out.dtype == jnp.float32

    # ----- test-only validation (not part of the production path) -----------
    b, c, h, w = x.shape
    re, im, strengths = _sample_afa_randomness(kf, b, c, h, w, IMG / 32, 5)
    s4 = strengths[..., None, None]

    # (1) Tight check: emulate the kernel's bf16 matmul math with XLA.
    hp = functools.partial(jnp.einsum, precision=jax.lax.Precision.HIGHEST)
    f32 = lambda a: a.astype(jnp.float32)
    ri = f32(jnp.concatenate([re, im], axis=-1).astype(jnp.bfloat16))
    wre, wim = _width_idft_mats(w)
    ch, sh = _height_idft_mats(h)
    a_ = f32(hp("bchl,ln->bchn", ri, f32(wre)).astype(jnp.bfloat16))
    b_ = f32(hp("bchl,ln->bchn", ri, f32(wim)).astype(jnp.bfloat16))
    aug = hp("mk,bckn->bcmn", f32(ch), a_) - hp("mk,bckn->bcmn", f32(sh), b_)
    ssq = jnp.sum(aug * aug, axis=(-2, -1), keepdims=True)
    ref_tight = jnp.clip(x + s4 * jax.lax.rsqrt(ssq + 1e-12 * h * w) * aug, 0.0, 1.0)
    err_tight = float(jnp.max(jnp.abs(out - ref_tight)))
    assert err_tight < 1e-3, f"kernel vs bf16-matmul reference: {err_tight}"

    # (2) Loose check against the f32 FFT semantics of the torch module
    #     (bf16 MXU operands bound the achievable agreement here).
    aug_fft = jnp.fft.irfft2(re + 1j * im, s=(h, w), axes=(2, 3), norm="ortho")
    aug_fft = aug_fft / (jnp.linalg.norm(aug_fft, axis=(-2, -1), keepdims=True) + 1e-6)
    ref_fft = jnp.clip(x + s4 * aug_fft, 0.0, 1.0)
    err_fft = float(jnp.max(jnp.abs(out - ref_fft)))
    assert err_fft < 3e-2, f"kernel vs FFT reference: {err_fft}"

    print("KERNEL_OK")
</pallas_src>

<mosaic_0001>
module attributes {stable_mosaic.version = 11 : i64} {
  func.func @_afa_kernel(%arg0: i32, %arg1: memref<8x16x16xf32, #tpu.memory_space<vmem>>, %arg2: memref<8x16x16xbf16, #tpu.memory_space<vmem>>, %arg3: memref<16x16xbf16, #tpu.memory_space<vmem>>, %arg4: memref<16x16xbf16, #tpu.memory_space<vmem>>, %arg5: memref<16x16xbf16, #tpu.memory_space<vmem>>, %arg6: memref<16x16xbf16, #tpu.memory_space<vmem>>, %arg7: memref<8xf32, #tpu.memory_space<smem>>, %arg8: memref<8x16x16xf32, #tpu.memory_space<vmem>>) attributes {dimension_semantics = [#tpu.dimension_semantics<parallel>], iteration_bounds = array<i64: 1>, scalar_prefetch = 0 : i64, scratch_operands = 0 : i64, tpu.core_type = #tpu.core_type<tc>, window_params = [{transform_indices = @transform_0, window_bounds = array<i64: 8, 16, 16>}, {transform_indices = @transform_1, window_bounds = array<i64: 8, 16, 16>}, {pipeline_mode = #tpu.pipeline_mode<synchronous>, transform_indices = @transform_2, window_bounds = array<i64: 16, 16>}, {pipeline_mode = #tpu.pipeline_mode<synchronous>, transform_indices = @transform_3, window_bounds = array<i64: 16, 16>}, {pipeline_mode = #tpu.pipeline_mode<synchronous>, transform_indices = @transform_4, window_bounds = array<i64: 16, 16>}, {pipeline_mode = #tpu.pipeline_mode<synchronous>, transform_indices = @transform_5, window_bounds = array<i64: 16, 16>}, {transform_indices = @transform_6, window_bounds = array<i64: 8>}, {transform_indices = @transform_7, window_bounds = array<i64: 8, 16, 16>}]} {
    %c0 = arith.constant 0 : index
    %c0_0 = arith.constant 0 : index
    %0 = vector.load %arg3[%c0, %c0_0] : memref<16x16xbf16, #tpu.memory_space<vmem>>, vector<16x16xbf16>
    %c0_1 = arith.constant 0 : index
    %c0_2 = arith.constant 0 : index
    %1 = vector.load %arg4[%c0_1, %c0_2] : memref<16x16xbf16, #tpu.memory_space<vmem>>, vector<16x16xbf16>
    %c0_3 = arith.constant 0 : index
    %c0_4 = arith.constant 0 : index
    %2 = vector.load %arg5[%c0_3, %c0_4] : memref<16x16xbf16, #tpu.memory_space<vmem>>, vector<16x16xbf16>
    %c0_5 = arith.constant 0 : index
    %c0_6 = arith.constant 0 : index
    %3 = vector.load %arg6[%c0_5, %c0_6] : memref<16x16xbf16, #tpu.memory_space<vmem>>, vector<16x16xbf16>
    %c8_i32 = arith.constant 8 : i32
    %4 = arith.muli %arg0, %c8_i32 : i32
    %c0_7 = arith.constant 0 : index
    %c0_8 = arith.constant 0 : index
    %c0_9 = arith.constant 0 : index
    %5 = vector.load %arg2[%c0_7, %c0_8, %c0_9] : memref<8x16x16xbf16, #tpu.memory_space<vmem>>, vector<8x16x16xbf16>
    %6 = vector.shape_cast %5 : vector<8x16x16xbf16> to vector<128x16xbf16>
    %cst = arith.constant dense<0.000000e+00> : vector<128x16xf32>
    %7 = tpu.matmul %6, %0, %cst {dimension_numbers = #tpu.dot_dimension_numbers<[1], [0], [0], [1], [0, 0, 1, 1], [], []>} : vector<128x16xbf16>, vector<16x16xbf16>, vector<128x16xf32> -> vector<128x16xf32>
    %cst_10 = arith.constant dense<0.000000e+00> : vector<128x16xf32>
    %8 = tpu.matmul %6, %1, %cst_10 {dimension_numbers = #tpu.dot_dimension_numbers<[1], [0], [0], [1], [0, 0, 1, 1], [], []>} : vector<128x16xbf16>, vector<16x16xbf16>, vector<128x16xf32> -> vector<128x16xf32>
    %9 = vector.shape_cast %7 : vector<128x16xf32> to vector<8x16x16xf32>
    %10 = arith.truncf %9 : vector<8x16x16xf32> to vector<8x16x16xbf16>
    %11 = vector.shape_cast %8 : vector<128x16xf32> to vector<8x16x16xf32>
    %12 = arith.truncf %11 : vector<8x16x16xf32> to vector<8x16x16xbf16>
    %13 = vector.extract_strided_slice %10 {offsets = [0, 0, 0], sizes = [1, 16, 16], strides = [1, 1, 1]} : vector<8x16x16xbf16> to vector<1x16x16xbf16>
    %14 = vector.shape_cast %13 : vector<1x16x16xbf16> to vector<16x16xbf16>
    %15 = vector.extract_strided_slice %12 {offsets = [0, 0, 0], sizes = [1, 16, 16], strides = [1, 1, 1]} : vector<8x16x16xbf16> to vector<1x16x16xbf16>
    %16 = vector.shape_cast %15 : vector<1x16x16xbf16> to vector<16x16xbf16>
    %cst_11 = arith.constant dense<0.000000e+00> : vector<16x16xf32>
    %17 = tpu.matmul %2, %14, %cst_11 {dimension_numbers = #tpu.dot_dimension_numbers<[1], [0], [0], [1], [0, 0, 1, 1], [], []>} : vector<16x16xbf16>, vector<16x16xbf16>, vector<16x16xf32> -> vector<16x16xf32>
    %cst_12 = arith.constant dense<0.000000e+00> : vector<16x16xf32>
    %18 = tpu.matmul %3, %16, %cst_12 {dimension_numbers = #tpu.dot_dimension_numbers<[1], [0], [0], [1], [0, 0, 1, 1], [], []>} : vector<16x16xbf16>, vector<16x16xbf16>, vector<16x16xf32> -> vector<16x16xf32>
    %19 = arith.subf %17, %18 : vector<16x16xf32>
    %20 = arith.mulf %19, %19 : vector<16x16xf32>
    %21 = vector.shape_cast %20 : vector<16x16xf32> to vector<1x16x16xf32>
    %cst_13 = arith.constant dense<0.000000e+00> : vector<1xf32>
    %22 = vector.multi_reduction <add>, %21, %cst_13 [1, 2] : vector<1x16x16xf32> to vector<1xf32>
    %23 = vector.shape_cast %22 : vector<1xf32> to vector<1x1x1xf32>
    %24 = vector.extract %23[0, 0, 0] : f32 from vector<1x1x1xf32>
    %c0_i32 = arith.constant 0 : i32
    %25 = arith.addi %4, %c0_i32 : i32
    %26 = arith.index_cast %25 : i32 to index
    %27 = memref.load %arg7[%26] : memref<8xf32, #tpu.memory_space<smem>>
    %cst_14 = arith.constant 2.560000e-10 : f32
    %28 = arith.addf %24, %cst_14 : f32
    %29 = math.rsqrt %28 : f32
    %30 = arith.mulf %27, %29 : f32
    %c0_15 = arith.constant 0 : index
    %c0_16 = arith.constant 0 : index
    %c0_17 = arith.constant 0 : index
    %31 = vector.load %arg1[%c0_15, %c0_16, %c0_17] : memref<8x16x16xf32, #tpu.memory_space<vmem>>, vector<1x16x16xf32>
    %32 = vector.shape_cast %31 : vector<1x16x16xf32> to vector<16x16xf32>
    %33 = vector.broadcast %30 : f32 to vector<16x16xf32>
    %34 = arith.mulf %33, %19 : vector<16x16xf32>
    %35 = arith.addf %32, %34 : vector<16x16xf32>
    %cst_18 = arith.constant 0.000000e+00 : f32
    %cst_19 = arith.constant 1.000000e+00 : f32
    %36 = vector.broadcast %cst_18 : f32 to vector<16x16xf32>
    %37 = arith.maximumf %36, %35 : vector<16x16xf32>
    %38 = vector.broadcast %cst_19 : f32 to vector<16x16xf32>
    %39 = arith.minimumf %38, %37 : vector<16x16xf32>
    %c0_20 = arith.constant 0 : index
    %c0_21 = arith.constant 0 : index
    %c0_22 = arith.constant 0 : index
    %40 = vector.load %arg8[%c0_20, %c0_21, %c0_22] : memref<8x16x16xf32, #tpu.memory_space<vmem>>, vector<1x16x16xf32>
    %41 = vector.shape_cast %40 : vector<1x16x16xf32> to vector<16x16xf32>
    %42 = vector.shape_cast %39 : vector<16x16xf32> to vector<1x16x16xf32>
    tpu.vector_store %arg8[%c0_20, %c0_21, %c0_22], %42 {strides = array<i32>} : memref<8x16x16xf32, #tpu.memory_space<vmem>>, vector<1x16x16xf32>,
    %43 = vector.extract_strided_slice %10 {offsets = [1, 0, 0], sizes = [1, 16, 16], strides = [1, 1, 1]} : vector<8x16x16xbf16> to vector<1x16x16xbf16>
    %44 = vector.shape_cast %43 : vector<1x16x16xbf16> to vector<16x16xbf16>
    %45 = vector.extract_strided_slice %12 {offsets = [1, 0, 0], sizes = [1, 16, 16], strides = [1, 1, 1]} : vector<8x16x16xbf16> to vector<1x16x16xbf16>
    %46 = vector.shape_cast %45 : vector<1x16x16xbf16> to vector<16x16xbf16>
    %cst_23 = arith.constant dense<0.000000e+00> : vector<16x16xf32>
    %47 = tpu.matmul %2, %44, %cst_23 {dimension_numbers = #tpu.dot_dimension_numbers<[1], [0], [0], [1], [0, 0, 1, 1], [], []>} : vector<16x16xbf16>, vector<16x16xbf16>, vector<16x16xf32> -> vector<16x16xf32>
    %cst_24 = arith.constant dense<0.000000e+00> : vector<16x16xf32>
    %48 = tpu.matmul %3, %46, %cst_24 {dimension_numbers = #tpu.dot_dimension_numbers<[1], [0], [0], [1], [0, 0, 1, 1], [], []>} : vector<16x16xbf16>, vector<16x16xbf16>, vector<16x16xf32> -> vector<16x16xf32>
    %49 = arith.subf %47, %48 : vector<16x16xf32>
    %50 = arith.mulf %49, %49 : vector<16x16xf32>
    %51 = vector.shape_cast %50 : vector<16x16xf32> to vector<1x16x16xf32>
    %cst_25 = arith.constant dense<0.000000e+00> : vector<1xf32>
    %52 = vector.multi_reduction <add>, %51, %cst_25 [1, 2] : vector<1x16x16xf32> to vector<1xf32>
    %53 = vector.shape_cast %52 : vector<1xf32> to vector<1x1x1xf32>
    %54 = vector.extract %53[0, 0, 0] : f32 from vector<1x1x1xf32>
    %c1_i32 = arith.constant 1 : i32
    %55 = arith.addi %4, %c1_i32 : i32
    %56 = arith.index_cast %55 : i32 to index
    %57 = memref.load %arg7[%56] : memref<8xf32, #tpu.memory_space<smem>>
    %cst_26 = arith.constant 2.560000e-10 : f32
    %58 = arith.addf %54, %cst_26 : f32
    %59 = math.rsqrt %58 : f32
    %60 = arith.mulf %57, %59 : f32
    %c1 = arith.constant 1 : index
    %c0_27 = arith.constant 0 : index
    %c0_28 = arith.constant 0 : index
    %61 = vector.load %arg1[%c1, %c0_27, %c0_28] : memref<8x16x16xf32, #tpu.memory_space<vmem>>, vector<1x16x16xf32>
    %62 = vector.shape_cast %61 : vector<1x16x16xf32> to vector<16x16xf32>
    %63 = vector.broadcast %60 : f32 to vector<16x16xf32>
    %64 = arith.mulf %63, %49 : vector<16x16xf32>
    %65 = arith.addf %62, %64 : vector<16x16xf32>
    %cst_29 = arith.constant 0.000000e+00 : f32
    %cst_30 = arith.constant 1.000000e+00 : f32
    %66 = vector.broadcast %cst_29 : f32 to vector<16x16xf32>
    %67 = arith.maximumf %66, %65 : vector<16x16xf32>
    %68 = vector.broadcast %cst_30 : f32 to vector<16x16xf32>
    %69 = arith.minimumf %68, %67 : vector<16x16xf32>
    %c1_31 = arith.constant 1 : index
    %c0_32 = arith.constant 0 : index
    %c0_33 = arith.constant 0 : index
    %70 = vector.load %arg8[%c1_31, %c0_32, %c0_33] : memref<8x16x16xf32, #tpu.memory_space<vmem>>, vector<1x16x16xf32>
    %71 = vector.shape_cast %70 : vector<1x16x16xf32> to vector<16x16xf32>
    %72 = vector.shape_cast %69 : vector<16x16xf32> to vector<1x16x16xf32>
    tpu.vector_store %arg8[%c1_31, %c0_32, %c0_33], %72 {strides = array<i32>} : memref<8x16x16xf32, #tpu.memory_space<vmem>>, vector<1x16x16xf32>,
    %73 = vector.extract_strided_slice %10 {offsets = [2, 0, 0], sizes = [1, 16, 16], strides = [1, 1, 1]} : vector<8x16x16xbf16> to vector<1x16x16xbf16>
    %74 = vector.shape_cast %73 : vector<1x16x16xbf16> to vector<16x16xbf16>
    %75 = vector.extract_strided_slice %12 {offsets = [2, 0, 0], sizes = [1, 16, 16], strides = [1, 1, 1]} : vector<8x16x16xbf16> to vector<1x16x16xbf16>
    %76 = vector.shape_cast %75 : vector<1x16x16xbf16> to vector<16x16xbf16>
    %cst_34 = arith.constant dense<0.000000e+00> : vector<16x16xf32>
    %77 = tpu.matmul %2, %74, %cst_34 {dimension_numbers = #tpu.dot_dimension_numbers<[1], [0], [0], [1], [0, 0, 1, 1], [], []>} : vector<16x16xbf16>, vector<16x16xbf16>, vector<16x16xf32> -> vector<16x16xf32>
    %cst_35 = arith.constant dense<0.000000e+00> : vector<16x16xf32>
    %78 = tpu.matmul %3, %76, %cst_35 {dimension_numbers = #tpu.dot_dimension_numbers<[1], [0], [0], [1], [0, 0, 1, 1], [], []>} : vector<16x16xbf16>, vector<16x16xbf16>, vector<16x16xf32> -> vector<16x16xf32>
    %79 = arith.subf %77, %78 : vector<16x16xf32>
    %80 = arith.mulf %79, %79 : vector<16x16xf32>
    %81 = vector.shape_cast %80 : vector<16x16xf32> to vector<1x16x16xf32>
    %cst_36 = arith.constant dense<0.000000e+00> : vector<1xf32>
    %82 = vector.multi_reduction <add>, %81, %cst_36 [1, 2] : vector<1x16x16xf32> to vector<1xf32>
    %83 = vector.shape_cast %82 : vector<1xf32> to vector<1x1x1xf32>
    %84 = vector.extract %83[0, 0, 0] : f32 from vector<1x1x1xf32>
    %c2_i32 = arith.constant 2 : i32
    %85 = arith.addi %4, %c2_i32 : i32
    %86 = arith.index_cast %85 : i32 to index
    %87 = memref.load %arg7[%86] : memref<8xf32, #tpu.memory_space<smem>>
    %cst_37 = arith.constant 2.560000e-10 : f32
    %88 = arith.addf %84, %cst_37 : f32
    %89 = math.rsqrt %88 : f32
    %90 = arith.mulf %87, %89 : f32
    %c2 = arith.constant 2 : index
    %c0_38 = arith.constant 0 : index
    %c0_39 = arith.constant 0 : index
    %91 = vector.load %arg1[%c2, %c0_38, %c0_39] : memref<8x16x16xf32, #tpu.memory_space<vmem>>, vector<1x16x16xf32>
    %92 = vector.shape_cast %91 : vector<1x16x16xf32> to vector<16x16xf32>
    %93 = vector.broadcast %90 : f32 to vector<16x16xf32>
    %94 = arith.mulf %93, %79 : vector<16x16xf32>
    %95 = arith.addf %92, %94 : vector<16x16xf32>
    %cst_40 = arith.constant 0.000000e+00 : f32
    %cst_41 = arith.constant 1.000000e+00 : f32
    %96 = vector.broadcast %cst_40 : f32 to vector<16x16xf32>
    %97 = arith.maximumf %96, %95 : vector<16x16xf32>
    %98 = vector.broadcast %cst_41 : f32 to vector<16x16xf32>
    %99 = arith.minimumf %98, %97 : vector<16x16xf32>
    %c2_42 = arith.constant 2 : index
    %c0_43 = arith.constant 0 : index
    %c0_44 = arith.constant 0 : index
    %100 = vector.load %arg8[%c2_42, %c0_43, %c0_44] : memref<8x16x16xf32, #tpu.memory_space<vmem>>, vector<1x16x16xf32>
    %101 = vector.shape_cast %100 : vector<1x16x16xf32> to vector<16x16xf32>
    %102 = vector.shape_cast %99 : vector<16x16xf32> to vector<1x16x16xf32>
    tpu.vector_store %arg8[%c2_42, %c0_43, %c0_44], %102 {strides = array<i32>} : memref<8x16x16xf32, #tpu.memory_space<vmem>>, vector<1x16x16xf32>,
    %103 = vector.extract_strided_slice %10 {offsets = [3, 0, 0], sizes = [1, 16, 16], strides = [1, 1, 1]} : vector<8x16x16xbf16> to vector<1x16x16xbf16>
    %104 = vector.shape_cast %103 : vector<1x16x16xbf16> to vector<16x16xbf16>
    %105 = vector.extract_strided_slice %12 {offsets = [3, 0, 0], sizes = [1, 16, 16], strides = [1, 1, 1]} : vector<8x16x16xbf16> to vector<1x16x16xbf16>
    %106 = vector.shape_cast %105 : vector<1x16x16xbf16> to vector<16x16xbf16>
    %cst_45 = arith.constant dense<0.000000e+00> : vector<16x16xf32>
    %107 = tpu.matmul %2, %104, %cst_45 {dimension_numbers = #tpu.dot_dimension_numbers<[1], [0], [0], [1], [0, 0, 1, 1], [], []>} : vector<16x16xbf16>, vector<16x16xbf16>, vector<16x16xf32> -> vector<16x16xf32>
    %cst_46 = arith.constant dense<0.000000e+00> : vector<16x16xf32>
    %108 = tpu.matmul %3, %106, %cst_46 {dimension_numbers = #tpu.dot_dimension_numbers<[1], [0], [0], [1], [0, 0, 1, 1], [], []>} : vector<16x16xbf16>, vector<16x16xbf16>, vector<16x16xf32> -> vector<16x16xf32>
    %109 = arith.subf %107, %108 : vector<16x16xf32>
    %110 = arith.mulf %109, %109 : vector<16x16xf32>
    %111 = vector.shape_cast %110 : vector<16x16xf32> to vector<1x16x16xf32>
    %cst_47 = arith.constant dense<0.000000e+00> : vector<1xf32>
    %112 = vector.multi_reduction <add>, %111, %cst_47 [1, 2] : vector<1x16x16xf32> to vector<1xf32>
    %113 = vector.shape_cast %112 : vector<1xf32> to vector<1x1x1xf32>
    %114 = vector.extract %113[0, 0, 0] : f32 from vector<1x1x1xf32>
    %c3_i32 = arith.constant 3 : i32
    %115 = arith.addi %4, %c3_i32 : i32
    %116 = arith.index_cast %115 : i32 to index
    %117 = memref.load %arg7[%116] : memref<8xf32, #tpu.memory_space<smem>>
    %cst_48 = arith.constant 2.560000e-10 : f32
    %118 = arith.addf %114, %cst_48 : f32
    %119 = math.rsqrt %118 : f32
    %120 = arith.mulf %117, %119 : f32
    %c3 = arith.constant 3 : index
    %c0_49 = arith.constant 0 : index
    %c0_50 = arith.constant 0 : index
    %121 = vector.load %arg1[%c3, %c0_49, %c0_50] : memref<8x16x16xf32, #tpu.memory_space<vmem>>, vector<1x16x16xf32>
    %122 = vector.shape_cast %121 : vector<1x16x16xf32> to vector<16x16xf32>
    %123 = vector.broadcast %120 : f32 to vector<16x16xf32>
    %124 = arith.mulf %123, %109 : vector<16x16xf32>
    %125 = arith.addf %122, %124 : vector<16x16xf32>
    %cst_51 = arith.constant 0.000000e+00 : f32
    %cst_52 = arith.constant 1.000000e+00 : f32
    %126 = vector.broadcast %cst_51 : f32 to vector<16x16xf32>
    %127 = arith.maximumf %126, %125 : vector<16x16xf32>
    %128 = vector.broadcast %cst_52 : f32 to vector<16x16xf32>
    %129 = arith.minimumf %128, %127 : vector<16x16xf32>
    %c3_53 = arith.constant 3 : index
    %c0_54 = arith.constant 0 : index
    %c0_55 = arith.constant 0 : index
    %130 = vector.load %arg8[%c3_53, %c0_54, %c0_55] : memref<8x16x16xf32, #tpu.memory_space<vmem>>, vector<1x16x16xf32>
    %131 = vector.shape_cast %130 : vector<1x16x16xf32> to vector<16x16xf32>
    %132 = vector.shape_cast %129 : vector<16x16xf32> to vector<1x16x16xf32>
    tpu.vector_store %arg8[%c3_53, %c0_54, %c0_55], %132 {strides = array<i32>} : memref<8x16x16xf32, #tpu.memory_space<vmem>>, vector<1x16x16xf32>,
    %133 = vector.extract_strided_slice %10 {offsets = [4, 0, 0], sizes = [1, 16, 16], strides = [1, 1, 1]} : vector<8x16x16xbf16> to vector<1x16x16xbf16>
    %134 = vector.shape_cast %133 : vector<1x16x16xbf16> to vector<16x16xbf16>
    %135 = vector.extract_strided_slice %12 {offsets = [4, 0, 0], sizes = [1, 16, 16], strides = [1, 1, 1]} : vector<8x16x16xbf16> to vector<1x16x16xbf16>
    %136 = vector.shape_cast %135 : vector<1x16x16xbf16> to vector<16x16xbf16>
    %cst_56 = arith.constant dense<0.000000e+00> : vector<16x16xf32>
    %137 = tpu.matmul %2, %134, %cst_56 {dimension_numbers = #tpu.dot_dimension_numbers<[1], [0], [0], [1], [0, 0, 1, 1], [], []>} : vector<16x16xbf16>, vector<16x16xbf16>, vector<16x16xf32> -> vector<16x16xf32>
    %cst_57 = arith.constant dense<0.000000e+00> : vector<16x16xf32>
    %138 = tpu.matmul %3, %136, %cst_57 {dimension_numbers = #tpu.dot_dimension_numbers<[1], [0], [0], [1], [0, 0, 1, 1], [], []>} : vector<16x16xbf16>, vector<16x16xbf16>, vector<16x16xf32> -> vector<16x16xf32>
    %139 = arith.subf %137, %138 : vector<16x16xf32>
    %140 = arith.mulf %139, %139 : vector<16x16xf32>
    %141 = vector.shape_cast %140 : vector<16x16xf32> to vector<1x16x16xf32>
    %cst_58 = arith.constant dense<0.000000e+00> : vector<1xf32>
    %142 = vector.multi_reduction <add>, %141, %cst_58 [1, 2] : vector<1x16x16xf32> to vector<1xf32>
    %143 = vector.shape_cast %142 : vector<1xf32> to vector<1x1x1xf32>
    %144 = vector.extract %143[0, 0, 0] : f32 from vector<1x1x1xf32>
    %c4_i32 = arith.constant 4 : i32
    %145 = arith.addi %4, %c4_i32 : i32
    %146 = arith.index_cast %145 : i32 to index
    %147 = memref.load %arg7[%146] : memref<8xf32, #tpu.memory_space<smem>>
    %cst_59 = arith.constant 2.560000e-10 : f32
    %148 = arith.addf %144, %cst_59 : f32
    %149 = math.rsqrt %148 : f32
    %150 = arith.mulf %147, %149 : f32
    %c4 = arith.constant 4 : index
    %c0_60 = arith.constant 0 : index
    %c0_61 = arith.constant 0 : index
    %151 = vector.load %arg1[%c4, %c0_60, %c0_61] : memref<8x16x16xf32, #tpu.memory_space<vmem>>, vector<1x16x16xf32>
    %152 = vector.shape_cast %151 : vector<1x16x16xf32> to vector<16x16xf32>
    %153 = vector.broadcast %150 : f32 to vector<16x16xf32>
    %154 = arith.mulf %153, %139 : vector<16x16xf32>
    %155 = arith.addf %152, %154 : vector<16x16xf32>
    %cst_62 = arith.constant 0.000000e+00 : f32
    %cst_63 = arith.constant 1.000000e+00 : f32
    %156 = vector.broadcast %cst_62 : f32 to vector<16x16xf32>
    %157 = arith.maximumf %156, %155 : vector<16x16xf32>
    %158 = vector.broadcast %cst_63 : f32 to vector<16x16xf32>
    %159 = arith.minimumf %158, %157 : vector<16x16xf32>
    %c4_64 = arith.constant 4 : index
    %c0_65 = arith.constant 0 : index
    %c0_66 = arith.constant 0 : index
    %160 = vector.load %arg8[%c4_64, %c0_65, %c0_66] : memref<8x16x16xf32, #tpu.memory_space<vmem>>, vector<1x16x16xf32>
    %161 = vector.shape_cast %160 : vector<1x16x16xf32> to vector<16x16xf32>
    %162 = vector.shape_cast %159 : vector<16x16xf32> to vector<1x16x16xf32>
    tpu.vector_store %arg8[%c4_64, %c0_65, %c0_66], %162 {strides = array<i32>} : memref<8x16x16xf32, #tpu.memory_space<vmem>>, vector<1x16x16xf32>,
    %163 = vector.extract_strided_slice %10 {offsets = [5, 0, 0], sizes = [1, 16, 16], strides = [1, 1, 1]} : vector<8x16x16xbf16> to vector<1x16x16xbf16>
    %164 = vector.shape_cast %163 : vector<1x16x16xbf16> to vector<16x16xbf16>
    %165 = vector.extract_strided_slice %12 {offsets = [5, 0, 0], sizes = [1, 16, 16], strides = [1, 1, 1]} : vector<8x16x16xbf16> to vector<1x16x16xbf16>
    %166 = vector.shape_cast %165 : vector<1x16x16xbf16> to vector<16x16xbf16>
    %cst_67 = arith.constant dense<0.000000e+00> : vector<16x16xf32>
    %167 = tpu.matmul %2, %164, %cst_67 {dimension_numbers = #tpu.dot_dimension_numbers<[1], [0], [0], [1], [0, 0, 1, 1], [], []>} : vector<16x16xbf16>, vector<16x16xbf16>, vector<16x16xf32> -> vector<16x16xf32>
    %cst_68 = arith.constant dense<0.000000e+00> : vector<16x16xf32>
    %168 = tpu.matmul %3, %166, %cst_68 {dimension_numbers = #tpu.dot_dimension_numbers<[1], [0], [0], [1], [0, 0, 1, 1], [], []>} : vector<16x16xbf16>, vector<16x16xbf16>, vector<16x16xf32> -> vector<16x16xf32>
    %169 = arith.subf %167, %168 : vector<16x16xf32>
    %170 = arith.mulf %169, %169 : vector<16x16xf32>
    %171 = vector.shape_cast %170 : vector<16x16xf32> to vector<1x16x16xf32>
    %cst_69 = arith.constant dense<0.000000e+00> : vector<1xf32>
    %172 = vector.multi_reduction <add>, %171, %cst_69 [1, 2] : vector<1x16x16xf32> to vector<1xf32>
    %173 = vector.shape_cast %172 : vector<1xf32> to vector<1x1x1xf32>
    %174 = vector.extract %173[0, 0, 0] : f32 from vector<1x1x1xf32>
    %c5_i32 = arith.constant 5 : i32
    %175 = arith.addi %4, %c5_i32 : i32
    %176 = arith.index_cast %175 : i32 to index
    %177 = memref.load %arg7[%176] : memref<8xf32, #tpu.memory_space<smem>>
    %cst_70 = arith.constant 2.560000e-10 : f32
    %178 = arith.addf %174, %cst_70 : f32
    %179 = math.rsqrt %178 : f32
    %180 = arith.mulf %177, %179 : f32
    %c5 = arith.constant 5 : index
    %c0_71 = arith.constant 0 : index
    %c0_72 = arith.constant 0 : index
    %181 = vector.load %arg1[%c5, %c0_71, %c0_72] : memref<8x16x16xf32, #tpu.memory_space<vmem>>, vector<1x16x16xf32>
    %182 = vector.shape_cast %181 : vector<1x16x16xf32> to vector<16x16xf32>
    %183 = vector.broadcast %180 : f32 to vector<16x16xf32>
    %184 = arith.mulf %183, %169 : vector<16x16xf32>
    %185 = arith.addf %182, %184 : vector<16x16xf32>
    %cst_73 = arith.constant 0.000000e+00 : f32
    %cst_74 = arith.constant 1.000000e+00 : f32
    %186 = vector.broadcast %cst_73 : f32 to vector<16x16xf32>
    %187 = arith.maximumf %186, %185 : vector<16x16xf32>
    %188 = vector.broadcast %cst_74 : f32 to vector<16x16xf32>
    %189 = arith.minimumf %188, %187 : vector<16x16xf32>
    %c5_75 = arith.constant 5 : index
    %c0_76 = arith.constant 0 : index
    %c0_77 = arith.constant 0 : index
    %190 = vector.load %arg8[%c5_75, %c0_76, %c0_77] : memref<8x16x16xf32, #tpu.memory_space<vmem>>, vector<1x16x16xf32>
    %191 = vector.shape_cast %190 : vector<1x16x16xf32> to vector<16x16xf32>
    %192 = vector.shape_cast %189 : vector<16x16xf32> to vector<1x16x16xf32>
    tpu.vector_store %arg8[%c5_75, %c0_76, %c0_77], %192 {strides = array<i32>} : memref<8x16x16xf32, #tpu.memory_space<vmem>>, vector<1x16x16xf32>,
    %193 = vector.extract_strided_slice %10 {offsets = [6, 0, 0], sizes = [1, 16, 16], strides = [1, 1, 1]} : vector<8x16x16xbf16> to vector<1x16x16xbf16>
    %194 = vector.shape_cast %193 : vector<1x16x16xbf16> to vector<16x16xbf16>
    %195 = vector.extract_strided_slice %12 {offsets = [6, 0, 0], sizes = [1, 16, 16], strides = [1, 1, 1]} : vector<8x16x16xbf16> to vector<1x16x16xbf16>
    %196 = vector.shape_cast %195 : vector<1x16x16xbf16> to vector<16x16xbf16>
    %cst_78 = arith.constant dense<0.000000e+00> : vector<16x16xf32>
    %197 = tpu.matmul %2, %194, %cst_78 {dimension_numbers = #tpu.dot_dimension_numbers<[1], [0], [0], [1], [0, 0, 1, 1], [], []>} : vector<16x16xbf16>, vector<16x16xbf16>, vector<16x16xf32> -> vector<16x16xf32>
    %cst_79 = arith.constant dense<0.000000e+00> : vector<16x16xf32>
    %198 = tpu.matmul %3, %196, %cst_79 {dimension_numbers = #tpu.dot_dimension_numbers<[1], [0], [0], [1], [0, 0, 1, 1], [], []>} : vector<16x16xbf16>, vector<16x16xbf16>, vector<16x16xf32> -> vector<16x16xf32>
    %199 = arith.subf %197, %198 : vector<16x16xf32>
    %200 = arith.mulf %199, %199 : vector<16x16xf32>
    %201 = vector.shape_cast %200 : vector<16x16xf32> to vector<1x16x16xf32>
    %cst_80 = arith.constant dense<0.000000e+00> : vector<1xf32>
    %202 = vector.multi_reduction <add>, %201, %cst_80 [1, 2] : vector<1x16x16xf32> to vector<1xf32>
    %203 = vector.shape_cast %202 : vector<1xf32> to vector<1x1x1xf32>
    %204 = vector.extract %203[0, 0, 0] : f32 from vector<1x1x1xf32>
    %c6_i32 = arith.constant 6 : i32
    %205 = arith.addi %4, %c6_i32 : i32
    %206 = arith.index_cast %205 : i32 to index
    %207 = memref.load %arg7[%206] : memref<8xf32, #tpu.memory_space<smem>>
    %cst_81 = arith.constant 2.560000e-10 : f32
    %208 = arith.addf %204, %cst_81 : f32
    %209 = math.rsqrt %208 : f32
    %210 = arith.mulf %207, %209 : f32
    %c6 = arith.constant 6 : index
    %c0_82 = arith.constant 0 : index
    %c0_83 = arith.constant 0 : index
    %211 = vector.load %arg1[%c6, %c0_82, %c0_83] : memref<8x16x16xf32, #tpu.memory_space<vmem>>, vector<1x16x16xf32>
    %212 = vector.shape_cast %211 : vector<1x16x16xf32> to vector<16x16xf32>
    %213 = vector.broadcast %210 : f32 to vector<16x16xf32>
    %214 = arith.mulf %213, %199 : vector<16x16xf32>
    %215 = arith.addf %212, %214 : vector<16x16xf32>
    %cst_84 = arith.constant 0.000000e+00 : f32
    %cst_85 = arith.constant 1.000000e+00 : f32
    %216 = vector.broadcast %cst_84 : f32 to vector<16x16xf32>
    %217 = arith.maximumf %216, %215 : vector<16x16xf32>
    %218 = vector.broadcast %cst_85 : f32 to vector<16x16xf32>
    %219 = arith.minimumf %218, %217 : vector<16x16xf32>
    %c6_86 = arith.constant 6 : index
    %c0_87 = arith.constant 0 : index
    %c0_88 = arith.constant 0 : index
    %220 = vector.load %arg8[%c6_86, %c0_87, %c0_88] : memref<8x16x16xf32, #tpu.memory_space<vmem>>, vector<1x16x16xf32>
    %221 = vector.shape_cast %220 : vector<1x16x16xf32> to vector<16x16xf32>
    %222 = vector.shape_cast %219 : vector<16x16xf32> to vector<1x16x16xf32>
    tpu.vector_store %arg8[%c6_86, %c0_87, %c0_88], %222 {strides = array<i32>} : memref<8x16x16xf32, #tpu.memory_space<vmem>>, vector<1x16x16xf32>,
    %223 = vector.extract_strided_slice %10 {offsets = [7, 0, 0], sizes = [1, 16, 16], strides = [1, 1, 1]} : vector<8x16x16xbf16> to vector<1x16x16xbf16>
    %224 = vector.shape_cast %223 : vector<1x16x16xbf16> to vector<16x16xbf16>
    %225 = vector.extract_strided_slice %12 {offsets = [7, 0, 0], sizes = [1, 16, 16], strides = [1, 1, 1]} : vector<8x16x16xbf16> to vector<1x16x16xbf16>
    %226 = vector.shape_cast %225 : vector<1x16x16xbf16> to vector<16x16xbf16>
    %cst_89 = arith.constant dense<0.000000e+00> : vector<16x16xf32>
    %227 = tpu.matmul %2, %224, %cst_89 {dimension_numbers = #tpu.dot_dimension_numbers<[1], [0], [0], [1], [0, 0, 1, 1], [], []>} : vector<16x16xbf16>, vector<16x16xbf16>, vector<16x16xf32> -> vector<16x16xf32>
    %cst_90 = arith.constant dense<0.000000e+00> : vector<16x16xf32>
    %228 = tpu.matmul %3, %226, %cst_90 {dimension_numbers = #tpu.dot_dimension_numbers<[1], [0], [0], [1], [0, 0, 1, 1], [], []>} : vector<16x16xbf16>, vector<16x16xbf16>, vector<16x16xf32> -> vector<16x16xf32>
    %229 = arith.subf %227, %228 : vector<16x16xf32>
    %230 = arith.mulf %229, %229 : vector<16x16xf32>
    %231 = vector.shape_cast %230 : vector<16x16xf32> to vector<1x16x16xf32>
    %cst_91 = arith.constant dense<0.000000e+00> : vector<1xf32>
    %232 = vector.multi_reduction <add>, %231, %cst_91 [1, 2] : vector<1x16x16xf32> to vector<1xf32>
    %233 = vector.shape_cast %232 : vector<1xf32> to vector<1x1x1xf32>
    %234 = vector.extract %233[0, 0, 0] : f32 from vector<1x1x1xf32>
    %c7_i32 = arith.constant 7 : i32
    %235 = arith.addi %4, %c7_i32 : i32
    %236 = arith.index_cast %235 : i32 to index
    %237 = memref.load %arg7[%236] : memref<8xf32, #tpu.memory_space<smem>>
    %cst_92 = arith.constant 2.560000e-10 : f32
    %238 = arith.addf %234, %cst_92 : f32
    %239 = math.rsqrt %238 : f32
    %240 = arith.mulf %237, %239 : f32
    %c7 = arith.constant 7 : index
    %c0_93 = arith.constant 0 : index
    %c0_94 = arith.constant 0 : index
    %241 = vector.load %arg1[%c7, %c0_93, %c0_94] : memref<8x16x16xf32, #tpu.memory_space<vmem>>, vector<1x16x16xf32>
    %242 = vector.shape_cast %241 : vector<1x16x16xf32> to vector<16x16xf32>
    %243 = vector.broadcast %240 : f32 to vector<16x16xf32>
    %244 = arith.mulf %243, %229 : vector<16x16xf32>
    %245 = arith.addf %242, %244 : vector<16x16xf32>
    %cst_95 = arith.constant 0.000000e+00 : f32
    %cst_96 = arith.constant 1.000000e+00 : f32
    %246 = vector.broadcast %cst_95 : f32 to vector<16x16xf32>
    %247 = arith.maximumf %246, %245 : vector<16x16xf32>
    %248 = vector.broadcast %cst_96 : f32 to vector<16x16xf32>
    %249 = arith.minimumf %248, %247 : vector<16x16xf32>
    %c7_97 = arith.constant 7 : index
    %c0_98 = arith.constant 0 : index
    %c0_99 = arith.constant 0 : index
    %250 = vector.load %arg8[%c7_97, %c0_98, %c0_99] : memref<8x16x16xf32, #tpu.memory_space<vmem>>, vector<1x16x16xf32>
    %251 = vector.shape_cast %250 : vector<1x16x16xf32> to vector<16x16xf32>
    %252 = vector.shape_cast %249 : vector<16x16xf32> to vector<1x16x16xf32>
    tpu.vector_store %arg8[%c7_97, %c0_98, %c0_99], %252 {strides = array<i32>} : memref<8x16x16xf32, #tpu.memory_space<vmem>>, vector<1x16x16xf32>,
    return
  }
  func.func @transform_0(%arg0: i32) -> (i32, i32, i32) {
    %c0_i32 = arith.constant 0 : i32
    %c0_i32_0 = arith.constant 0 : i32
    %c0_i32_1 = arith.constant 0 : i32
    return %arg0, %c0_i32, %c0_i32_0 : i32, i32, i32
  }
  func.func @transform_1(%arg0: i32) -> (i32, i32, i32) {
    %c0_i32 = arith.constant 0 : i32
    %c0_i32_0 = arith.constant 0 : i32
    %c0_i32_1 = arith.constant 0 : i32
    return %arg0, %c0_i32, %c0_i32_0 : i32, i32, i32
  }
  func.func @transform_2(%arg0: i32) -> (i32, i32) {
    %c0_i32 = arith.constant 0 : i32
    %c0_i32_0 = arith.constant 0 : i32
    %c0_i32_1 = arith.constant 0 : i32
    return %c0_i32, %c0_i32_0 : i32, i32
  }
  func.func @transform_3(%arg0: i32) -> (i32, i32) {
    %c0_i32 = arith.constant 0 : i32
    %c0_i32_0 = arith.constant 0 : i32
    %c0_i32_1 = arith.constant 0 : i32
    return %c0_i32, %c0_i32_0 : i32, i32
  }
  func.func @transform_4(%arg0: i32) -> (i32, i32) {
    %c0_i32 = arith.constant 0 : i32
    %c0_i32_0 = arith.constant 0 : i32
    %c0_i32_1 = arith.constant 0 : i32
    return %c0_i32, %c0_i32_0 : i32, i32
  }
  func.func @transform_5(%arg0: i32) -> (i32, i32) {
    %c0_i32 = arith.constant 0 : i32
    %c0_i32_0 = arith.constant 0 : i32
    %c0_i32_1 = arith.constant 0 : i32
    return %c0_i32, %c0_i32_0 : i32, i32
  }
  func.func @transform_6(%arg0: i32) -> i32 {
    %c0_i32 = arith.constant 0 : i32
    %c0_i32_0 = arith.constant 0 : i32
    return %c0_i32 : i32
  }
  func.func @transform_7(%arg0: i32) -> (i32, i32, i32) {
    %c0_i32 = arith.constant 0 : i32
    %c0_i32_0 = arith.constant 0 : i32
    %c0_i32_1 = arith.constant 0 : i32
    return %arg0, %c0_i32, %c0_i32_0 : i32, i32, i32
  }
}

module attributes {stable_mosaic.version = 11 : i64} {
  func.func @_afa_kernel(%arg0: i32, %arg1: memref<8x16x16xf32, #tpu.memory_space<vmem>>, %arg2: memref<8x16x16xbf16, #tpu.memory_space<vmem>>, %arg3: memref<16x16xbf16, #tpu.memory_space<vmem>>, %arg4: memref<16x16xbf16, #tpu.memory_space<vmem>>, %arg5: memref<16x16xbf16, #tpu.memory_space<vmem>>, %arg6: memref<16x16xbf16, #tpu.memory_space<vmem>>, %arg7: memref<8xf32, #tpu.memory_space<smem>>, %arg8: memref<8x16x16xf32, #tpu.memory_space<vmem>>) attributes {dimension_semantics = [#tpu.dimension_semantics<parallel>], iteration_bounds = array<i64: 1>, scalar_prefetch = 0 : i64, scratch_operands = 0 : i64, tpu.core_type = #tpu.core_type<tc>, window_params = [{transform_indices = @transform_0, window_bounds = array<i64: 8, 16, 16>}, {transform_indices = @transform_1, window_bounds = array<i64: 8, 16, 16>}, {pipeline_mode = #tpu.pipeline_mode<synchronous>, transform_indices = @transform_2, window_bounds = array<i64: 16, 16>}, {pipeline_mode = #tpu.pipeline_mode<synchronous>, transform_indices = @transform_3, window_bounds = array<i64: 16, 16>}, {pipeline_mode = #tpu.pipeline_mode<synchronous>, transform_indices = @transform_4, window_bounds = array<i64: 16, 16>}, {pipeline_mode = #tpu.pipeline_mode<synchronous>, transform_indices = @transform_5, window_bounds = array<i64: 16, 16>}, {transform_indices = @transform_6, window_bounds = array<i64: 8>}, {transform_indices = @transform_7, window_bounds = array<i64: 8, 16, 16>}]} {
    %c0 = arith.constant 0 : index
    %c0_0 = arith.constant 0 : index
    %0 = vector.load %arg3[%c0, %c0_0] : memref<16x16xbf16, #tpu.memory_space<vmem>>, vector<16x16xbf16>
    %c0_1 = arith.constant 0 : index
    %c0_2 = arith.constant 0 : index
    %1 = vector.load %arg4[%c0_1, %c0_2] : memref<16x16xbf16, #tpu.memory_space<vmem>>, vector<16x16xbf16>
    %c0_3 = arith.constant 0 : index
    %c0_4 = arith.constant 0 : index
    %2 = vector.load %arg5[%c0_3, %c0_4] : memref<16x16xbf16, #tpu.memory_space<vmem>>, vector<16x16xbf16>
    %c0_5 = arith.constant 0 : index
    %c0_6 = arith.constant 0 : index
    %3 = vector.load %arg6[%c0_5, %c0_6] : memref<16x16xbf16, #tpu.memory_space<vmem>>, vector<16x16xbf16>
    %c8_i32 = arith.constant 8 : i32
    %4 = arith.muli %arg0, %c8_i32 : i32
    %c0_7 = arith.constant 0 : index
    %c0_8 = arith.constant 0 : index
    %c0_9 = arith.constant 0 : index
    %5 = vector.load %arg2[%c0_7, %c0_8, %c0_9] : memref<8x16x16xbf16, #tpu.memory_space<vmem>>, vector<8x16x16xbf16>
    %6 = vector.shape_cast %5 : vector<8x16x16xbf16> to vector<128x16xbf16>
    %cst = arith.constant dense<0.000000e+00> : vector<128x16xf32>
    %7 = tpu.matmul %6, %0, %cst {dimension_numbers = #tpu.dot_dimension_numbers<[1], [0], [0], [1], [0, 0, 1, 1], [], []>} : vector<128x16xbf16>, vector<16x16xbf16>, vector<128x16xf32> -> vector<128x16xf32>
    %cst_10 = arith.constant dense<0.000000e+00> : vector<128x16xf32>
    %8 = tpu.matmul %6, %1, %cst_10 {dimension_numbers = #tpu.dot_dimension_numbers<[1], [0], [0], [1], [0, 0, 1, 1], [], []>} : vector<128x16xbf16>, vector<16x16xbf16>, vector<128x16xf32> -> vector<128x16xf32>
    %9 = vector.shape_cast %7 : vector<128x16xf32> to vector<8x16x16xf32>
    %10 = arith.truncf %9 : vector<8x16x16xf32> to vector<8x16x16xbf16>
    %11 = vector.shape_cast %8 : vector<128x16xf32> to vector<8x16x16xf32>
    %12 = arith.truncf %11 : vector<8x16x16xf32> to vector<8x16x16xbf16>
    %13 = vector.extract_strided_slice %10 {offsets = [0, 0, 0], sizes = [1, 16, 16], strides = [1, 1, 1]} : vector<8x16x16xbf16> to vector<1x16x16xbf16>
    %14 = vector.shape_cast %13 : vector<1x16x16xbf16> to vector<16x16xbf16>
    %15 = vector.extract_strided_slice %12 {offsets = [0, 0, 0], sizes = [1, 16, 16], strides = [1, 1, 1]} : vector<8x16x16xbf16> to vector<1x16x16xbf16>
    %16 = vector.shape_cast %15 : vector<1x16x16xbf16> to vector<16x16xbf16>
    %cst_11 = arith.constant dense<0.000000e+00> : vector<16x16xf32>
    %17 = tpu.matmul %2, %14, %cst_11 {dimension_numbers = #tpu.dot_dimension_numbers<[1], [0], [0], [1], [0, 0, 1, 1], [], []>} : vector<16x16xbf16>, vector<16x16xbf16>, vector<16x16xf32> -> vector<16x16xf32>
    %cst_12 = arith.constant dense<0.000000e+00> : vector<16x16xf32>
    %18 = tpu.matmul %3, %16, %cst_12 {dimension_numbers = #tpu.dot_dimension_numbers<[1], [0], [0], [1], [0, 0, 1, 1], [], []>} : vector<16x16xbf16>, vector<16x16xbf16>, vector<16x16xf32> -> vector<16x16xf32>
    %19 = arith.subf %17, %18 : vector<16x16xf32>
    %20 = arith.mulf %19, %19 : vector<16x16xf32>
    %21 = vector.shape_cast %20 : vector<16x16xf32> to vector<1x16x16xf32>
    %cst_13 = arith.constant dense<0.000000e+00> : vector<1xf32>
    %22 = vector.multi_reduction <add>, %21, %cst_13 [1, 2] : vector<1x16x16xf32> to vector<1xf32>
    %23 = vector.shape_cast %22 : vector<1xf32> to vector<1x1x1xf32>
    %24 = vector.extract %23[0, 0, 0] : f32 from vector<1x1x1xf32>
    %c0_i32 = arith.constant 0 : i32
    %25 = arith.addi %4, %c0_i32 : i32
    %26 = arith.index_cast %25 : i32 to index
    %27 = memref.load %arg7[%26] : memref<8xf32, #tpu.memory_space<smem>>
    %cst_14 = arith.constant 2.560000e-10 : f32
    %28 = arith.addf %24, %cst_14 : f32
    %29 = math.rsqrt %28 : f32
    %30 = arith.mulf %27, %29 : f32
    %c0_15 = arith.constant 0 : index
    %c0_16 = arith.constant 0 : index
    %c0_17 = arith.constant 0 : index
    %31 = vector.load %arg1[%c0_15, %c0_16, %c0_17] : memref<8x16x16xf32, #tpu.memory_space<vmem>>, vector<1x16x16xf32>
    %32 = vector.shape_cast %31 : vector<1x16x16xf32> to vector<16x16xf32>
    %33 = vector.broadcast %30 : f32 to vector<16x16xf32>
    %34 = arith.mulf %33, %19 : vector<16x16xf32>
    %35 = arith.addf %32, %34 : vector<16x16xf32>
    %cst_18 = arith.constant 0.000000e+00 : f32
    %cst_19 = arith.constant 1.000000e+00 : f32
    %36 = vector.broadcast %cst_18 : f32 to vector<16x16xf32>
    %37 = arith.maximumf %36, %35 : vector<16x16xf32>
    %38 = vector.broadcast %cst_19 : f32 to vector<16x16xf32>
    %39 = arith.minimumf %38, %37 : vector<16x16xf32>
    %c0_20 = arith.constant 0 : index
    %c0_21 = arith.constant 0 : index
    %c0_22 = arith.constant 0 : index
    %40 = vector.load %arg8[%c0_20, %c0_21, %c0_22] : memref<8x16x16xf32, #tpu.memory_space<vmem>>, vector<1x16x16xf32>
    %41 = vector.shape_cast %40 : vector<1x16x16xf32> to vector<16x16xf32>
    %42 = vector.shape_cast %39 : vector<16x16xf32> to vector<1x16x16xf32>
    tpu.vector_store %arg8[%c0_20, %c0_21, %c0_22], %42 {strides = array<i32>} : memref<8x16x16xf32, #tpu.memory_space<vmem>>, vector<1x16x16xf32>,
    %43 = vector.extract_strided_slice %10 {offsets = [1, 0, 0], sizes = [1, 16, 16], strides = [1, 1, 1]} : vector<8x16x16xbf16> to vector<1x16x16xbf16>
    %44 = vector.shape_cast %43 : vector<1x16x16xbf16> to vector<16x16xbf16>
    %45 = vector.extract_strided_slice %12 {offsets = [1, 0, 0], sizes = [1, 16, 16], strides = [1, 1, 1]} : vector<8x16x16xbf16> to vector<1x16x16xbf16>
    %46 = vector.shape_cast %45 : vector<1x16x16xbf16> to vector<16x16xbf16>
    %cst_23 = arith.constant dense<0.000000e+00> : vector<16x16xf32>
    %47 = tpu.matmul %2, %44, %cst_23 {dimension_numbers = #tpu.dot_dimension_numbers<[1], [0], [0], [1], [0, 0, 1, 1], [], []>} : vector<16x16xbf16>, vector<16x16xbf16>, vector<16x16xf32> -> vector<16x16xf32>
    %cst_24 = arith.constant dense<0.000000e+00> : vector<16x16xf32>
    %48 = tpu.matmul %3, %46, %cst_24 {dimension_numbers = #tpu.dot_dimension_numbers<[1], [0], [0], [1], [0, 0, 1, 1], [], []>} : vector<16x16xbf16>, vector<16x16xbf16>, vector<16x16xf32> -> vector<16x16xf32>
    %49 = arith.subf %47, %48 : vector<16x16xf32>
    %50 = arith.mulf %49, %49 : vector<16x16xf32>
    %51 = vector.shape_cast %50 : vector<16x16xf32> to vector<1x16x16xf32>
    %cst_25 = arith.constant dense<0.000000e+00> : vector<1xf32>
    %52 = vector.multi_reduction <add>, %51, %cst_25 [1, 2] : vector<1x16x16xf32> to vector<1xf32>
    %53 = vector.shape_cast %52 : vector<1xf32> to vector<1x1x1xf32>
    %54 = vector.extract %53[0, 0, 0] : f32 from vector<1x1x1xf32>
    %c1_i32 = arith.constant 1 : i32
    %55 = arith.addi %4, %c1_i32 : i32
    %56 = arith.index_cast %55 : i32 to index
    %57 = memref.load %arg7[%56] : memref<8xf32, #tpu.memory_space<smem>>
    %cst_26 = arith.constant 2.560000e-10 : f32
    %58 = arith.addf %54, %cst_26 : f32
    %59 = math.rsqrt %58 : f32
    %60 = arith.mulf %57, %59 : f32
    %c1 = arith.constant 1 : index
    %c0_27 = arith.constant 0 : index
    %c0_28 = arith.constant 0 : index
    %61 = vector.load %arg1[%c1, %c0_27, %c0_28] : memref<8x16x16xf32, #tpu.memory_space<vmem>>, vector<1x16x16xf32>
    %62 = vector.shape_cast %61 : vector<1x16x16xf32> to vector<16x16xf32>
    %63 = vector.broadcast %60 : f32 to vector<16x16xf32>
    %64 = arith.mulf %63, %49 : vector<16x16xf32>
    %65 = arith.addf %62, %64 : vector<16x16xf32>
    %cst_29 = arith.constant 0.000000e+00 : f32
    %cst_30 = arith.constant 1.000000e+00 : f32
    %66 = vector.broadcast %cst_29 : f32 to vector<16x16xf32>
    %67 = arith.maximumf %66, %65 : vector<16x16xf32>
    %68 = vector.broadcast %cst_30 : f32 to vector<16x16xf32>
    %69 = arith.minimumf %68, %67 : vector<16x16xf32>
    %c1_31 = arith.constant 1 : index
    %c0_32 = arith.constant 0 : index
    %c0_33 = arith.constant 0 : index
    %70 = vector.load %arg8[%c1_31, %c0_32, %c0_33] : memref<8x16x16xf32, #tpu.memory_space<vmem>>, vector<1x16x16xf32>
    %71 = vector.shape_cast %70 : vector<1x16x16xf32> to vector<16x16xf32>
    %72 = vector.shape_cast %69 : vector<16x16xf32> to vector<1x16x16xf32>
    tpu.vector_store %arg8[%c1_31, %c0_32, %c0_33], %72 {strides = array<i32>} : memref<8x16x16xf32, #tpu.memory_space<vmem>>, vector<1x16x16xf32>,
    %73 = vector.extract_strided_slice %10 {offsets = [2, 0, 0], sizes = [1, 16, 16], strides = [1, 1, 1]} : vector<8x16x16xbf16> to vector<1x16x16xbf16>
    %74 = vector.shape_cast %73 : vector<1x16x16xbf16> to vector<16x16xbf16>
    %75 = vector.extract_strided_slice %12 {offsets = [2, 0, 0], sizes = [1, 16, 16], strides = [1, 1, 1]} : vector<8x16x16xbf16> to vector<1x16x16xbf16>
    %76 = vector.shape_cast %75 : vector<1x16x16xbf16> to vector<16x16xbf16>
    %cst_34 = arith.constant dense<0.000000e+00> : vector<16x16xf32>
    %77 = tpu.matmul %2, %74, %cst_34 {dimension_numbers = #tpu.dot_dimension_numbers<[1], [0], [0], [1], [0, 0, 1, 1], [], []>} : vector<16x16xbf16>, vector<16x16xbf16>, vector<16x16xf32> -> vector<16x16xf32>
    %cst_35 = arith.constant dense<0.000000e+00> : vector<16x16xf32>
    %78 = tpu.matmul %3, %76, %cst_35 {dimension_numbers = #tpu.dot_dimension_numbers<[1], [0], [0], [1], [0, 0, 1, 1], [], []>} : vector<16x16xbf16>, vector<16x16xbf16>, vector<16x16xf32> -> vector<16x16xf32>
    %79 = arith.subf %77, %78 : vector<16x16xf32>
    %80 = arith.mulf %79, %79 : vector<16x16xf32>
    %81 = vector.shape_cast %80 : vector<16x16xf32> to vector<1x16x16xf32>
    %cst_36 = arith.constant dense<0.000000e+00> : vector<1xf32>
    %82 = vector.multi_reduction <add>, %81, %cst_36 [1, 2] : vector<1x16x16xf32> to vector<1xf32>
    %83 = vector.shape_cast %82 : vector<1xf32> to vector<1x1x1xf32>
    %84 = vector.extract %83[0, 0, 0] : f32 from vector<1x1x1xf32>
    %c2_i32 = arith.constant 2 : i32
    %85 = arith.addi %4, %c2_i32 : i32
    %86 = arith.index_cast %85 : i32 to index
    %87 = memref.load %arg7[%86] : memref<8xf32, #tpu.memory_space<smem>>
    %cst_37 = arith.constant 2.560000e-10 : f32
    %88 = arith.addf %84, %cst_37 : f32
    %89 = math.rsqrt %88 : f32
    %90 = arith.mulf %87, %89 : f32
    %c2 = arith.constant 2 : index
    %c0_38 = arith.constant 0 : index
    %c0_39 = arith.constant 0 : index
    %91 = vector.load %arg1[%c2, %c0_38, %c0_39] : memref<8x16x16xf32, #tpu.memory_space<vmem>>, vector<1x16x16xf32>
    %92 = vector.shape_cast %91 : vector<1x16x16xf32> to vector<16x16xf32>
    %93 = vector.broadcast %90 : f32 to vector<16x16xf32>
    %94 = arith.mulf %93, %79 : vector<16x16xf32>
    %95 = arith.addf %92, %94 : vector<16x16xf32>
    %cst_40 = arith.constant 0.000000e+00 : f32
    %cst_41 = arith.constant 1.000000e+00 : f32
    %96 = vector.broadcast %cst_40 : f32 to vector<16x16xf32>
    %97 = arith.maximumf %96, %95 : vector<16x16xf32>
    %98 = vector.broadcast %cst_41 : f32 to vector<16x16xf32>
    %99 = arith.minimumf %98, %97 : vector<16x16xf32>
    %c2_42 = arith.constant 2 : index
    %c0_43 = arith.constant 0 : index
    %c0_44 = arith.constant 0 : index
    %100 = vector.load %arg8[%c2_42, %c0_43, %c0_44] : memref<8x16x16xf32, #tpu.memory_space<vmem>>, vector<1x16x16xf32>
    %101 = vector.shape_cast %100 : vector<1x16x16xf32> to vector<16x16xf32>
    %102 = vector.shape_cast %99 : vector<16x16xf32> to vector<1x16x16xf32>
    tpu.vector_store %arg8[%c2_42, %c0_43, %c0_44], %102 {strides = array<i32>} : memref<8x16x16xf32, #tpu.memory_space<vmem>>, vector<1x16x16xf32>,
    %103 = vector.extract_strided_slice %10 {offsets = [3, 0, 0], sizes = [1, 16, 16], strides = [1, 1, 1]} : vector<8x16x16xbf16> to vector<1x16x16xbf16>
    %104 = vector.shape_cast %103 : vector<1x16x16xbf16> to vector<16x16xbf16>
    %105 = vector.extract_strided_slice %12 {offsets = [3, 0, 0], sizes = [1, 16, 16], strides = [1, 1, 1]} : vector<8x16x16xbf16> to vector<1x16x16xbf16>
    %106 = vector.shape_cast %105 : vector<1x16x16xbf16> to vector<16x16xbf16>
    %cst_45 = arith.constant dense<0.000000e+00> : vector<16x16xf32>
    %107 = tpu.matmul %2, %104, %cst_45 {dimension_numbers = #tpu.dot_dimension_numbers<[1], [0], [0], [1], [0, 0, 1, 1], [], []>} : vector<16x16xbf16>, vector<16x16xbf16>, vector<16x16xf32> -> vector<16x16xf32>
    %cst_46 = arith.constant dense<0.000000e+00> : vector<16x16xf32>
    %108 = tpu.matmul %3, %106, %cst_46 {dimension_numbers = #tpu.dot_dimension_numbers<[1], [0], [0], [1], [0, 0, 1, 1], [], []>} : vector<16x16xbf16>, vector<16x16xbf16>, vector<16x16xf32> -> vector<16x16xf32>
    %109 = arith.subf %107, %108 : vector<16x16xf32>
    %110 = arith.mulf %109, %109 : vector<16x16xf32>
    %111 = vector.shape_cast %110 : vector<16x16xf32> to vector<1x16x16xf32>
    %cst_47 = arith.constant dense<0.000000e+00> : vector<1xf32>
    %112 = vector.multi_reduction <add>, %111, %cst_47 [1, 2] : vector<1x16x16xf32> to vector<1xf32>
    %113 = vector.shape_cast %112 : vector<1xf32> to vector<1x1x1xf32>
    %114 = vector.extract %113[0, 0, 0] : f32 from vector<1x1x1xf32>
    %c3_i32 = arith.constant 3 : i32
    %115 = arith.addi %4, %c3_i32 : i32
    %116 = arith.index_cast %115 : i32 to index
    %117 = memref.load %arg7[%116] : memref<8xf32, #tpu.memory_space<smem>>
    %cst_48 = arith.constant 2.560000e-10 : f32
    %118 = arith.addf %114, %cst_48 : f32
    %119 = math.rsqrt %118 : f32
    %120 = arith.mulf %117, %119 : f32
    %c3 = arith.constant 3 : index
    %c0_49 = arith.constant 0 : index
    %c0_50 = arith.constant 0 : index
    %121 = vector.load %arg1[%c3, %c0_49, %c0_50] : memref<8x16x16xf32, #tpu.memory_space<vmem>>, vector<1x16x16xf32>
    %122 = vector.shape_cast %121 : vector<1x16x16xf32> to vector<16x16xf32>
    %123 = vector.broadcast %120 : f32 to vector<16x16xf32>
    %124 = arith.mulf %123, %109 : vector<16x16xf32>
    %125 = arith.addf %122, %124 : vector<16x16xf32>
    %cst_51 = arith.constant 0.000000e+00 : f32
    %cst_52 = arith.constant 1.000000e+00 : f32
    %126 = vector.broadcast %cst_51 : f32 to vector<16x16xf32>
    %127 = arith.maximumf %126, %125 : vector<16x16xf32>
    %128 = vector.broadcast %cst_52 : f32 to vector<16x16xf32>
    %129 = arith.minimumf %128, %127 : vector<16x16xf32>
    %c3_53 = arith.constant 3 : index
    %c0_54 = arith.constant 0 : index
    %c0_55 = arith.constant 0 : index
    %130 = vector.load %arg8[%c3_53, %c0_54, %c0_55] : memref<8x16x16xf32, #tpu.memory_space<vmem>>, vector<1x16x16xf32>
    %131 = vector.shape_cast %130 : vector<1x16x16xf32> to vector<16x16xf32>
    %132 = vector.shape_cast %129 : vector<16x16xf32> to vector<1x16x16xf32>
    tpu.vector_store %arg8[%c3_53, %c0_54, %c0_55], %132 {strides = array<i32>} : memref<8x16x16xf32, #tpu.memory_space<vmem>>, vector<1x16x16xf32>,
    %133 = vector.extract_strided_slice %10 {offsets = [4, 0, 0], sizes = [1, 16, 16], strides = [1, 1, 1]} : vector<8x16x16xbf16> to vector<1x16x16xbf16>
    %134 = vector.shape_cast %133 : vector<1x16x16xbf16> to vector<16x16xbf16>
    %135 = vector.extract_strided_slice %12 {offsets = [4, 0, 0], sizes = [1, 16, 16], strides = [1, 1, 1]} : vector<8x16x16xbf16> to vector<1x16x16xbf16>
    %136 = vector.shape_cast %135 : vector<1x16x16xbf16> to vector<16x16xbf16>
    %cst_56 = arith.constant dense<0.000000e+00> : vector<16x16xf32>
    %137 = tpu.matmul %2, %134, %cst_56 {dimension_numbers = #tpu.dot_dimension_numbers<[1], [0], [0], [1], [0, 0, 1, 1], [], []>} : vector<16x16xbf16>, vector<16x16xbf16>, vector<16x16xf32> -> vector<16x16xf32>
    %cst_57 = arith.constant dense<0.000000e+00> : vector<16x16xf32>
    %138 = tpu.matmul %3, %136, %cst_57 {dimension_numbers = #tpu.dot_dimension_numbers<[1], [0], [0], [1], [0, 0, 1, 1], [], []>} : vector<16x16xbf16>, vector<16x16xbf16>, vector<16x16xf32> -> vector<16x16xf32>
    %139 = arith.subf %137, %138 : vector<16x16xf32>
    %140 = arith.mulf %139, %139 : vector<16x16xf32>
    %141 = vector.shape_cast %140 : vector<16x16xf32> to vector<1x16x16xf32>
    %cst_58 = arith.constant dense<0.000000e+00> : vector<1xf32>
    %142 = vector.multi_reduction <add>, %141, %cst_58 [1, 2] : vector<1x16x16xf32> to vector<1xf32>
    %143 = vector.shape_cast %142 : vector<1xf32> to vector<1x1x1xf32>
    %144 = vector.extract %143[0, 0, 0] : f32 from vector<1x1x1xf32>
    %c4_i32 = arith.constant 4 : i32
    %145 = arith.addi %4, %c4_i32 : i32
    %146 = arith.index_cast %145 : i32 to index
    %147 = memref.load %arg7[%146] : memref<8xf32, #tpu.memory_space<smem>>
    %cst_59 = arith.constant 2.560000e-10 : f32
    %148 = arith.addf %144, %cst_59 : f32
    %149 = math.rsqrt %148 : f32
    %150 = arith.mulf %147, %149 : f32
    %c4 = arith.constant 4 : index
    %c0_60 = arith.constant 0 : index
    %c0_61 = arith.constant 0 : index
    %151 = vector.load %arg1[%c4, %c0_60, %c0_61] : memref<8x16x16xf32, #tpu.memory_space<vmem>>, vector<1x16x16xf32>
    %152 = vector.shape_cast %151 : vector<1x16x16xf32> to vector<16x16xf32>
    %153 = vector.broadcast %150 : f32 to vector<16x16xf32>
    %154 = arith.mulf %153, %139 : vector<16x16xf32>
    %155 = arith.addf %152, %154 : vector<16x16xf32>
    %cst_62 = arith.constant 0.000000e+00 : f32
    %cst_63 = arith.constant 1.000000e+00 : f32
    %156 = vector.broadcast %cst_62 : f32 to vector<16x16xf32>
    %157 = arith.maximumf %156, %155 : vector<16x16xf32>
    %158 = vector.broadcast %cst_63 : f32 to vector<16x16xf32>
    %159 = arith.minimumf %158, %157 : vector<16x16xf32>
    %c4_64 = arith.constant 4 : index
    %c0_65 = arith.constant 0 : index
    %c0_66 = arith.constant 0 : index
    %160 = vector.load %arg8[%c4_64, %c0_65, %c0_66] : memref<8x16x16xf32, #tpu.memory_space<vmem>>, vector<1x16x16xf32>
    %161 = vector.shape_cast %160 : vector<1x16x16xf32> to vector<16x16xf32>
    %162 = vector.shape_cast %159 : vector<16x16xf32> to vector<1x16x16xf32>
    tpu.vector_store %arg8[%c4_64, %c0_65, %c0_66], %162 {strides = array<i32>} : memref<8x16x16xf32, #tpu.memory_space<vmem>>, vector<1x16x16xf32>,
    %163 = vector.extract_strided_slice %10 {offsets = [5, 0, 0], sizes = [1, 16, 16], strides = [1, 1, 1]} : vector<8x16x16xbf16> to vector<1x16x16xbf16>
    %164 = vector.shape_cast %163 : vector<1x16x16xbf16> to vector<16x16xbf16>
    %165 = vector.extract_strided_slice %12 {offsets = [5, 0, 0], sizes = [1, 16, 16], strides = [1, 1, 1]} : vector<8x16x16xbf16> to vector<1x16x16xbf16>
    %166 = vector.shape_cast %165 : vector<1x16x16xbf16> to vector<16x16xbf16>
    %cst_67 = arith.constant dense<0.000000e+00> : vector<16x16xf32>
    %167 = tpu.matmul %2, %164, %cst_67 {dimension_numbers = #tpu.dot_dimension_numbers<[1], [0], [0], [1], [0, 0, 1, 1], [], []>} : vector<16x16xbf16>, vector<16x16xbf16>, vector<16x16xf32> -> vector<16x16xf32>
    %cst_68 = arith.constant dense<0.000000e+00> : vector<16x16xf32>
    %168 = tpu.matmul %3, %166, %cst_68 {dimension_numbers = #tpu.dot_dimension_numbers<[1], [0], [0], [1], [0, 0, 1, 1], [], []>} : vector<16x16xbf16>, vector<16x16xbf16>, vector<16x16xf32> -> vector<16x16xf32>
    %169 = arith.subf %167, %168 : vector<16x16xf32>
    %170 = arith.mulf %169, %169 : vector<16x16xf32>
    %171 = vector.shape_cast %170 : vector<16x16xf32> to vector<1x16x16xf32>
    %cst_69 = arith.constant dense<0.000000e+00> : vector<1xf32>
    %172 = vector.multi_reduction <add>, %171, %cst_69 [1, 2] : vector<1x16x16xf32> to vector<1xf32>
    %173 = vector.shape_cast %172 : vector<1xf32> to vector<1x1x1xf32>
    %174 = vector.extract %173[0, 0, 0] : f32 from vector<1x1x1xf32>
    %c5_i32 = arith.constant 5 : i32
    %175 = arith.addi %4, %c5_i32 : i32
    %176 = arith.index_cast %175 : i32 to index
    %177 = memref.load %arg7[%176] : memref<8xf32, #tpu.memory_space<smem>>
    %cst_70 = arith.constant 2.560000e-10 : f32
    %178 = arith.addf %174, %cst_70 : f32
    %179 = math.rsqrt %178 : f32
    %180 = arith.mulf %177, %179 : f32
    %c5 = arith.constant 5 : index
    %c0_71 = arith.constant 0 : index
    %c0_72 = arith.constant 0 : index
    %181 = vector.load %arg1[%c5, %c0_71, %c0_72] : memref<8x16x16xf32, #tpu.memory_space<vmem>>, vector<1x16x16xf32>
    %182 = vector.shape_cast %181 : vector<1x16x16xf32> to vector<16x16xf32>
    %183 = vector.broadcast %180 : f32 to vector<16x16xf32>
    %184 = arith.mulf %183, %169 : vector<16x16xf32>
    %185 = arith.addf %182, %184 : vector<16x16xf32>
    %cst_73 = arith.constant 0.000000e+00 : f32
    %cst_74 = arith.constant 1.000000e+00 : f32
    %186 = vector.broadcast %cst_73 : f32 to vector<16x16xf32>
    %187 = arith.maximumf %186, %185 : vector<16x16xf32>
    %188 = vector.broadcast %cst_74 : f32 to vector<16x16xf32>
    %189 = arith.minimumf %188, %187 : vector<16x16xf32>
    %c5_75 = arith.constant 5 : index
    %c0_76 = arith.constant 0 : index
    %c0_77 = arith.constant 0 : index
    %190 = vector.load %arg8[%c5_75, %c0_76, %c0_77] : memref<8x16x16xf32, #tpu.memory_space<vmem>>, vector<1x16x16xf32>
    %191 = vector.shape_cast %190 : vector<1x16x16xf32> to vector<16x16xf32>
    %192 = vector.shape_cast %189 : vector<16x16xf32> to vector<1x16x16xf32>
    tpu.vector_store %arg8[%c5_75, %c0_76, %c0_77], %192 {strides = array<i32>} : memref<8x16x16xf32, #tpu.memory_space<vmem>>, vector<1x16x16xf32>,
    %193 = vector.extract_strided_slice %10 {offsets = [6, 0, 0], sizes = [1, 16, 16], strides = [1, 1, 1]} : vector<8x16x16xbf16> to vector<1x16x16xbf16>
    %194 = vector.shape_cast %193 : vector<1x16x16xbf16> to vector<16x16xbf16>
    %195 = vector.extract_strided_slice %12 {offsets = [6, 0, 0], sizes = [1, 16, 16], strides = [1, 1, 1]} : vector<8x16x16xbf16> to vector<1x16x16xbf16>
    %196 = vector.shape_cast %195 : vector<1x16x16xbf16> to vector<16x16xbf16>
    %cst_78 = arith.constant dense<0.000000e+00> : vector<16x16xf32>
    %197 = tpu.matmul %2, %194, %cst_78 {dimension_numbers = #tpu.dot_dimension_numbers<[1], [0], [0], [1], [0, 0, 1, 1], [], []>} : vector<16x16xbf16>, vector<16x16xbf16>, vector<16x16xf32> -> vector<16x16xf32>
    %cst_79 = arith.constant dense<0.000000e+00> : vector<16x16xf32>
    %198 = tpu.matmul %3, %196, %cst_79 {dimension_numbers = #tpu.dot_dimension_numbers<[1], [0], [0], [1], [0, 0, 1, 1], [], []>} : vector<16x16xbf16>, vector<16x16xbf16>, vector<16x16xf32> -> vector<16x16xf32>
    %199 = arith.subf %197, %198 : vector<16x16xf32>
    %200 = arith.mulf %199, %199 : vector<16x16xf32>
    %201 = vector.shape_cast %200 : vector<16x16xf32> to vector<1x16x16xf32>
    %cst_80 = arith.constant dense<0.000000e+00> : vector<1xf32>
    %202 = vector.multi_reduction <add>, %201, %cst_80 [1, 2] : vector<1x16x16xf32> to vector<1xf32>
    %203 = vector.shape_cast %202 : vector<1xf32> to vector<1x1x1xf32>
    %204 = vector.extract %203[0, 0, 0] : f32 from vector<1x1x1xf32>
    %c6_i32 = arith.constant 6 : i32
    %205 = arith.addi %4, %c6_i32 : i32
    %206 = arith.index_cast %205 : i32 to index
    %207 = memref.load %arg7[%206] : memref<8xf32, #tpu.memory_space<smem>>
    %cst_81 = arith.constant 2.560000e-10 : f32
    %208 = arith.addf %204, %cst_81 : f32
    %209 = math.rsqrt %208 : f32
    %210 = arith.mulf %207, %209 : f32
    %c6 = arith.constant 6 : index
    %c0_82 = arith.constant 0 : index
    %c0_83 = arith.constant 0 : index
    %211 = vector.load %arg1[%c6, %c0_82, %c0_83] : memref<8x16x16xf32, #tpu.memory_space<vmem>>, vector<1x16x16xf32>
    %212 = vector.shape_cast %211 : vector<1x16x16xf32> to vector<16x16xf32>
    %213 = vector.broadcast %210 : f32 to vector<16x16xf32>
    %214 = arith.mulf %213, %199 : vector<16x16xf32>
    %215 = arith.addf %212, %214 : vector<16x16xf32>
    %cst_84 = arith.constant 0.000000e+00 : f32
    %cst_85 = arith.constant 1.000000e+00 : f32
    %216 = vector.broadcast %cst_84 : f32 to vector<16x16xf32>
    %217 = arith.maximumf %216, %215 : vector<16x16xf32>
    %218 = vector.broadcast %cst_85 : f32 to vector<16x16xf32>
    %219 = arith.minimumf %218, %217 : vector<16x16xf32>
    %c6_86 = arith.constant 6 : index
    %c0_87 = arith.constant 0 : index
    %c0_88 = arith.constant 0 : index
    %220 = vector.load %arg8[%c6_86, %c0_87, %c0_88] : memref<8x16x16xf32, #tpu.memory_space<vmem>>, vector<1x16x16xf32>
    %221 = vector.shape_cast %220 : vector<1x16x16xf32> to vector<16x16xf32>
    %222 = vector.shape_cast %219 : vector<16x16xf32> to vector<1x16x16xf32>
    tpu.vector_store %arg8[%c6_86, %c0_87, %c0_88], %222 {strides = array<i32>} : memref<8x16x16xf32, #tpu.memory_space<vmem>>, vector<1x16x16xf32>,
    %223 = vector.extract_strided_slice %10 {offsets = [7, 0, 0], sizes = [1, 16, 16], strides = [1, 1, 1]} : vector<8x16x16xbf16> to vector<1x16x16xbf16>
    %224 = vector.shape_cast %223 : vector<1x16x16xbf16> to vector<16x16xbf16>
    %225 = vector.extract_strided_slice %12 {offsets = [7, 0, 0], sizes = [1, 16, 16], strides = [1, 1, 1]} : vector<8x16x16xbf16> to vector<1x16x16xbf16>
    %226 = vector.shape_cast %225 : vector<1x16x16xbf16> to vector<16x16xbf16>
    %cst_89 = arith.constant dense<0.000000e+00> : vector<16x16xf32>
    %227 = tpu.matmul %2, %224, %cst_89 {dimension_numbers = #tpu.dot_dimension_numbers<[1], [0], [0], [1], [0, 0, 1, 1], [], []>} : vector<16x16xbf16>, vector<16x16xbf16>, vector<16x16xf32> -> vector<16x16xf32>
    %cst_90 = arith.constant dense<0.000000e+00> : vector<16x16xf32>
    %228 = tpu.matmul %3, %226, %cst_90 {dimension_numbers = #tpu.dot_dimension_numbers<[1], [0], [0], [1], [0, 0, 1, 1], [], []>} : vector<16x16xbf16>, vector<16x16xbf16>, vector<16x16xf32> -> vector<16x16xf32>
    %229 = arith.subf %227, %228 : vector<16x16xf32>
    %230 = arith.mulf %229, %229 : vector<16x16xf32>
    %231 = vector.shape_cast %230 : vector<16x16xf32> to vector<1x16x16xf32>
    %cst_91 = arith.constant dense<0.000000e+00> : vector<1xf32>
    %232 = vector.multi_reduction <add>, %231, %cst_91 [1, 2] : vector<1x16x16xf32> to vector<1xf32>
    %233 = vector.shape_cast %232 : vector<1xf32> to vector<1x1x1xf32>
    %234 = vector.extract %233[0, 0, 0] : f32 from vector<1x1x1xf32>
    %c7_i32 = arith.constant 7 : i32
    %235 = arith.addi %4, %c7_i32 : i32
    %236 = arith.index_cast %235 : i32 to index
    %237 = memref.load %arg7[%236] : memref<8xf32, #tpu.memory_space<smem>>
    %cst_92 = arith.constant 2.560000e-10 : f32
    %238 = arith.addf %234, %cst_92 : f32
    %239 = math.rsqrt %238 : f32
    %240 = arith.mulf %237, %239 : f32
    %c7 = arith.constant 7 : index
    %c0_93 = arith.constant 0 : index
    %c0_94 = arith.constant 0 : index
    %241 = vector.load %arg1[%c7, %c0_93, %c0_94] : memref<8x16x16xf32, #tpu.memory_space<vmem>>, vector<1x16x16xf32>
    %242 = vector.shape_cast %241 : vector<1x16x16xf32> to vector<16x16xf32>
    %243 = vector.broadcast %240 : f32 to vector<16x16xf32>
    %244 = arith.mulf %243, %229 : vector<16x16xf32>
    %245 = arith.addf %242, %244 : vector<16x16xf32>
    %cst_95 = arith.constant 0.000000e+00 : f32
    %cst_96 = arith.constant 1.000000e+00 : f32
    %246 = vector.broadcast %cst_95 : f32 to vector<16x16xf32>
    %247 = arith.maximumf %246, %245 : vector<16x16xf32>
    %248 = vector.broadcast %cst_96 : f32 to vector<16x16xf32>
    %249 = arith.minimumf %248, %247 : vector<16x16xf32>
    %c7_97 = arith.constant 7 : index
    %c0_98 = arith.constant 0 : index
    %c0_99 = arith.constant 0 : index
    %250 = vector.load %arg8[%c7_97, %c0_98, %c0_99] : memref<8x16x16xf32, #tpu.memory_space<vmem>>, vector<1x16x16xf32>
    %251 = vector.shape_cast %250 : vector<1x16x16xf32> to vector<16x16xf32>
    %252 = vector.shape_cast %249 : vector<16x16xf32> to vector<1x16x16xf32>
    tpu.vector_store %arg8[%c7_97, %c0_98, %c0_99], %252 {strides = array<i32>} : memref<8x16x16xf32, #tpu.memory_space<vmem>>, vector<1x16x16xf32>,
    return
  }
  func.func @transform_0(%arg0: i32) -> (i32, i32, i32) {
    %c0_i32 = arith.constant 0 : i32
    %c0_i32_0 = arith.constant 0 : i32
    %c0_i32_1 = arith.constant 0 : i32
    return %arg0, %c0_i32, %c0_i32_0 : i32, i32, i32
  }
  func.func @transform_1(%arg0: i32) -> (i32, i32, i32) {
    %c0_i32 = arith.constant 0 : i32
    %c0_i32_0 = arith.constant 0 : i32
    %c0_i32_1 = arith.constant 0 : i32
    return %arg0, %c0_i32, %c0_i32_0 : i32, i32, i32
  }
  func.func @transform_2(%arg0: i32) -> (i32, i32) {
    %c0_i32 = arith.constant 0 : i32
    %c0_i32_0 = arith.constant 0 : i32
    %c0_i32_1 = arith.constant 0 : i32
    return %c0_i32, %c0_i32_0 : i32, i32
  }
  func.func @transform_3(%arg0: i32) -> (i32, i32) {
    %c0_i32 = arith.constant 0 : i32
    %c0_i32_0 = arith.constant 0 : i32
    %c0_i32_1 = arith.constant 0 : i32
    return %c0_i32, %c0_i32_0 : i32, i32
  }
  func.func @transform_4(%arg0: i32) -> (i32, i32) {
    %c0_i32 = arith.constant 0 : i32
    %c0_i32_0 = arith.constant 0 : i32
    %c0_i32_1 = arith.constant 0 : i32
    return %c0_i32, %c0_i32_0 : i32, i32
  }
  func.func @transform_5(%arg0: i32) -> (i32, i32) {
    %c0_i32 = arith.constant 0 : i32
    %c0_i32_0 = arith.constant 0 : i32
    %c0_i32_1 = arith.constant 0 : i32
    return %c0_i32, %c0_i32_0 : i32, i32
  }
  func.func @transform_6(%arg0: i32) -> i32 {
    %c0_i32 = arith.constant 0 : i32
    %c0_i32_0 = arith.constant 0 : i32
    return %c0_i32 : i32
  }
  func.func @transform_7(%arg0: i32) -> (i32, i32, i32) {
    %c0_i32 = arith.constant 0 : i32
    %c0_i32_0 = arith.constant 0 : i32
    %c0_i32_1 = arith.constant 0 : i32
    return %arg0, %c0_i32, %c0_i32_0 : i32, i32, i32
  }
}

</mosaic_0001>

<llo_original>
// kernel: tpu_custom_call.1
$region0: #{tpu_custom_call.1}
  #allocation0 [shape = 'u32[]', space=smem, size = 0x4, offset = 0x4, fixed_abs, tag = 'smem constant byte address 0x4 - core index']
  #allocation1 [shape = 'u32[144,128]{1,0:T(1,128)}', space=vmem, size = 0x12000, scoped, tag = 'internal scratch']
  %s0 = inlined_call_operand.hbm [shape: f32[8,16,16], index: 0, kind: input, shape index: {}]
  %s1 = inlined_call_operand.hbm [shape: bf16[8,16,16], index: 1, kind: input, shape index: {}]
  %s2 = inlined_call_operand.hbm [shape: bf16[16,16], index: 2, kind: input, shape index: {}]
  %s3 = inlined_call_operand.vmem [shape: bf16[16,16], index: 3, kind: input, shape index: {}]
  %s4 = inlined_call_operand.hbm [shape: bf16[16,16], index: 4, kind: input, shape index: {}]
  %s5 = inlined_call_operand.vmem [shape: bf16[16,16], index: 5, kind: input, shape index: {}]
  %s6 = inlined_call_operand.vmem [shape: f32[8], index: 6, kind: input, shape index: {}]
  %s7 = inlined_call_operand.hbm [shape: f32[8,16,16], index: 7, kind: output, shape index: {}]
  %s8 = sld [smem:[#allocation0]]
  $region58: #{tpu_custom_call.1} parent=0
    _
  %s10 = ssub.s32 1, %s8
  %s11 = scalar_select 0, %s10, %s8
  $region1: #{tpu_custom_call.1} parent=0
    #allocation2 [shape = 'u8[65536]{0}', space=vmem, size = 0x10000, scoped, tag = 'input window, operand 0, single buffered']
    #allocation3 [shape = 's32[1]{0}', space=sflag, size = 0x4, scoped, tag = 'scoped memory for tpu_custom_call.1']
    #allocation4 [shape = 's32[1]{0}', space=sflag, size = 0x4, scoped, tag = 'scoped memory for tpu_custom_call.1']
    #allocation5 [shape = 's32[1]{0}', space=sflag, size = 0x4, scoped, tag = 'scoped memory for tpu_custom_call.1']
    #allocation6 [shape = 'u8[32768]{0}', space=vmem, size = 0x8000, scoped, tag = 'input window, operand 1, single buffered']
    #allocation7 [shape = 's32[1]{0}', space=sflag, size = 0x4, scoped, tag = 'scoped memory for tpu_custom_call.1']
    #allocation8 [shape = 'u8[4096]{0}', space=vmem, size = 0x1000, scoped, tag = 'input window, operand 2, single buffered']
    #allocation9 [shape = 'u8[4096]{0}', space=vmem, size = 0x1000, scoped, tag = 'input window, operand 4, single buffered']
    #allocation10 [shape = 's32[1]{0}', space=sflag, size = 0x4, scoped, tag = 'scoped memory for tpu_custom_call.1']
    #allocation11 [shape = 'u8[512]{0}', space=smem, size = 0x200, scoped, tag = 'input window, operand 6, single buffered']
    #allocation12 [shape = 'u8[65536]{0}', space=vmem, size = 0x10000, scoped, tag = 'output window, operand 0, single buffered']
    %12 = vsyncpa [#allocation3], 0
    %13 = vsyncpa [#allocation7], 0
    %14 = vsyncpa [#allocation10], 0
    %15 = vsyncpa [#allocation5], 0
    %16 = vsyncpa [#allocation4], 0
    // Predicated region
    $region2: #{tpu_custom_call.1} parent=1 // pred_check
      _
    $region3: #{tpu_custom_call.1} parent=1 // pred_check_branch
      %18 = sbr.rel (0) target = $region5
    $region4: #{tpu_custom_call.1} parent=1 // pred_region
      %s20 = ssub.s32 2048, 2048
      %21 = vsyncadd [#allocation3], %s20
      %s22 = sshll.u32 [#allocation2], 4
      %s23 = int_to_ptr.vmem [resolvable:$true] %s22
      %28 = dma.hbm_to_vmem [thread:$0]  %s0, 2048, %s23, [#allocation3], 128, 128, 8
    $region5: #{tpu_custom_call.1} parent=1 // pred_fallthru
      _
    // Predicated region
    $region6: #{tpu_custom_call.1} parent=1 // pred_check
      _
    $region7: #{tpu_custom_call.1} parent=1 // pred_check_branch
      %30 = sbr.rel (0) target = $region9
    $region8: #{tpu_custom_call.1} parent=1 // pred_region
      %s32 = ssub.s32 1024, 1024
      %33 = vsyncadd [#allocation7], %s32
      %s34 = sshll.u32 [#allocation6], 4
      %s35 = int_to_ptr.vmem [resolvable:$true] %s34
      %40 = dma.hbm_to_vmem [thread:$0]  %s1, 1024, %s35, [#allocation7], 64, 64, 4
    $region9: #{tpu_custom_call.1} parent=1 // pred_fallthru
      _
    // Predicated region
    $region10: #{tpu_custom_call.1} parent=1 // pred_check
      _
    $region11: #{tpu_custom_call.1} parent=1 // pred_check_branch
      %42 = sbr.rel (0) target = $region13
    $region12: #{tpu_custom_call.1} parent=1 // pred_region
      %s44 = ssub.s32 128, 128
      %45 = vsyncadd [#allocation7], %s44
      %s46 = sshll.u32 [#allocation8], 4
      %s47 = int_to_ptr.vmem [resolvable:$true] %s46
      %52 = dma.hbm_to_vmem [thread:$0]  %s2, 128, %s47, [#allocation7], 64, 64, 4
    $region13: #{tpu_custom_call.1} parent=1 // pred_fallthru
      _
    // Predicated region
    $region14: #{tpu_custom_call.1} parent=1 // pred_check
      _
    $region15: #{tpu_custom_call.1} parent=1 // pred_check_branch
      %54 = sbr.rel (0) target = $region17
    $region16: #{tpu_custom_call.1} parent=1 // pred_region
      _
    $region17: #{tpu_custom_call.1} parent=1 // pred_fallthru
      _
    // Predicated region
    $region18: #{tpu_custom_call.1} parent=1 // pred_check
      _
    $region19: #{tpu_custom_call.1} parent=1 // pred_check_branch
      %56 = sbr.rel (0) target = $region21
    $region20: #{tpu_custom_call.1} parent=1 // pred_region
      %s58 = ssub.s32 128, 128
      %59 = vsyncadd [#allocation10], %s58
      %s60 = sshll.u32 [#allocation9], 4
      %s61 = int_to_ptr.vmem [resolvable:$true] %s60
      %66 = dma.hbm_to_vmem [thread:$0]  %s4, 128, %s61, [#allocation10], 64, 64, 4
    $region21: #{tpu_custom_call.1} parent=1 // pred_fallthru
      _
    // Predicated region
    $region22: #{tpu_custom_call.1} parent=1 // pred_check
      _
    $region23: #{tpu_custom_call.1} parent=1 // pred_check_branch
      %68 = sbr.rel (0) target = $region25
    $region24: #{tpu_custom_call.1} parent=1 // pred_region
      _
    $region25: #{tpu_custom_call.1} parent=1 // pred_fallthru
      _
    // Predicated region
    $region26: #{tpu_custom_call.1} parent=1 // pred_check
      _
    $region27: #{tpu_custom_call.1} parent=1 // pred_check_branch
      %70 = sbr.rel (0) target = $region29
    $region28: #{tpu_custom_call.1} parent=1 // pred_region
      %s72 = ssub.s32 16, 16
      %73 = vsyncadd [#allocation5], %s72
      %s75 = sshll.u32 %s6, 4
      %s76 = int_to_ptr.vmem [resolvable:$true] %s75
      %78 = dma.vmem_to_smem %s76, 16, [#allocation11], [#allocation5]
    $region29: #{tpu_custom_call.1} parent=1 // pred_fallthru
      _
    // Predicated region
    $region30: #{tpu_custom_call.1} parent=1 // pred_check
      _
    $region31: #{tpu_custom_call.1} parent=1 // pred_check_branch
      %80 = sbr.rel (0) target = $region33
    $region32: #{tpu_custom_call.1} parent=1 // pred_region
      %81 = dma.done [#allocation3], 2048
    $region33: #{tpu_custom_call.1} parent=1 // pred_fallthru
      _
    // Predicated region
    $region34: #{tpu_custom_call.1} parent=1 // pred_check
      _
    $region35: #{tpu_custom_call.1} parent=1 // pred_check_branch
      %83 = sbr.rel (0) target = $region37
    $region36: #{tpu_custom_call.1} parent=1 // pred_region
      %84 = dma.done [#allocation7], 1024
    $region37: #{tpu_custom_call.1} parent=1 // pred_fallthru
      _
    // Predicated region
    $region38: #{tpu_custom_call.1} parent=1 // pred_check
      _
    $region39: #{tpu_custom_call.1} parent=1 // pred_check_branch
      %86 = sbr.rel (0) target = $region41
    $region40: #{tpu_custom_call.1} parent=1 // pred_region
      %87 = dma.done [#allocation7], 128
    $region41: #{tpu_custom_call.1} parent=1 // pred_fallthru
      _
    // Predicated region
    $region42: #{tpu_custom_call.1} parent=1 // pred_check
      _
    $region43: #{tpu_custom_call.1} parent=1 // pred_check_branch
      %89 = sbr.rel (0) target = $region45
    $region44: #{tpu_custom_call.1} parent=1 // pred_region
      %90 = dma.done [#allocation10], 128
    $region45: #{tpu_custom_call.1} parent=1 // pred_fallthru
      _
    // Predicated region
    $region46: #{tpu_custom_call.1} parent=1 // pred_check
      _
    $region47: #{tpu_custom_call.1} parent=1 // pred_check_branch
      %92 = sbr.rel (0) target = $region49
    $region48: #{tpu_custom_call.1} parent=1 // pred_region
      %93 = dma.done [#allocation5], 16
    $region49: #{tpu_custom_call.1} parent=1 // pred_fallthru
      _
    %94 = sfence
    %v96 = vld [vmem:[#allocation8] sm:$0xf]
    %v97 = vld [vmem:[#allocation8 + $0x4] sm:$0xf]
    %v98 = vld [vmem:[%s3] sm:$0xf]
    %v99 = vld [vmem:[%s3 + $0x4] sm:$0xf]
    %v100 = vld [vmem:[#allocation9] sm:$0xf]
    %v101 = vld [vmem:[#allocation9 + $0x4] sm:$0xf]
    %v102 = vld [vmem:[%s5] sm:$0xf]
    %v103 = vld [vmem:[%s5 + $0x4] sm:$0xf]
    %s104 = smul.u32 0, 8
    %v105 = vld [vmem:[#allocation6] sm:$0xf]
    %v106 = vld [vmem:[#allocation6 + $0x4] sm:$0xf]
    %v107 = vld [vmem:[#allocation6 + $0x8] sm:$0xf]
    %v108 = vld [vmem:[#allocation6 + $0xc] sm:$0xf]
    %v109 = vld [vmem:[#allocation6 + $0x10] sm:$0xf]
    %v110 = vld [vmem:[#allocation6 + $0x14] sm:$0xf]
    %v111 = vld [vmem:[#allocation6 + $0x18] sm:$0xf]
    %v112 = vld [vmem:[#allocation6 + $0x1c] sm:$0xf]
    %v113 = vld [vmem:[#allocation6 + $0x20] sm:$0xf]
    %v114 = vld [vmem:[#allocation6 + $0x24] sm:$0xf]
    %v115 = vld [vmem:[#allocation6 + $0x28] sm:$0xf]
    %v116 = vld [vmem:[#allocation6 + $0x2c] sm:$0xf]
    %v117 = vld [vmem:[#allocation6 + $0x30] sm:$0xf]
    %v118 = vld [vmem:[#allocation6 + $0x34] sm:$0xf]
    %v119 = vld [vmem:[#allocation6 + $0x38] sm:$0xf]
    %v120 = vld [vmem:[#allocation6 + $0x3c] sm:$0xf]
    %v137 = vunpack.c.l.b16 %v105
    %v138 = vunpack.c.l.b16 %v106
    %v139 = vunpack.c.l.b16 %v107
    %v140 = vunpack.c.l.b16 %v108
    %v141 = vunpack.c.l.b16 %v109
    %v142 = vunpack.c.l.b16 %v110
    %v143 = vunpack.c.l.b16 %v111
    %v144 = vunpack.c.l.b16 %v112
    %v145 = vunpack.c.l.b16 %v113
    %v146 = vunpack.c.l.b16 %v114
    %v147 = vunpack.c.l.b16 %v115
    %v148 = vunpack.c.l.b16 %v116
    %v149 = vunpack.c.l.b16 %v117
    %v150 = vunpack.c.l.b16 %v118
    %v151 = vunpack.c.l.b16 %v119
    %v152 = vunpack.c.l.b16 %v120
    %v153 = vpack.c.b16 %v138, %v137
    %v154 = vpack.c.b16 %v140, %v139
    %v155 = vpack.c.b16 %v142, %v141
    %v156 = vpack.c.b16 %v144, %v143
    %v157 = vpack.c.b16 %v146, %v145
    %v158 = vpack.c.b16 %v148, %v147
    %v159 = vpack.c.b16 %v150, %v149
    %v160 = vpack.c.b16 %v152, %v151
    %v163 = vunpack.c.l.b16 %v96
    %v164 = vunpack.c.l.b16 %v97
    %v165 = vpack.c.b16 %v164, %v163
    %vm167 = vcmask 130048
    %v169 = vsel %vm167, %v153, 0
    %v172 = vsel %vm167, %v154, 0
    %v175 = vsel %vm167, %v155, 0
    %v178 = vsel %vm167, %v156, 0
    %v181 = vsel %vm167, %v157, 0
    %v184 = vsel %vm167, %v158, 0
    %v187 = vsel %vm167, %v159, 0
    %v190 = vsel %vm167, %v160, 0
    %192 = vmatprep.subr.bf16.mxu0 0
    %193 = vmatpush1.bf16.msra.mxu0 %v165
    %194 = vmatprep.subr.bf16.mxu0 0
    %195 = vmatpush1.bf16.msra.mxu0 0
    %196 = vmatprep.subr.bf16.mxu0 0
    %197 = vmatpush1.bf16.msra.mxu0 0
    %198 = vmatprep.subr.bf16.mxu0 0
    %199 = vmatpush1.bf16.msra.mxu0 0
    %200 = vmatprep.subr.bf16.mxu0 0
    %201 = vmatpush1.bf16.msra.mxu0 0
    %202 = vmatprep.subr.bf16.mxu0 0
    %203 = vmatpush1.bf16.msra.mxu0 0
    %204 = vmatprep.subr.bf16.mxu0 0
    %205 = vmatpush1.bf16.msra.mxu0 0
    %206 = vmatprep.subr.bf16.mxu0 0
    %207 = vmatpush1.bf16.msra.mxu0 0
    %208 = vmatprep.subr.bf16.mxu0 0
    %209 = vmatpush1.bf16.msra.mxu0 0
    %210 = vmatprep.subr.bf16.mxu0 0
    %211 = vmatpush1.bf16.msra.mxu0 0
    %212 = vmatprep.subr.bf16.mxu0 0
    %213 = vmatpush1.bf16.msra.mxu0 0
    %214 = vmatprep.subr.bf16.mxu0 0
    %215 = vmatpush1.bf16.msra.mxu0 0
    %216 = vmatprep.subr.bf16.mxu0 0
    %217 = vmatpush1.bf16.msra.mxu0 0
    %218 = vmatprep.subr.bf16.mxu0 0
    %219 = vmatpush1.bf16.msra.mxu0 0
    %220 = vmatprep.subr.bf16.mxu0 0
    %221 = vmatpush1.bf16.msra.mxu0 0
    %222 = vmatprep.subr.bf16.mxu0 0
    %223 = vmatpush1.bf16.msra.mxu0 0
    %224 = vmatprep.mubr.bf16.mxu0 0
    %225 = vmatmul.mubr.bf16.gmra.mrb[0].mxu0 %v169
    %v226 = vpop.f32.mrb[0].mxu0
    %v227 = vadd.f32 0.0, %v226
    %v228 = vpop.f32.mrb[0].mxu0
    %v229 = vpop.f32.mrb[0].mxu0
    %v230 = vadd.f32 0.0, %v229
    %v231 = vpop.f32.mrb[0].mxu0
    %232 = vmatprep.mubr.bf16.mxu0 0
    %233 = vmatmul.mubr.bf16.gmra.mrb[0].mxu0 %v172
    %v234 = vpop.f32.mrb[0].mxu0
    %v235 = vadd.f32 0.0, %v234
    %v236 = vpop.f32.mrb[0].mxu0
    %v237 = vpop.f32.mrb[0].mxu0
    %v238 = vadd.f32 0.0, %v237
    %v239 = vpop.f32.mrb[0].mxu0
    %240 = vmatprep.mubr.bf16.mxu0 0
    %241 = vmatmul.mubr.bf16.gmra.mrb[0].mxu0 %v175
    %v242 = vpop.f32.mrb[0].mxu0
    %v243 = vadd.f32 0.0, %v242
    %v244 = vpop.f32.mrb[0].mxu0
    %v245 = vpop.f32.mrb[0].mxu0
    %v246 = vadd.f32 0.0, %v245
    %v247 = vpop.f32.mrb[0].mxu0
    %248 = vmatprep.mubr.bf16.mxu0 0
    %249 = vmatmul.mubr.bf16.gmra.mrb[0].mxu0 %v178
    %v250 = vpop.f32.mrb[0].mxu0
    %v251 = vadd.f32 0.0, %v250
    %v252 = vpop.f32.mrb[0].mxu0
    %v253 = vpop.f32.mrb[0].mxu0
    %v254 = vadd.f32 0.0, %v253
    %v255 = vpop.f32.mrb[0].mxu0
    %256 = vmatprep.mubr.bf16.mxu0 0
    %257 = vmatmul.mubr.bf16.gmra.mrb[0].mxu0 %v181
    %v258 = vpop.f32.mrb[0].mxu0
    %v259 = vadd.f32 0.0, %v258
    %v260 = vpop.f32.mrb[0].mxu0
    %v261 = vpop.f32.mrb[0].mxu0
    %v262 = vadd.f32 0.0, %v261
    %v263 = vpop.f32.mrb[0].mxu0
    %264 = vmatprep.mubr.bf16.mxu0 0
    %265 = vmatmul.mubr.bf16.gmra.mrb[0].mxu0 %v184
    %v266 = vpop.f32.mrb[0].mxu0
    %v267 = vadd.f32 0.0, %v266
    %v268 = vpop.f32.mrb[0].mxu0
    %v269 = vpop.f32.mrb[0].mxu0
    %v270 = vadd.f32 0.0, %v269
    %v271 = vpop.f32.mrb[0].mxu0
    %272 = vmatprep.mubr.bf16.mxu0 0
    %273 = vmatmul.mubr.bf16.gmra.mrb[0].mxu0 %v187
    %v274 = vpop.f32.mrb[0].mxu0
    %v275 = vadd.f32 0.0, %v274
    %v276 = vpop.f32.mrb[0].mxu0
    %v277 = vpop.f32.mrb[0].mxu0
    %v278 = vadd.f32 0.0, %v277
    %v279 = vpop.f32.mrb[0].mxu0
    %280 = vmatprep.mubr.bf16.mxu0 0
    %281 = vmatmul.mubr.bf16.gmra.mrb[0].mxu0 %v190
    %v282 = vpop.f32.mrb[0].mxu0
    %v283 = vadd.f32 0.0, %v282
    %v284 = vpop.f32.mrb[0].mxu0
    %v285 = vpop.f32.mrb[0].mxu0
    %v286 = vadd.f32 0.0, %v285
    %v287 = vpop.f32.mrb[0].mxu0
    %288 = vdwg.mxu0
    %v291 = vunpack.c.l.b16 %v98
    %v292 = vunpack.c.l.b16 %v99
    %v293 = vpack.c.b16 %v292, %v291
    %295 = vmatprep.subr.bf16.mxu0 0
    %296 = vmatpush1.bf16.msra.mxu0 %v293
    %297 = vmatprep.subr.bf16.mxu0 0
    %298 = vmatpush1.bf16.msra.mxu0 0
    %299 = vmatprep.subr.bf16.mxu0 0
    %300 = vmatpush1.bf16.msra.mxu0 0
    %301 = vmatprep.subr.bf16.mxu0 0
    %302 = vmatpush1.bf16.msra.mxu0 0
    %303 = vmatprep.subr.bf16.mxu0 0
    %304 = vmatpush1.bf16.msra.mxu0 0
    %305 = vmatprep.subr.bf16.mxu0 0
    %306 = vmatpush1.bf16.msra.mxu0 0
    %307 = vmatprep.subr.bf16.mxu0 0
    %308 = vmatpush1.bf16.msra.mxu0 0
    %309 = vmatprep.subr.bf16.mxu0 0
    %310 = vmatpush1.bf16.msra.mxu0 0
    %311 = vmatprep.subr.bf16.mxu0 0
    %312 = vmatpush1.bf16.msra.mxu0 0
    %313 = vmatprep.subr.bf16.mxu0 0
    %314 = vmatpush1.bf16.msra.mxu0 0
    %315 = vmatprep.subr.bf16.mxu0 0
    %316 = vmatpush1.bf16.msra.mxu0 0
    %317 = vmatprep.subr.bf16.mxu0 0
    %318 = vmatpush1.bf16.msra.mxu0 0
    %319 = vmatprep.subr.bf16.mxu0 0
    %320 = vmatpush1.bf16.msra.mxu0 0
    %321 = vmatprep.subr.bf16.mxu0 0
    %322 = vmatpush1.bf16.msra.mxu0 0
    %323 = vmatprep.subr.bf16.mxu0 0
    %324 = vmatpush1.bf16.msra.mxu0 0
    %325 = vmatprep.subr.bf16.mxu0 0
    %326 = vmatpush1.bf16.msra.mxu0 0
    %327 = vmatprep.mubr.bf16.mxu0 0
    %328 = vmatmul.mubr.bf16.gmra.mrb[0].mxu0 %v169
    %v329 = vpop.f32.mrb[0].mxu0
    %v330 = vadd.f32 0.0, %v329
    %v331 = vpop.f32.mrb[0].mxu0
    %v332 = vpop.f32.mrb[0].mxu0
    %v333 = vadd.f32 0.0, %v332
    %v334 = vpop.f32.mrb[0].mxu0
    %335 = vmatprep.mubr.bf16.mxu0 0
    %336 = vmatmul.mubr.bf16.gmra.mrb[0].mxu0 %v172
    %v337 = vpop.f32.mrb[0].mxu0
    %v338 = vadd.f32 0.0, %v337
    %v339 = vpop.f32.mrb[0].mxu0
    %v340 = vpop.f32.mrb[0].mxu0
    %v341 = vadd.f32 0.0, %v340
    %v342 = vpop.f32.mrb[0].mxu0
    %343 = vmatprep.mubr.bf16.mxu0 0
    %344 = vmatmul.mubr.bf16.gmra.mrb[0].mxu0 %v175
    %v345 = vpop.f32.mrb[0].mxu0
    %v346 = vadd.f32 0.0, %v345
    %v347 = vpop.f32.mrb[0].mxu0
    %v348 = vpop.f32.mrb[0].mxu0
    %v349 = vadd.f32 0.0, %v348
    %v350 = vpop.f32.mrb[0].mxu0
    %351 = vmatprep.mubr.bf16.mxu0 0
    %352 = vmatmul.mubr.bf16.gmra.mrb[0].mxu0 %v178
    %v353 = vpop.f32.mrb[0].mxu0
    %v354 = vadd.f32 0.0, %v353
    %v355 = vpop.f32.mrb[0].mxu0
    %v356 = vpop.f32.mrb[0].mxu0
    %v357 = vadd.f32 0.0, %v356
    %v358 = vpop.f32.mrb[0].mxu0
    %359 = vmatprep.mubr.bf16.mxu0 0
    %360 = vmatmul.mubr.bf16.gmra.mrb[0].mxu0 %v181
    %v361 = vpop.f32.mrb[0].mxu0
    %v362 = vadd.f32 0.0, %v361
    %v363 = vpop.f32.mrb[0].mxu0
    %v364 = vpop.f32.mrb[0].mxu0
    %v365 = vadd.f32 0.0, %v364
    %v366 = vpop.f32.mrb[0].mxu0
    %367 = vmatprep.mubr.bf16.mxu0 0
    %368 = vmatmul.mubr.bf16.gmra.mrb[0].mxu0 %v184
    %v369 = vpop.f32.mrb[0].mxu0
    %v370 = vadd.f32 0.0, %v369
    %v371 = vpop.f32.mrb[0].mxu0
    %v372 = vpop.f32.mrb[0].mxu0
    %v373 = vadd.f32 0.0, %v372
    %v374 = vpop.f32.mrb[0].mxu0
    %375 = vmatprep.mubr.bf16.mxu0 0
    %376 = vmatmul.mubr.bf16.gmra.mrb[0].mxu0 %v187
    %v377 = vpop.f32.mrb[0].mxu0
    %v378 = vadd.f32 0.0, %v377
    %v379 = vpop.f32.mrb[0].mxu0
    %v380 = vpop.f32.mrb[0].mxu0
    %v381 = vadd.f32 0.0, %v380
    %v382 = vpop.f32.mrb[0].mxu0
    %383 = vmatprep.mubr.bf16.mxu0 0
    %384 = vmatmul.mubr.bf16.gmra.mrb[0].mxu0 %v190
    %v385 = vpop.f32.mrb[0].mxu0
    %v386 = vadd.f32 0.0, %v385
    %v387 = vpop.f32.mrb[0].mxu0
    %v388 = vpop.f32.mrb[0].mxu0
    %v389 = vadd.f32 0.0, %v388
    %v390 = vpop.f32.mrb[0].mxu0
    %391 = vdwg.mxu0
    %v392 = vpack.c.bf16 %v230, %v227
    %v393 = vpack.c.bf16 %v238, %v235
    %v394 = vpack.c.bf16 %v246, %v243
    %v395 = vpack.c.bf16 %v254, %v251
    %v396 = vpack.c.bf16 %v262, %v259
    %v397 = vpack.c.bf16 %v270, %v267
    %v398 = vpack.c.bf16 %v278, %v275
    %v399 = vpack.c.bf16 %v286, %v283
    %v400 = vpack.c.bf16 %v333, %v330
    %v401 = vpack.c.bf16 %v341, %v338
    %v402 = vpack.c.bf16 %v349, %v346
    %v403 = vpack.c.bf16 %v357, %v354
    %v404 = vpack.c.bf16 %v365, %v362
    %v405 = vpack.c.bf16 %v373, %v370
    %v406 = vpack.c.bf16 %v381, %v378
    %v407 = vpack.c.bf16 %v389, %v386
    %v410 = vunpack.c.l.b16 %v100
    %v411 = vunpack.c.l.b16 %v101
    %v412 = vpack.c.b16 %v411, %v410
    %v414 = vsel %vm167, %v412, 0
    %416 = vmatprep.subr.bf16.mxu0 0
    %417 = vmatpush1.bf16.msra.mxu0 %v392
    %418 = vmatprep.subr.bf16.mxu0 0
    %419 = vmatpush1.bf16.msra.mxu0 0
    %420 = vmatprep.subr.bf16.mxu0 0
    %421 = vmatpush1.bf16.msra.mxu0 0
    %422 = vmatprep.subr.bf16.mxu0 0
    %423 = vmatpush1.bf16.msra.mxu0 0
    %424 = vmatprep.subr.bf16.mxu0 0
    %425 = vmatpush1.bf16.msra.mxu0 0
    %426 = vmatprep.subr.bf16.mxu0 0
    %427 = vmatpush1.bf16.msra.mxu0 0
    %428 = vmatprep.subr.bf16.mxu0 0
    %429 = vmatpush1.bf16.msra.mxu0 0
    %430 = vmatprep.subr.bf16.mxu0 0
    %431 = vmatpush1.bf16.msra.mxu0 0
    %432 = vmatprep.subr.bf16.mxu0 0
    %433 = vmatpush1.bf16.msra.mxu0 0
    %434 = vmatprep.subr.bf16.mxu0 0
    %435 = vmatpush1.bf16.msra.mxu0 0
    %436 = vmatprep.subr.bf16.mxu0 0
    %437 = vmatpush1.bf16.msra.mxu0 0
    %438 = vmatprep.subr.bf16.mxu0 0
    %439 = vmatpush1.bf16.msra.mxu0 0
    %440 = vmatprep.subr.bf16.mxu0 0
    %441 = vmatpush1.bf16.msra.mxu0 0
    %442 = vmatprep.subr.bf16.mxu0 0
    %443 = vmatpush1.bf16.msra.mxu0 0
    %444 = vmatprep.subr.bf16.mxu0 0
    %445 = vmatpush1.bf16.msra.mxu0 0
    %446 = vmatprep.subr.bf16.mxu0 0
    %447 = vmatpush1.bf16.msra.mxu0 0
    %448 = vmatprep.mubr.bf16.mxu0 0
    %449 = vmatmul.mubr.bf16.gmra.mrb[0].mxu0 %v414
    %v450 = vpop.f32.mrb[0].mxu0
    %v451 = vadd.f32 0.0, %v450
    %v452 = vpop.f32.mrb[0].mxu0
    %v453 = vpop.f32.mrb[0].mxu0
    %v454 = vadd.f32 0.0, %v453
    %v455 = vpop.f32.mrb[0].mxu0
    %456 = vdwg.mxu0
    %v459 = vunpack.c.l.b16 %v102
    %v460 = vunpack.c.l.b16 %v103
    %v461 = vpack.c.b16 %v460, %v459
    %v463 = vsel %vm167, %v461, 0
    %465 = vmatprep.subr.bf16.mxu0 0
    %466 = vmatpush1.bf16.msra.mxu0 %v400
    %467 = vmatprep.subr.bf16.mxu0 0
    %468 = vmatpush1.bf16.msra.mxu0 0
    %469 = vmatprep.subr.bf16.mxu0 0
    %470 = vmatpush1.bf16.msra.mxu0 0
    %471 = vmatprep.subr.bf16.mxu0 0
    %472 = vmatpush1.bf16.msra.mxu0 0
    %473 = vmatprep.subr.bf16.mxu0 0
    %474 = vmatpush1.bf16.msra.mxu0 0
    %475 = vmatprep.subr.bf16.mxu0 0
    %476 = vmatpush1.bf16.msra.mxu0 0
    %477 = vmatprep.subr.bf16.mxu0 0
    %478 = vmatpush1.bf16.msra.mxu0 0
    %479 = vmatprep.subr.bf16.mxu0 0
    %480 = vmatpush1.bf16.msra.mxu0 0
    %481 = vmatprep.subr.bf16.mxu0 0
    %482 = vmatpush1.bf16.msra.mxu0 0
    %483 = vmatprep.subr.bf16.mxu0 0
    %484 = vmatpush1.bf16.msra.mxu0 0
    %485 = vmatprep.subr.bf16.mxu0 0
    %486 = vmatpush1.bf16.msra.mxu0 0
    %487 = vmatprep.subr.bf16.mxu0 0
    %488 = vmatpush1.bf16.msra.mxu0 0
    %489 = vmatprep.subr.bf16.mxu0 0
    %490 = vmatpush1.bf16.msra.mxu0 0
    %491 = vmatprep.subr.bf16.mxu0 0
    %492 = vmatpush1.bf16.msra.mxu0 0
    %493 = vmatprep.subr.bf16.mxu0 0
    %494 = vmatpush1.bf16.msra.mxu0 0
    %495 = vmatprep.subr.bf16.mxu0 0
    %496 = vmatpush1.bf16.msra.mxu0 0
    %497 = vmatprep.mubr.bf16.mxu0 0
    %498 = vmatmul.mubr.bf16.gmra.mrb[0].mxu0 %v463
    %v499 = vpop.f32.mrb[0].mxu0
    %v500 = vadd.f32 0.0, %v499
    %v501 = vpop.f32.mrb[0].mxu0
    %v502 = vpop.f32.mrb[0].mxu0
    %v503 = vadd.f32 0.0, %v502
    %v504 = vpop.f32.mrb[0].mxu0
    %505 = vdwg.mxu0
    %v506 = vsub.f32 %v451, %v500
    %v507 = vsub.f32 %v454, %v503
    %v508 = vmul.f32 %v506, %v506
    %v509 = vmul.f32 %v507, %v507
    %v510 = vsel %vm167, %v508, 0.0
    %v511 = vsel %vm167, %v509, 0.0
    %v512 = vadd.f32 %v510, %v511
    %513 = vadd.xlane.f32.xlu0 %v512
    %v514 = vpop.xlane.xlu0 %513
    %v515 = vrot.slane %v514, 4
    %v516 = vadd.f32 %v514, %v515
    %v517 = vrot.slane %v516, 2
    %v518 = vadd.f32 %v516, %v517
    %v519 = vrot.slane %v518, 1
    %v520 = vadd.f32 %v518, %v519
    %s521 = vtos %v520
    %s522 = sld [smem:[#allocation11 + %s104]]
    %s523 = sadd.f32 %s521, 2.56e-10
    %v524 = vstv %s523
    %v525 = vrsqrt.pop %v524
    %s526 = vtos %v525
    %s527 = smul.f32 %s522, %s526
    %v528 = vld [vmem:[#allocation2] sm:$0xff]
    %v529 = vld [vmem:[#allocation2 + $0x8] sm:$0xff]
    %v530 = vstv %s527
    %v531 = vmul.f32 %v530, %v506
    %v532 = vmul.f32 %v530, %v507
    %v533 = vadd.f32 %v528, %v531
    %v534 = vadd.f32 %v529, %v532
    %v535 = vmax.f32 %v533, 0.0
    %v536 = vmax.f32 %v534, 0.0
    %v537 = vmin.f32 %v535, 1.0
    %v538 = vmin.f32 %v536, 1.0
    %539 = vst.msk [vmem:[#allocation12] sm:$0xff] %vm167, %v537
    %540 = vst.msk [vmem:[#allocation12 + $0x8] sm:$0xff] %vm167, %v538
    %541 = vmatprep.subr.bf16.mxu0 0
    %542 = vmatpush1.bf16.msra.mxu0 %v393
    %543 = vmatprep.subr.bf16.mxu0 0
    %544 = vmatpush1.bf16.msra.mxu0 0
    %545 = vmatprep.subr.bf16.mxu0 0
    %546 = vmatpush1.bf16.msra.mxu0 0
    %547 = vmatprep.subr.bf16.mxu0 0
    %548 = vmatpush1.bf16.msra.mxu0 0
    %549 = vmatprep.subr.bf16.mxu0 0
    %550 = vmatpush1.bf16.msra.mxu0 0
    %551 = vmatprep.subr.bf16.mxu0 0
    %552 = vmatpush1.bf16.msra.mxu0 0
    %553 = vmatprep.subr.bf16.mxu0 0
    %554 = vmatpush1.bf16.msra.mxu0 0
    %555 = vmatprep.subr.bf16.mxu0 0
    %556 = vmatpush1.bf16.msra.mxu0 0
    %557 = vmatprep.subr.bf16.mxu0 0
    %558 = vmatpush1.bf16.msra.mxu0 0
    %559 = vmatprep.subr.bf16.mxu0 0
    %560 = vmatpush1.bf16.msra.mxu0 0
    %561 = vmatprep.subr.bf16.mxu0 0
    %562 = vmatpush1.bf16.msra.mxu0 0
    %563 = vmatprep.subr.bf16.mxu0 0
    %564 = vmatpush1.bf16.msra.mxu0 0
    %565 = vmatprep.subr.bf16.mxu0 0
    %566 = vmatpush1.bf16.msra.mxu0 0
    %567 = vmatprep.subr.bf16.mxu0 0
    %568 = vmatpush1.bf16.msra.mxu0 0
    %569 = vmatprep.subr.bf16.mxu0 0
    %570 = vmatpush1.bf16.msra.mxu0 0
    %571 = vmatprep.subr.bf16.mxu0 0
    %572 = vmatpush1.bf16.msra.mxu0 0
    %573 = vmatprep.mubr.bf16.mxu0 0
    %574 = vmatmul.mubr.bf16.gmra.mrb[0].mxu0 %v414
    %v575 = vpop.f32.mrb[0].mxu0
    %v576 = vadd.f32 0.0, %v575
    %v577 = vpop.f32.mrb[0].mxu0
    %v578 = vpop.f32.mrb[0].mxu0
    %v579 = vadd.f32 0.0, %v578
    %v580 = vpop.f32.mrb[0].mxu0
    %581 = vdwg.mxu0
    %582 = vmatprep.subr.bf16.mxu0 0
    %583 = vmatpush1.bf16.msra.mxu0 %v401
    %584 = vmatprep.subr.bf16.mxu0 0
    %585 = vmatpush1.bf16.msra.mxu0 0
    %586 = vmatprep.subr.bf16.mxu0 0
    %587 = vmatpush1.bf16.msra.mxu0 0
    %588 = vmatprep.subr.bf16.mxu0 0
    %589 = vmatpush1.bf16.msra.mxu0 0
    %590 = vmatprep.subr.bf16.mxu0 0
    %591 = vmatpush1.bf16.msra.mxu0 0
    %592 = vmatprep.subr.bf16.mxu0 0
    %593 = vmatpush1.bf16.msra.mxu0 0
    %594 = vmatprep.subr.bf16.mxu0 0
    %595 = vmatpush1.bf16.msra.mxu0 0
    %596 = vmatprep.subr.bf16.mxu0 0
    %597 = vmatpush1.bf16.msra.mxu0 0
    %598 = vmatprep.subr.bf16.mxu0 0
    %599 = vmatpush1.bf16.msra.mxu0 0
    %600 = vmatprep.subr.bf16.mxu0 0
    %601 = vmatpush1.bf16.msra.mxu0 0
    %602 = vmatprep.subr.bf16.mxu0 0
    %603 = vmatpush1.bf16.msra.mxu0 0
    %604 = vmatprep.subr.bf16.mxu0 0
    %605 = vmatpush1.bf16.msra.mxu0 0
    %606 = vmatprep.subr.bf16.mxu0 0
    %607 = vmatpush1.bf16.msra.mxu0 0
    %608 = vmatprep.subr.bf16.mxu0 0
    %609 = vmatpush1.bf16.msra.mxu0 0
    %610 = vmatprep.subr.bf16.mxu0 0
    %611 = vmatpush1.bf16.msra.mxu0 0
    %612 = vmatprep.subr.bf16.mxu0 0
    %613 = vmatpush1.bf16.msra.mxu0 0
    %614 = vmatprep.mubr.bf16.mxu0 0
    %615 = vmatmul.mubr.bf16.gmra.mrb[0].mxu0 %v463
    %v616 = vpop.f32.mrb[0].mxu0
    %v617 = vadd.f32 0.0, %v616
    %v618 = vpop.f32.mrb[0].mxu0
    %v619 = vpop.f32.mrb[0].mxu0
    %v620 = vadd.f32 0.0, %v619
    %v621 = vpop.f32.mrb[0].mxu0
    %622 = vdwg.mxu0
    %v623 = vsub.f32 %v576, %v617
    %v624 = vsub.f32 %v579, %v620
    %v625 = vmul.f32 %v623, %v623
    %v626 = vmul.f32 %v624, %v624
    %v627 = vsel %vm167, %v625, 0.0
    %v628 = vsel %vm167, %v626, 0.0
    %v629 = vadd.f32 %v627, %v628
    %630 = vadd.xlane.f32.xlu0 %v629
    %v631 = vpop.xlane.xlu0 %630
    %v632 = vrot.slane %v631, 4
    %v633 = vadd.f32 %v631, %v632
    %v634 = vrot.slane %v633, 2
    %v635 = vadd.f32 %v633, %v634
    %v636 = vrot.slane %v635, 1
    %v637 = vadd.f32 %v635, %v636
    %s638 = vtos %v637
    %s639 = sadd.s32 %s104, 1
    %s640 = sld [smem:[#allocation11 + %s639]]
    %s641 = sadd.f32 %s638, 2.56e-10
    %v642 = vstv %s641
    %v643 = vrsqrt.pop %v642
    %s644 = vtos %v643
    %s645 = smul.f32 %s640, %s644
    %s646 = scalar_lea.vmem [#allocation2], 16
    %v647 = vld [vmem:[%s646] sm:$0xff]
    %v648 = vld [vmem:[%s646 + $0x8] sm:$0xff]
    %v649 = vstv %s645
    %v650 = vmul.f32 %v649, %v623
    %v651 = vmul.f32 %v649, %v624
    %v652 = vadd.f32 %v647, %v650
    %v653 = vadd.f32 %v648, %v651
    %v654 = vmax.f32 %v652, 0.0
    %v655 = vmax.f32 %v653, 0.0
    %v656 = vmin.f32 %v654, 1.0
    %v657 = vmin.f32 %v655, 1.0
    %s658 = scalar_lea.vmem [#allocation12], 16
    %659 = vst.msk [vmem:[%s658] sm:$0xff] %vm167, %v656
    %660 = vst.msk [vmem:[%s658 + $0x8] sm:$0xff] %vm167, %v657
    %661 = vmatprep.subr.bf16.mxu0 0
    %662 = vmatpush1.bf16.msra.mxu0 %v394
    %663 = vmatprep.subr.bf16.mxu0 0
    %664 = vmatpush1.bf16.msra.mxu0 0
    %665 = vmatprep.subr.bf16.mxu0 0
    %666 = vmatpush1.bf16.msra.mxu0 0
    %667 = vmatprep.subr.bf16.mxu0 0
    %668 = vmatpush1.bf16.msra.mxu0 0
    %669 = vmatprep.subr.bf16.mxu0 0
    %670 = vmatpush1.bf16.msra.mxu0 0
    %671 = vmatprep.subr.bf16.mxu0 0
    %672 = vmatpush1.bf16.msra.mxu0 0
    %673 = vmatprep.subr.bf16.mxu0 0
    %674 = vmatpush1.bf16.msra.mxu0 0
    %675 = vmatprep.subr.bf16.mxu0 0
    %676 = vmatpush1.bf16.msra.mxu0 0
    %677 = vmatprep.subr.bf16.mxu0 0
    %678 = vmatpush1.bf16.msra.mxu0 0
    %679 = vmatprep.subr.bf16.mxu0 0
    %680 = vmatpush1.bf16.msra.mxu0 0
    %681 = vmatprep.subr.bf16.mxu0 0
    %682 = vmatpush1.bf16.msra.mxu0 0
    %683 = vmatprep.subr.bf16.mxu0 0
    %684 = vmatpush1.bf16.msra.mxu0 0
    %685 = vmatprep.subr.bf16.mxu0 0
    %686 = vmatpush1.bf16.msra.mxu0 0
    %687 = vmatprep.subr.bf16.mxu0 0
    %688 = vmatpush1.bf16.msra.mxu0 0
    %689 = vmatprep.subr.bf16.mxu0 0
    %690 = vmatpush1.bf16.msra.mxu0 0
    %691 = vmatprep.subr.bf16.mxu0 0
    %692 = vmatpush1.bf16.msra.mxu0 0
    %693 = vmatprep.mubr.bf16.mxu0 0
    %694 = vmatmul.mubr.bf16.gmra.mrb[0].mxu0 %v414
    %v695 = vpop.f32.mrb[0].mxu0
    %v696 = vadd.f32 0.0, %v695
    %v697 = vpop.f32.mrb[0].mxu0
    %v698 = vpop.f32.mrb[0].mxu0
    %v699 = vadd.f32 0.0, %v698
    %v700 = vpop.f32.mrb[0].mxu0
    %701 = vdwg.mxu0
    %702 = vmatprep.subr.bf16.mxu0 0
    %703 = vmatpush1.bf16.msra.mxu0 %v402
    %704 = vmatprep.subr.bf16.mxu0 0
    %705 = vmatpush1.bf16.msra.mxu0 0
    %706 = vmatprep.subr.bf16.mxu0 0
    %707 = vmatpush1.bf16.msra.mxu0 0
    %708 = vmatprep.subr.bf16.mxu0 0
    %709 = vmatpush1.bf16.msra.mxu0 0
    %710 = vmatprep.subr.bf16.mxu0 0
    %711 = vmatpush1.bf16.msra.mxu0 0
    %712 = vmatprep.subr.bf16.mxu0 0
    %713 = vmatpush1.bf16.msra.mxu0 0
    %714 = vmatprep.subr.bf16.mxu0 0
    %715 = vmatpush1.bf16.msra.mxu0 0
    %716 = vmatprep.subr.bf16.mxu0 0
    %717 = vmatpush1.bf16.msra.mxu0 0
    %718 = vmatprep.subr.bf16.mxu0 0
    %719 = vmatpush1.bf16.msra.mxu0 0
    %720 = vmatprep.subr.bf16.mxu0 0
    %721 = vmatpush1.bf16.msra.mxu0 0
    %722 = vmatprep.subr.bf16.mxu0 0
    %723 = vmatpush1.bf16.msra.mxu0 0
    %724 = vmatprep.subr.bf16.mxu0 0
    %725 = vmatpush1.bf16.msra.mxu0 0
    %726 = vmatprep.subr.bf16.mxu0 0
    %727 = vmatpush1.bf16.msra.mxu0 0
    %728 = vmatprep.subr.bf16.mxu0 0
    %729 = vmatpush1.bf16.msra.mxu0 0
    %730 = vmatprep.subr.bf16.mxu0 0
    %731 = vmatpush1.bf16.msra.mxu0 0
    %732 = vmatprep.subr.bf16.mxu0 0
    %733 = vmatpush1.bf16.msra.mxu0 0
    %734 = vmatprep.mubr.bf16.mxu0 0
    %735 = vmatmul.mubr.bf16.gmra.mrb[0].mxu0 %v463
    %v736 = vpop.f32.mrb[0].mxu0
    %v737 = vadd.f32 0.0, %v736
    %v738 = vpop.f32.mrb[0].mxu0
    %v739 = vpop.f32.mrb[0].mxu0
    %v740 = vadd.f32 0.0, %v739
    %v741 = vpop.f32.mrb[0].mxu0
    %742 = vdwg.mxu0
    %v743 = vsub.f32 %v696, %v737
    %v744 = vsub.f32 %v699, %v740
    %v745 = vmul.f32 %v743, %v743
    %v746 = vmul.f32 %v744, %v744
    %v747 = vsel %vm167, %v745, 0.0
    %v748 = vsel %vm167, %v746, 0.0
    %v749 = vadd.f32 %v747, %v748
    %750 = vadd.xlane.f32.xlu0 %v749
    %v751 = vpop.xlane.xlu0 %750
    %v752 = vrot.slane %v751, 4
    %v753 = vadd.f32 %v751, %v752
    %v754 = vrot.slane %v753, 2
    %v755 = vadd.f32 %v753, %v754
    %v756 = vrot.slane %v755, 1
    %v757 = vadd.f32 %v755, %v756
    %s758 = vtos %v757
    %s759 = sadd.s32 %s104, 2
    %s760 = sld [smem:[#allocation11 + %s759]]
    %s761 = sadd.f32 %s758, 2.56e-10
    %v762 = vstv %s761
    %v763 = vrsqrt.pop %v762
    %s764 = vtos %v763
    %s765 = smul.f32 %s760, %s764
    %s766 = scalar_lea.vmem [#allocation2], 32
    %v767 = vld [vmem:[%s766] sm:$0xff]
    %v768 = vld [vmem:[%s766 + $0x8] sm:$0xff]
    %v769 = vstv %s765
    %v770 = vmul.f32 %v769, %v743
    %v771 = vmul.f32 %v769, %v744
    %v772 = vadd.f32 %v767, %v770
    %v773 = vadd.f32 %v768, %v771
    %v774 = vmax.f32 %v772, 0.0
    %v775 = vmax.f32 %v773, 0.0
    %v776 = vmin.f32 %v774, 1.0
    %v777 = vmin.f32 %v775, 1.0
    %s778 = scalar_lea.vmem [#allocation12], 32
    %779 = vst.msk [vmem:[%s778] sm:$0xff] %vm167, %v776
    %780 = vst.msk [vmem:[%s778 + $0x8] sm:$0xff] %vm167, %v777
    %781 = vmatprep.subr.bf16.mxu0 0
    %782 = vmatpush1.bf16.msra.mxu0 %v395
    %783 = vmatprep.subr.bf16.mxu0 0
    %784 = vmatpush1.bf16.msra.mxu0 0
    %785 = vmatprep.subr.bf16.mxu0 0
    %786 = vmatpush1.bf16.msra.mxu0 0
    %787 = vmatprep.subr.bf16.mxu0 0
    %788 = vmatpush1.bf16.msra.mxu0 0
    %789 = vmatprep.subr.bf16.mxu0 0
    %790 = vmatpush1.bf16.msra.mxu0 0
    %791 = vmatprep.subr.bf16.mxu0 0
    %792 = vmatpush1.bf16.msra.mxu0 0
    %793 = vmatprep.subr.bf16.mxu0 0
    %794 = vmatpush1.bf16.msra.mxu0 0
    %795 = vmatprep.subr.bf16.mxu0 0
    %796 = vmatpush1.bf16.msra.mxu0 0
    %797 = vmatprep.subr.bf16.mxu0 0
    %798 = vmatpush1.bf16.msra.mxu0 0
    %799 = vmatprep.subr.bf16.mxu0 0
    %800 = vmatpush1.bf16.msra.mxu0 0
    %801 = vmatprep.subr.bf16.mxu0 0
    %802 = vmatpush1.bf16.msra.mxu0 0
    %803 = vmatprep.subr.bf16.mxu0 0
    %804 = vmatpush1.bf16.msra.mxu0 0
    %805 = vmatprep.subr.bf16.mxu0 0
    %806 = vmatpush1.bf16.msra.mxu0 0
    %807 = vmatprep.subr.bf16.mxu0 0
    %808 = vmatpush1.bf16.msra.mxu0 0
    %809 = vmatprep.subr.bf16.mxu0 0
    %810 = vmatpush1.bf16.msra.mxu0 0
    %811 = vmatprep.subr.bf16.mxu0 0
    %812 = vmatpush1.bf16.msra.mxu0 0
    %813 = vmatprep.mubr.bf16.mxu0 0
    %814 = vmatmul.mubr.bf16.gmra.mrb[0].mxu0 %v414
    %v815 = vpop.f32.mrb[0].mxu0
    %v816 = vadd.f32 0.0, %v815
    %v817 = vpop.f32.mrb[0].mxu0
    %v818 = vpop.f32.mrb[0].mxu0
    %v819 = vadd.f32 0.0, %v818
    %v820 = vpop.f32.mrb[0].mxu0
    %821 = vdwg.mxu0
    %822 = vmatprep.subr.bf16.mxu0 0
    %823 = vmatpush1.bf16.msra.mxu0 %v403
    %824 = vmatprep.subr.bf16.mxu0 0
    %825 = vmatpush1.bf16.msra.mxu0 0
    %826 = vmatprep.subr.bf16.mxu0 0
    %827 = vmatpush1.bf16.msra.mxu0 0
    %828 = vmatprep.subr.bf16.mxu0 0
    %829 = vmatpush1.bf16.msra.mxu0 0
    %830 = vmatprep.subr.bf16.mxu0 0
    %831 = vmatpush1.bf16.msra.mxu0 0
    %832 = vmatprep.subr.bf16.mxu0 0
    %833 = vmatpush1.bf16.msra.mxu0 0
    %834 = vmatprep.subr.bf16.mxu0 0
    %835 = vmatpush1.bf16.msra.mxu0 0
    %836 = vmatprep.subr.bf16.mxu0 0
    %837 = vmatpush1.bf16.msra.mxu0 0
    %838 = vmatprep.subr.bf16.mxu0 0
    %839 = vmatpush1.bf16.msra.mxu0 0
    %840 = vmatprep.subr.bf16.mxu0 0
    %841 = vmatpush1.bf16.msra.mxu0 0
    %842 = vmatprep.subr.bf16.mxu0 0
    %843 = vmatpush1.bf16.msra.mxu0 0
    %844 = vmatprep.subr.bf16.mxu0 0
    %845 = vmatpush1.bf16.msra.mxu0 0
    %846 = vmatprep.subr.bf16.mxu0 0
    %847 = vmatpush1.bf16.msra.mxu0 0
    %848 = vmatprep.subr.bf16.mxu0 0
    %849 = vmatpush1.bf16.msra.mxu0 0
    %850 = vmatprep.subr.bf16.mxu0 0
    %851 = vmatpush1.bf16.msra.mxu0 0
    %852 = vmatprep.subr.bf16.mxu0 0
    %853 = vmatpush1.bf16.msra.mxu0 0
    %854 = vmatprep.mubr.bf16.mxu0 0
    %855 = vmatmul.mubr.bf16.gmra.mrb[0].mxu0 %v463
    %v856 = vpop.f32.mrb[0].mxu0
    %v857 = vadd.f32 0.0, %v856
    %v858 = vpop.f32.mrb[0].mxu0
    %v859 = vpop.f32.mrb[0].mxu0
    %v860 = vadd.f32 0.0, %v859
    %v861 = vpop.f32.mrb[0].mxu0
    %862 = vdwg.mxu0
    %v863 = vsub.f32 %v816, %v857
    %v864 = vsub.f32 %v819, %v860
    %v865 = vmul.f32 %v863, %v863
    %v866 = vmul.f32 %v864, %v864
    %v867 = vsel %vm167, %v865, 0.0
    %v868 = vsel %vm167, %v866, 0.0
    %v869 = vadd.f32 %v867, %v868
    %870 = vadd.xlane.f32.xlu0 %v869
    %v871 = vpop.xlane.xlu0 %870
    %v872 = vrot.slane %v871, 4
    %v873 = vadd.f32 %v871, %v872
    %v874 = vrot.slane %v873, 2
    %v875 = vadd.f32 %v873, %v874
    %v876 = vrot.slane %v875, 1
    %v877 = vadd.f32 %v875, %v876
    %s878 = vtos %v877
    %s879 = sadd.s32 %s104, 3
    %s880 = sld [smem:[#allocation11 + %s879]]
    %s881 = sadd.f32 %s878, 2.56e-10
    %v882 = vstv %s881
    %v883 = vrsqrt.pop %v882
    %s884 = vtos %v883
    %s885 = smul.f32 %s880, %s884
    %s886 = scalar_lea.vmem [#allocation2], 48
    %v887 = vld [vmem:[%s886] sm:$0xff]
    %v888 = vld [vmem:[%s886 + $0x8] sm:$0xff]
    %v889 = vstv %s885
    %v890 = vmul.f32 %v889, %v863
    %v891 = vmul.f32 %v889, %v864
    %v892 = vadd.f32 %v887, %v890
    %v893 = vadd.f32 %v888, %v891
    %v894 = vmax.f32 %v892, 0.0
    %v895 = vmax.f32 %v893, 0.0
    %v896 = vmin.f32 %v894, 1.0
    %v897 = vmin.f32 %v895, 1.0
    %s898 = scalar_lea.vmem [#allocation12], 48
    %899 = vst.msk [vmem:[%s898] sm:$0xff] %vm167, %v896
    %900 = vst.msk [vmem:[%s898 + $0x8] sm:$0xff] %vm167, %v897
    %901 = vmatprep.subr.bf16.mxu0 0
    %902 = vmatpush1.bf16.msra.mxu0 %v396
    %903 = vmatprep.subr.bf16.mxu0 0
    %904 = vmatpush1.bf16.msra.mxu0 0
    %905 = vmatprep.subr.bf16.mxu0 0
    %906 = vmatpush1.bf16.msra.mxu0 0
    %907 = vmatprep.subr.bf16.mxu0 0
    %908 = vmatpush1.bf16.msra.mxu0 0
    %909 = vmatprep.subr.bf16.mxu0 0
    %910 = vmatpush1.bf16.msra.mxu0 0
    %911 = vmatprep.subr.bf16.mxu0 0
    %912 = vmatpush1.bf16.msra.mxu0 0
    %913 = vmatprep.subr.bf16.mxu0 0
    %914 = vmatpush1.bf16.msra.mxu0 0
    %915 = vmatprep.subr.bf16.mxu0 0
    %916 = vmatpush1.bf16.msra.mxu0 0
    %917 = vmatprep.subr.bf16.mxu0 0
    %918 = vmatpush1.bf16.msra.mxu0 0
    %919 = vmatprep.subr.bf16.mxu0 0
    %920 = vmatpush1.bf16.msra.mxu0 0
    %921 = vmatprep.subr.bf16.mxu0 0
    %922 = vmatpush1.bf16.msra.mxu0 0
    %923 = vmatprep.subr.bf16.mxu0 0
    %924 = vmatpush1.bf16.msra.mxu0 0
    %925 = vmatprep.subr.bf16.mxu0 0
    %926 = vmatpush1.bf16.msra.mxu0 0
    %927 = vmatprep.subr.bf16.mxu0 0
    %928 = vmatpush1.bf16.msra.mxu0 0
    %929 = vmatprep.subr.bf16.mxu0 0
    %930 = vmatpush1.bf16.msra.mxu0 0
    %931 = vmatprep.subr.bf16.mxu0 0
    %932 = vmatpush1.bf16.msra.mxu0 0
    %933 = vmatprep.mubr.bf16.mxu0 0
    %934 = vmatmul.mubr.bf16.gmra.mrb[0].mxu0 %v414
    %v935 = vpop.f32.mrb[0].mxu0
    %v936 = vadd.f32 0.0, %v935
    %v937 = vpop.f32.mrb[0].mxu0
    %v938 = vpop.f32.mrb[0].mxu0
    %v939 = vadd.f32 0.0, %v938
    %v940 = vpop.f32.mrb[0].mxu0
    %941 = vdwg.mxu0
    %942 = vmatprep.subr.bf16.mxu0 0
    %943 = vmatpush1.bf16.msra.mxu0 %v404
    %944 = vmatprep.subr.bf16.mxu0 0
    %945 = vmatpush1.bf16.msra.mxu0 0
    %946 = vmatprep.subr.bf16.mxu0 0
    %947 = vmatpush1.bf16.msra.mxu0 0
    %948 = vmatprep.subr.bf16.mxu0 0
    %949 = vmatpush1.bf16.msra.mxu0 0
    %950 = vmatprep.subr.bf16.mxu0 0
    %951 = vmatpush1.bf16.msra.mxu0 0
    %952 = vmatprep.subr.bf16.mxu0 0
    %953 = vmatpush1.bf16.msra.mxu0 0
    %954 = vmatprep.subr.bf16.mxu0 0
    %955 = vmatpush1.bf16.msra.mxu0 0
    %956 = vmatprep.subr.bf16.mxu0 0
    %957 = vmatpush1.bf16.msra.mxu0 0
    %958 = vmatprep.subr.bf16.mxu0 0
    %959 = vmatpush1.bf16.msra.mxu0 0
    %960 = vmatprep.subr.bf16.mxu0 0
    %961 = vmatpush1.bf16.msra.mxu0 0
    %962 = vmatprep.subr.bf16.mxu0 0
    %963 = vmatpush1.bf16.msra.mxu0 0
    %964 = vmatprep.subr.bf16.mxu0 0
    %965 = vmatpush1.bf16.msra.mxu0 0
    %966 = vmatprep.subr.bf16.mxu0 0
    %967 = vmatpush1.bf16.msra.mxu0 0
    %968 = vmatprep.subr.bf16.mxu0 0
    %969 = vmatpush1.bf16.msra.mxu0 0
    %970 = vmatprep.subr.bf16.mxu0 0
    %971 = vmatpush1.bf16.msra.mxu0 0
    %972 = vmatprep.subr.bf16.mxu0 0
    %973 = vmatpush1.bf16.msra.mxu0 0
    %974 = vmatprep.mubr.bf16.mxu0 0
    %975 = vmatmul.mubr.bf16.gmra.mrb[0].mxu0 %v463
    %v976 = vpop.f32.mrb[0].mxu0
    %v977 = vadd.f32 0.0, %v976
    %v978 = vpop.f32.mrb[0].mxu0
    %v979 = vpop.f32.mrb[0].mxu0
    %v980 = vadd.f32 0.0, %v979
    %v981 = vpop.f32.mrb[0].mxu0
    %982 = vdwg.mxu0
    %v983 = vsub.f32 %v936, %v977
    %v984 = vsub.f32 %v939, %v980
    %v985 = vmul.f32 %v983, %v983
    %v986 = vmul.f32 %v984, %v984
    %v987 = vsel %vm167, %v985, 0.0
    %v988 = vsel %vm167, %v986, 0.0
    %v989 = vadd.f32 %v987, %v988
    %990 = vadd.xlane.f32.xlu0 %v989
    %v991 = vpop.xlane.xlu0 %990
    %v992 = vrot.slane %v991, 4
    %v993 = vadd.f32 %v991, %v992
    %v994 = vrot.slane %v993, 2
    %v995 = vadd.f32 %v993, %v994
    %v996 = vrot.slane %v995, 1
    %v997 = vadd.f32 %v995, %v996
    %s998 = vtos %v997
    %s999 = sadd.s32 %s104, 4
    %s1000 = sld [smem:[#allocation11 + %s999]]
    %s1001 = sadd.f32 %s998, 2.56e-10
    %v1002 = vstv %s1001
    %v1003 = vrsqrt.pop %v1002
    %s1004 = vtos %v1003
    %s1005 = smul.f32 %s1000, %s1004
    %s1006 = scalar_lea.vmem [#allocation2], 64
    %v1007 = vld [vmem:[%s1006] sm:$0xff]
    %v1008 = vld [vmem:[%s1006 + $0x8] sm:$0xff]
    %v1009 = vstv %s1005
    %v1010 = vmul.f32 %v1009, %v983
    %v1011 = vmul.f32 %v1009, %v984
    %v1012 = vadd.f32 %v1007, %v1010
    %v1013 = vadd.f32 %v1008, %v1011
    %v1014 = vmax.f32 %v1012, 0.0
    %v1015 = vmax.f32 %v1013, 0.0
    %v1016 = vmin.f32 %v1014, 1.0
    %v1017 = vmin.f32 %v1015, 1.0
    %s1018 = scalar_lea.vmem [#allocation12], 64
    %1019 = vst.msk [vmem:[%s1018] sm:$0xff] %vm167, %v1016
    %1020 = vst.msk [vmem:[%s1018 + $0x8] sm:$0xff] %vm167, %v1017
    %1021 = vmatprep.subr.bf16.mxu0 0
    %1022 = vmatpush1.bf16.msra.mxu0 %v397
    %1023 = vmatprep.subr.bf16.mxu0 0
    %1024 = vmatpush1.bf16.msra.mxu0 0
    %1025 = vmatprep.subr.bf16.mxu0 0
    %1026 = vmatpush1.bf16.msra.mxu0 0
    %1027 = vmatprep.subr.bf16.mxu0 0
    %1028 = vmatpush1.bf16.msra.mxu0 0
    %1029 = vmatprep.subr.bf16.mxu0 0
    %1030 = vmatpush1.bf16.msra.mxu0 0
    %1031 = vmatprep.subr.bf16.mxu0 0
    %1032 = vmatpush1.bf16.msra.mxu0 0
    %1033 = vmatprep.subr.bf16.mxu0 0
    %1034 = vmatpush1.bf16.msra.mxu0 0
    %1035 = vmatprep.subr.bf16.mxu0 0
    %1036 = vmatpush1.bf16.msra.mxu0 0
    %1037 = vmatprep.subr.bf16.mxu0 0
    %1038 = vmatpush1.bf16.msra.mxu0 0
    %1039 = vmatprep.subr.bf16.mxu0 0
    %1040 = vmatpush1.bf16.msra.mxu0 0
    %1041 = vmatprep.subr.bf16.mxu0 0
    %1042 = vmatpush1.bf16.msra.mxu0 0
    %1043 = vmatprep.subr.bf16.mxu0 0
    %1044 = vmatpush1.bf16.msra.mxu0 0
    %1045 = vmatprep.subr.bf16.mxu0 0
    %1046 = vmatpush1.bf16.msra.mxu0 0
    %1047 = vmatprep.subr.bf16.mxu0 0
    %1048 = vmatpush1.bf16.msra.mxu0 0
    %1049 = vmatprep.subr.bf16.mxu0 0
    %1050 = vmatpush1.bf16.msra.mxu0 0
    %1051 = vmatprep.subr.bf16.mxu0 0
    %1052 = vmatpush1.bf16.msra.mxu0 0
    %1053 = vmatprep.mubr.bf16.mxu0 0
    %1054 = vmatmul.mubr.bf16.gmra.mrb[0].mxu0 %v414
    %v1055 = vpop.f32.mrb[0].mxu0
    %v1056 = vadd.f32 0.0, %v1055
    %v1057 = vpop.f32.mrb[0].mxu0
    %v1058 = vpop.f32.mrb[0].mxu0
    %v1059 = vadd.f32 0.0, %v1058
    %v1060 = vpop.f32.mrb[0].mxu0
    %1061 = vdwg.mxu0
    %1062 = vmatprep.subr.bf16.mxu0 0
    %1063 = vmatpush1.bf16.msra.mxu0 %v405
    %1064 = vmatprep.subr.bf16.mxu0 0
    %1065 = vmatpush1.bf16.msra.mxu0 0
    %1066 = vmatprep.subr.bf16.mxu0 0
    %1067 = vmatpush1.bf16.msra.mxu0 0
    %1068 = vmatprep.subr.bf16.mxu0 0
    %1069 = vmatpush1.bf16.msra.mxu0 0
    %1070 = vmatprep.subr.bf16.mxu0 0
    %1071 = vmatpush1.bf16.msra.mxu0 0
    %1072 = vmatprep.subr.bf16.mxu0 0
    %1073 = vmatpush1.bf16.msra.mxu0 0
    %1074 = vmatprep.subr.bf16.mxu0 0
    %1075 = vmatpush1.bf16.msra.mxu0 0
    %1076 = vmatprep.subr.bf16.mxu0 0
    %1077 = vmatpush1.bf16.msra.mxu0 0
    %1078 = vmatprep.subr.bf16.mxu0 0
    %1079 = vmatpush1.bf16.msra.mxu0 0
    %1080 = vmatprep.subr.bf16.mxu0 0
    %1081 = vmatpush1.bf16.msra.mxu0 0
    %1082 = vmatprep.subr.bf16.mxu0 0
    %1083 = vmatpush1.bf16.msra.mxu0 0
    %1084 = vmatprep.subr.bf16.mxu0 0
    %1085 = vmatpush1.bf16.msra.mxu0 0
    %1086 = vmatprep.subr.bf16.mxu0 0
    %1087 = vmatpush1.bf16.msra.mxu0 0
    %1088 = vmatprep.subr.bf16.mxu0 0
    %1089 = vmatpush1.bf16.msra.mxu0 0
    %1090 = vmatprep.subr.bf16.mxu0 0
    %1091 = vmatpush1.bf16.msra.mxu0 0
    %1092 = vmatprep.subr.bf16.mxu0 0
    %1093 = vmatpush1.bf16.msra.mxu0 0
    %1094 = vmatprep.mubr.bf16.mxu0 0
    %1095 = vmatmul.mubr.bf16.gmra.mrb[0].mxu0 %v463
    %v1096 = vpop.f32.mrb[0].mxu0
    %v1097 = vadd.f32 0.0, %v1096
    %v1098 = vpop.f32.mrb[0].mxu0
    %v1099 = vpop.f32.mrb[0].mxu0
    %v1100 = vadd.f32 0.0, %v1099
    %v1101 = vpop.f32.mrb[0].mxu0
    %1102 = vdwg.mxu0
    %v1103 = vsub.f32 %v1056, %v1097
    %v1104 = vsub.f32 %v1059, %v1100
    %v1105 = vmul.f32 %v1103, %v1103
    %v1106 = vmul.f32 %v1104, %v1104
    %v1107 = vsel %vm167, %v1105, 0.0
    %v1108 = vsel %vm167, %v1106, 0.0
    %v1109 = vadd.f32 %v1107, %v1108
    %1110 = vadd.xlane.f32.xlu0 %v1109
    %v1111 = vpop.xlane.xlu0 %1110
    %v1112 = vrot.slane %v1111, 4
    %v1113 = vadd.f32 %v1111, %v1112
    %v1114 = vrot.slane %v1113, 2
    %v1115 = vadd.f32 %v1113, %v1114
    %v1116 = vrot.slane %v1115, 1
    %v1117 = vadd.f32 %v1115, %v1116
    %s1118 = vtos %v1117
    %s1119 = sadd.s32 %s104, 5
    %s1120 = sld [smem:[#allocation11 + %s1119]]
    %s1121 = sadd.f32 %s1118, 2.56e-10
    %v1122 = vstv %s1121
    %v1123 = vrsqrt.pop %v1122
    %s1124 = vtos %v1123
    %s1125 = smul.f32 %s1120, %s1124
    %s1126 = scalar_lea.vmem [#allocation2], 80
    %v1127 = vld [vmem:[%s1126] sm:$0xff]
    %v1128 = vld [vmem:[%s1126 + $0x8] sm:$0xff]
    %v1129 = vstv %s1125
    %v1130 = vmul.f32 %v1129, %v1103
    %v1131 = vmul.f32 %v1129, %v1104
    %v1132 = vadd.f32 %v1127, %v1130
    %v1133 = vadd.f32 %v1128, %v1131
    %v1134 = vmax.f32 %v1132, 0.0
    %v1135 = vmax.f32 %v1133, 0.0
    %v1136 = vmin.f32 %v1134, 1.0
    %v1137 = vmin.f32 %v1135, 1.0
    %s1138 = scalar_lea.vmem [#allocation12], 80
    %1139 = vst.msk [vmem:[%s1138] sm:$0xff] %vm167, %v1136
    %1140 = vst.msk [vmem:[%s1138 + $0x8] sm:$0xff] %vm167, %v1137
    %1141 = vmatprep.subr.bf16.mxu0 0
    %1142 = vmatpush1.bf16.msra.mxu0 %v398
    %1143 = vmatprep.subr.bf16.mxu0 0
    %1144 = vmatpush1.bf16.msra.mxu0 0
    %1145 = vmatprep.subr.bf16.mxu0 0
    %1146 = vmatpush1.bf16.msra.mxu0 0
    %1147 = vmatprep.subr.bf16.mxu0 0
    %1148 = vmatpush1.bf16.msra.mxu0 0
    %1149 = vmatprep.subr.bf16.mxu0 0
    %1150 = vmatpush1.bf16.msra.mxu0 0
    %1151 = vmatprep.subr.bf16.mxu0 0
    %1152 = vmatpush1.bf16.msra.mxu0 0
    %1153 = vmatprep.subr.bf16.mxu0 0
    %1154 = vmatpush1.bf16.msra.mxu0 0
    %1155 = vmatprep.subr.bf16.mxu0 0
    %1156 = vmatpush1.bf16.msra.mxu0 0
    %1157 = vmatprep.subr.bf16.mxu0 0
    %1158 = vmatpush1.bf16.msra.mxu0 0
    %1159 = vmatprep.subr.bf16.mxu0 0
    %1160 = vmatpush1.bf16.msra.mxu0 0
    %1161 = vmatprep.subr.bf16.mxu0 0
    %1162 = vmatpush1.bf16.msra.mxu0 0
    %1163 = vmatprep.subr.bf16.mxu0 0
    %1164 = vmatpush1.bf16.msra.mxu0 0
    %1165 = vmatprep.subr.bf16.mxu0 0
    %1166 = vmatpush1.bf16.msra.mxu0 0
    %1167 = vmatprep.subr.bf16.mxu0 0
    %1168 = vmatpush1.bf16.msra.mxu0 0
    %1169 = vmatprep.subr.bf16.mxu0 0
    %1170 = vmatpush1.bf16.msra.mxu0 0
    %1171 = vmatprep.subr.bf16.mxu0 0
    %1172 = vmatpush1.bf16.msra.mxu0 0
    %1173 = vmatprep.mubr.bf16.mxu0 0
    %1174 = vmatmul.mubr.bf16.gmra.mrb[0].mxu0 %v414
    %v1175 = vpop.f32.mrb[0].mxu0
    %v1176 = vadd.f32 0.0, %v1175
    %v1177 = vpop.f32.mrb[0].mxu0
    %v1178 = vpop.f32.mrb[0].mxu0
    %v1179 = vadd.f32 0.0, %v1178
    %v1180 = vpop.f32.mrb[0].mxu0
    %1181 = vdwg.mxu0
    %1182 = vmatprep.subr.bf16.mxu0 0
    %1183 = vmatpush1.bf16.msra.mxu0 %v406
    %1184 = vmatprep.subr.bf16.mxu0 0
    %1185 = vmatpush1.bf16.msra.mxu0 0
    %1186 = vmatprep.subr.bf16.mxu0 0
    %1187 = vmatpush1.bf16.msra.mxu0 0
    %1188 = vmatprep.subr.bf16.mxu0 0
    %1189 = vmatpush1.bf16.msra.mxu0 0
    %1190 = vmatprep.subr.bf16.mxu0 0
    %1191 = vmatpush1.bf16.msra.mxu0 0
    %1192 = vmatprep.subr.bf16.mxu0 0
    %1193 = vmatpush1.bf16.msra.mxu0 0
    %1194 = vmatprep.subr.bf16.mxu0 0
    %1195 = vmatpush1.bf16.msra.mxu0 0
    %1196 = vmatprep.subr.bf16.mxu0 0
    %1197 = vmatpush1.bf16.msra.mxu0 0
    %1198 = vmatprep.subr.bf16.mxu0 0
    %1199 = vmatpush1.bf16.msra.mxu0 0
    %1200 = vmatprep.subr.bf16.mxu0 0
    %1201 = vmatpush1.bf16.msra.mxu0 0
    %1202 = vmatprep.subr.bf16.mxu0 0
    %1203 = vmatpush1.bf16.msra.mxu0 0
    %1204 = vmatprep.subr.bf16.mxu0 0
    %1205 = vmatpush1.bf16.msra.mxu0 0
    %1206 = vmatprep.subr.bf16.mxu0 0
    %1207 = vmatpush1.bf16.msra.mxu0 0
    %1208 = vmatprep.subr.bf16.mxu0 0
    %1209 = vmatpush1.bf16.msra.mxu0 0
    %1210 = vmatprep.subr.bf16.mxu0 0
    %1211 = vmatpush1.bf16.msra.mxu0 0
    %1212 = vmatprep.subr.bf16.mxu0 0
    %1213 = vmatpush1.bf16.msra.mxu0 0
    %1214 = vmatprep.mubr.bf16.mxu0 0
    %1215 = vmatmul.mubr.bf16.gmra.mrb[0].mxu0 %v463
    %v1216 = vpop.f32.mrb[0].mxu0
    %v1217 = vadd.f32 0.0, %v1216
    %v1218 = vpop.f32.mrb[0].mxu0
    %v1219 = vpop.f32.mrb[0].mxu0
    %v1220 = vadd.f32 0.0, %v1219
    %v1221 = vpop.f32.mrb[0].mxu0
    %1222 = vdwg.mxu0
    %v1223 = vsub.f32 %v1176, %v1217
    %v1224 = vsub.f32 %v1179, %v1220
    %v1225 = vmul.f32 %v1223, %v1223
    %v1226 = vmul.f32 %v1224, %v1224
    %v1227 = vsel %vm167, %v1225, 0.0
    %v1228 = vsel %vm167, %v1226, 0.0
    %v1229 = vadd.f32 %v1227, %v1228
    %1230 = vadd.xlane.f32.xlu0 %v1229
    %v1231 = vpop.xlane.xlu0 %1230
    %v1232 = vrot.slane %v1231, 4
    %v1233 = vadd.f32 %v1231, %v1232
    %v1234 = vrot.slane %v1233, 2
    %v1235 = vadd.f32 %v1233, %v1234
    %v1236 = vrot.slane %v1235, 1
    %v1237 = vadd.f32 %v1235, %v1236
    %s1238 = vtos %v1237
    %s1239 = sadd.s32 %s104, 6
    %s1240 = sld [smem:[#allocation11 + %s1239]]
    %s1241 = sadd.f32 %s1238, 2.56e-10
    %v1242 = vstv %s1241
    %v1243 = vrsqrt.pop %v1242
    %s1244 = vtos %v1243
    %s1245 = smul.f32 %s1240, %s1244
    %s1246 = scalar_lea.vmem [#allocation2], 96
    %v1247 = vld [vmem:[%s1246] sm:$0xff]
    %v1248 = vld [vmem:[%s1246 + $0x8] sm:$0xff]
    %v1249 = vstv %s1245
    %v1250 = vmul.f32 %v1249, %v1223
    %v1251 = vmul.f32 %v1249, %v1224
    %v1252 = vadd.f32 %v1247, %v1250
    %v1253 = vadd.f32 %v1248, %v1251
    %v1254 = vmax.f32 %v1252, 0.0
    %v1255 = vmax.f32 %v1253, 0.0
    %v1256 = vmin.f32 %v1254, 1.0
    %v1257 = vmin.f32 %v1255, 1.0
    %s1258 = scalar_lea.vmem [#allocation12], 96
    %1259 = vst.msk [vmem:[%s1258] sm:$0xff] %vm167, %v1256
    %1260 = vst.msk [vmem:[%s1258 + $0x8] sm:$0xff] %vm167, %v1257
    %1261 = vmatprep.subr.bf16.mxu0 0
    %1262 = vmatpush1.bf16.msra.mxu0 %v399
    %1263 = vmatprep.subr.bf16.mxu0 0
    %1264 = vmatpush1.bf16.msra.mxu0 0
    %1265 = vmatprep.subr.bf16.mxu0 0
    %1266 = vmatpush1.bf16.msra.mxu0 0
    %1267 = vmatprep.subr.bf16.mxu0 0
    %1268 = vmatpush1.bf16.msra.mxu0 0
    %1269 = vmatprep.subr.bf16.mxu0 0
    %1270 = vmatpush1.bf16.msra.mxu0 0
    %1271 = vmatprep.subr.bf16.mxu0 0
    %1272 = vmatpush1.bf16.msra.mxu0 0
    %1273 = vmatprep.subr.bf16.mxu0 0
    %1274 = vmatpush1.bf16.msra.mxu0 0
    %1275 = vmatprep.subr.bf16.mxu0 0
    %1276 = vmatpush1.bf16.msra.mxu0 0
    %1277 = vmatprep.subr.bf16.mxu0 0
    %1278 = vmatpush1.bf16.msra.mxu0 0
    %1279 = vmatprep.subr.bf16.mxu0 0
    %1280 = vmatpush1.bf16.msra.mxu0 0
    %1281 = vmatprep.subr.bf16.mxu0 0
    %1282 = vmatpush1.bf16.msra.mxu0 0
    %1283 = vmatprep.subr.bf16.mxu0 0
    %1284 = vmatpush1.bf16.msra.mxu0 0
    %1285 = vmatprep.subr.bf16.mxu0 0
    %1286 = vmatpush1.bf16.msra.mxu0 0
    %1287 = vmatprep.subr.bf16.mxu0 0
    %1288 = vmatpush1.bf16.msra.mxu0 0
    %1289 = vmatprep.subr.bf16.mxu0 0
    %1290 = vmatpush1.bf16.msra.mxu0 0
    %1291 = vmatprep.subr.bf16.mxu0 0
    %1292 = vmatpush1.bf16.msra.mxu0 0
    %1293 = vmatprep.mubr.bf16.mxu0 0
    %1294 = vmatmul.mubr.bf16.gmra.mrb[0].mxu0 %v414
    %v1295 = vpop.f32.mrb[0].mxu0
    %v1296 = vadd.f32 0.0, %v1295
    %v1297 = vpop.f32.mrb[0].mxu0
    %v1298 = vpop.f32.mrb[0].mxu0
    %v1299 = vadd.f32 0.0, %v1298
    %v1300 = vpop.f32.mrb[0].mxu0
    %1301 = vdwg.mxu0
    %1302 = vmatprep.subr.bf16.mxu0 0
    %1303 = vmatpush1.bf16.msra.mxu0 %v407
    %1304 = vmatprep.subr.bf16.mxu0 0
    %1305 = vmatpush1.bf16.msra.mxu0 0
    %1306 = vmatprep.subr.bf16.mxu0 0
    %1307 = vmatpush1.bf16.msra.mxu0 0
    %1308 = vmatprep.subr.bf16.mxu0 0
    %1309 = vmatpush1.bf16.msra.mxu0 0
    %1310 = vmatprep.subr.bf16.mxu0 0
    %1311 = vmatpush1.bf16.msra.mxu0 0
    %1312 = vmatprep.subr.bf16.mxu0 0
    %1313 = vmatpush1.bf16.msra.mxu0 0
    %1314 = vmatprep.subr.bf16.mxu0 0
    %1315 = vmatpush1.bf16.msra.mxu0 0
    %1316 = vmatprep.subr.bf16.mxu0 0
    %1317 = vmatpush1.bf16.msra.mxu0 0
    %1318 = vmatprep.subr.bf16.mxu0 0
    %1319 = vmatpush1.bf16.msra.mxu0 0
    %1320 = vmatprep.subr.bf16.mxu0 0
    %1321 = vmatpush1.bf16.msra.mxu0 0
    %1322 = vmatprep.subr.bf16.mxu0 0
    %1323 = vmatpush1.bf16.msra.mxu0 0
    %1324 = vmatprep.subr.bf16.mxu0 0
    %1325 = vmatpush1.bf16.msra.mxu0 0
    %1326 = vmatprep.subr.bf16.mxu0 0
    %1327 = vmatpush1.bf16.msra.mxu0 0
    %1328 = vmatprep.subr.bf16.mxu0 0
    %1329 = vmatpush1.bf16.msra.mxu0 0
    %1330 = vmatprep.subr.bf16.mxu0 0
    %1331 = vmatpush1.bf16.msra.mxu0 0
    %1332 = vmatprep.subr.bf16.mxu0 0
    %1333 = vmatpush1.bf16.msra.mxu0 0
    %1334 = vmatprep.mubr.bf16.mxu0 0
    %1335 = vmatmul.mubr.bf16.gmra.mrb[0].mxu0 %v463
    %v1336 = vpop.f32.mrb[0].mxu0
    %v1337 = vadd.f32 0.0, %v1336
    %v1338 = vpop.f32.mrb[0].mxu0
    %v1339 = vpop.f32.mrb[0].mxu0
    %v1340 = vadd.f32 0.0, %v1339
    %v1341 = vpop.f32.mrb[0].mxu0
    %1342 = vdwg.mxu0
    %v1343 = vsub.f32 %v1296, %v1337
    %v1344 = vsub.f32 %v1299, %v1340
    %v1345 = vmul.f32 %v1343, %v1343
    %v1346 = vmul.f32 %v1344, %v1344
    %v1347 = vsel %vm167, %v1345, 0.0
    %v1348 = vsel %vm167, %v1346, 0.0
    %v1349 = vadd.f32 %v1347, %v1348
    %1350 = vadd.xlane.f32.xlu0 %v1349
    %v1351 = vpop.xlane.xlu0 %1350
    %v1352 = vrot.slane %v1351, 4
    %v1353 = vadd.f32 %v1351, %v1352
    %v1354 = vrot.slane %v1353, 2
    %v1355 = vadd.f32 %v1353, %v1354
    %v1356 = vrot.slane %v1355, 1
    %v1357 = vadd.f32 %v1355, %v1356
    %s1358 = vtos %v1357
    %s1359 = sadd.s32 %s104, 7
    %s1360 = sld [smem:[#allocation11 + %s1359]]
    %s1361 = sadd.f32 %s1358, 2.56e-10
    %v1362 = vstv %s1361
    %v1363 = vrsqrt.pop %v1362
    %s1364 = vtos %v1363
    %s1365 = smul.f32 %s1360, %s1364
    %s1366 = scalar_lea.vmem [#allocation2], 112
    %v1367 = vld [vmem:[%s1366] sm:$0xff]
    %v1368 = vld [vmem:[%s1366 + $0x8] sm:$0xff]
    %v1369 = vstv %s1365
    %v1370 = vmul.f32 %v1369, %v1343
    %v1371 = vmul.f32 %v1369, %v1344
    %v1372 = vadd.f32 %v1367, %v1370
    %v1373 = vadd.f32 %v1368, %v1371
    %v1374 = vmax.f32 %v1372, 0.0
    %v1375 = vmax.f32 %v1373, 0.0
    %v1376 = vmin.f32 %v1374, 1.0
    %v1377 = vmin.f32 %v1375, 1.0
    %s1378 = scalar_lea.vmem [#allocation12], 112
    %1379 = vst.msk [vmem:[%s1378] sm:$0xff] %vm167, %v1376
    %1380 = vst.msk [vmem:[%s1378 + $0x8] sm:$0xff] %vm167, %v1377
    // Predicated region
    $region50: #{tpu_custom_call.1} parent=1 // pred_check
      _
    $region51: #{tpu_custom_call.1} parent=1 // pred_check_branch
      %1382 = sbr.rel (0) target = $region53
    $region52: #{tpu_custom_call.1} parent=1 // pred_region
      %s1384 = ssub.s32 2048, 2048
      %1385 = vsyncadd [#allocation4], %s1384
      %s1386 = sshll.u32 [#allocation12], 4
      %s1387 = int_to_ptr.vmem [resolvable:$true] %s1386
      %1392 = dma.vmem_to_hbm [thread:$0]  %s1387, 2048, %s7, [#allocation4], 128, 128, 8
    $region53: #{tpu_custom_call.1} parent=1 // pred_fallthru
      _
    // Predicated region
    $region54: #{tpu_custom_call.1} parent=1 // pred_check
      _
    $region55: #{tpu_custom_call.1} parent=1 // pred_check_branch
      %1394 = sbr.rel (0) target = $region57
    $region56: #{tpu_custom_call.1} parent=1 // pred_region
      %1395 = dma.done [#allocation4], 2048
    $region57: #{tpu_custom_call.1} parent=1 // pred_fallthru
      _
    %1396 = vsyncpa [#allocation3], 1
    %1397 = vsyncpa [#allocation7], 1
    %1398 = vsyncpa [#allocation10], 1
    %1399 = vsyncpa [#allocation4], 1
    %1400 = vsyncpa [#allocation5], 1

// kernel: tpu_custom_call.1
$region0: #{tpu_custom_call.1}
  #allocation0 [shape = 'u32[]', space=smem, size = 0x4, offset = 0x4, fixed_abs, tag = 'smem constant byte address 0x4 - core index']
  #allocation1 [shape = 'u32[144,128]{1,0:T(1,128)}', space=vmem, size = 0x12000, scoped, tag = 'internal scratch']
  %s0 = inlined_call_operand.hbm [shape: f32[8,16,16], index: 0, kind: input, shape index: {}]
  %s1 = inlined_call_operand.hbm [shape: bf16[8,16,16], index: 1, kind: input, shape index: {}]
  %s2 = inlined_call_operand.hbm [shape: bf16[16,16], index: 2, kind: input, shape index: {}]
  %s3 = inlined_call_operand.vmem [shape: bf16[16,16], index: 3, kind: input, shape index: {}]
  %s4 = inlined_call_operand.hbm [shape: bf16[16,16], index: 4, kind: input, shape index: {}]
  %s5 = inlined_call_operand.vmem [shape: bf16[16,16], index: 5, kind: input, shape index: {}]
  %s6 = inlined_call_operand.vmem [shape: f32[8], index: 6, kind: input, shape index: {}]
  %s7 = inlined_call_operand.hbm [shape: f32[8,16,16], index: 7, kind: output, shape index: {}]
  %s8 = sld [smem:[#allocation0]]
  $region58: #{tpu_custom_call.1} parent=0
    _
  %s10 = ssub.s32 1, %s8
  %s11 = scalar_select 0, %s10, %s8
  $region1: #{tpu_custom_call.1} parent=0
    #allocation2 [shape = 'u8[65536]{0}', space=vmem, size = 0x10000, scoped, tag = 'input window, operand 0, single buffered']
    #allocation3 [shape = 's32[1]{0}', space=sflag, size = 0x4, scoped, tag = 'scoped memory for tpu_custom_call.1']
    #allocation4 [shape = 's32[1]{0}', space=sflag, size = 0x4, scoped, tag = 'scoped memory for tpu_custom_call.1']
    #allocation5 [shape = 's32[1]{0}', space=sflag, size = 0x4, scoped, tag = 'scoped memory for tpu_custom_call.1']
    #allocation6 [shape = 'u8[32768]{0}', space=vmem, size = 0x8000, scoped, tag = 'input window, operand 1, single buffered']
    #allocation7 [shape = 's32[1]{0}', space=sflag, size = 0x4, scoped, tag = 'scoped memory for tpu_custom_call.1']
    #allocation8 [shape = 'u8[4096]{0}', space=vmem, size = 0x1000, scoped, tag = 'input window, operand 2, single buffered']
    #allocation9 [shape = 'u8[4096]{0}', space=vmem, size = 0x1000, scoped, tag = 'input window, operand 4, single buffered']
    #allocation10 [shape = 's32[1]{0}', space=sflag, size = 0x4, scoped, tag = 'scoped memory for tpu_custom_call.1']
    #allocation11 [shape = 'u8[512]{0}', space=smem, size = 0x200, scoped, tag = 'input window, operand 6, single buffered']
    #allocation12 [shape = 'u8[65536]{0}', space=vmem, size = 0x10000, scoped, tag = 'output window, operand 0, single buffered']
    %12 = vsyncpa [#allocation3], 0
    %13 = vsyncpa [#allocation7], 0
    %14 = vsyncpa [#allocation10], 0
    %15 = vsyncpa [#allocation5], 0
    %16 = vsyncpa [#allocation4], 0
    // Predicated region
    $region2: #{tpu_custom_call.1} parent=1 // pred_check
      _
    $region3: #{tpu_custom_call.1} parent=1 // pred_check_branch
      %18 = sbr.rel (0) target = $region5
    $region4: #{tpu_custom_call.1} parent=1 // pred_region
      %s20 = ssub.s32 2048, 2048
      %21 = vsyncadd [#allocation3], %s20
      %s22 = sshll.u32 [#allocation2], 4
      %s23 = int_to_ptr.vmem [resolvable:$true] %s22
      %28 = dma.hbm_to_vmem [thread:$0]  %s0, 2048, %s23, [#allocation3], 128, 128, 8
    $region5: #{tpu_custom_call.1} parent=1 // pred_fallthru
      _
    // Predicated region
    $region6: #{tpu_custom_call.1} parent=1 // pred_check
      _
    $region7: #{tpu_custom_call.1} parent=1 // pred_check_branch
      %30 = sbr.rel (0) target = $region9
    $region8: #{tpu_custom_call.1} parent=1 // pred_region
      %s32 = ssub.s32 1024, 1024
      %33 = vsyncadd [#allocation7], %s32
      %s34 = sshll.u32 [#allocation6], 4
      %s35 = int_to_ptr.vmem [resolvable:$true] %s34
      %40 = dma.hbm_to_vmem [thread:$0]  %s1, 1024, %s35, [#allocation7], 64, 64, 4
    $region9: #{tpu_custom_call.1} parent=1 // pred_fallthru
      _
    // Predicated region
    $region10: #{tpu_custom_call.1} parent=1 // pred_check
      _
    $region11: #{tpu_custom_call.1} parent=1 // pred_check_branch
      %42 = sbr.rel (0) target = $region13
    $region12: #{tpu_custom_call.1} parent=1 // pred_region
      %s44 = ssub.s32 128, 128
      %45 = vsyncadd [#allocation7], %s44
      %s46 = sshll.u32 [#allocation8], 4
      %s47 = int_to_ptr.vmem [resolvable:$true] %s46
      %52 = dma.hbm_to_vmem [thread:$0]  %s2, 128, %s47, [#allocation7], 64, 64, 4
    $region13: #{tpu_custom_call.1} parent=1 // pred_fallthru
      _
    // Predicated region
    $region14: #{tpu_custom_call.1} parent=1 // pred_check
      _
    $region15: #{tpu_custom_call.1} parent=1 // pred_check_branch
      %54 = sbr.rel (0) target = $region17
    $region16: #{tpu_custom_call.1} parent=1 // pred_region
      _
    $region17: #{tpu_custom_call.1} parent=1 // pred_fallthru
      _
    // Predicated region
    $region18: #{tpu_custom_call.1} parent=1 // pred_check
      _
    $region19: #{tpu_custom_call.1} parent=1 // pred_check_branch
      %56 = sbr.rel (0) target = $region21
    $region20: #{tpu_custom_call.1} parent=1 // pred_region
      %s58 = ssub.s32 128, 128
      %59 = vsyncadd [#allocation10], %s58
      %s60 = sshll.u32 [#allocation9], 4
      %s61 = int_to_ptr.vmem [resolvable:$true] %s60
      %66 = dma.hbm_to_vmem [thread:$0]  %s4, 128, %s61, [#allocation10], 64, 64, 4
    $region21: #{tpu_custom_call.1} parent=1 // pred_fallthru
      _
    // Predicated region
    $region22: #{tpu_custom_call.1} parent=1 // pred_check
      _
    $region23: #{tpu_custom_call.1} parent=1 // pred_check_branch
      %68 = sbr.rel (0) target = $region25
    $region24: #{tpu_custom_call.1} parent=1 // pred_region
      _
    $region25: #{tpu_custom_call.1} parent=1 // pred_fallthru
      _
    // Predicated region
    $region26: #{tpu_custom_call.1} parent=1 // pred_check
      _
    $region27: #{tpu_custom_call.1} parent=1 // pred_check_branch
      %70 = sbr.rel (0) target = $region29
    $region28: #{tpu_custom_call.1} parent=1 // pred_region
      %s72 = ssub.s32 16, 16
      %73 = vsyncadd [#allocation5], %s72
      %s75 = sshll.u32 %s6, 4
      %s76 = int_to_ptr.vmem [resolvable:$true] %s75
      %78 = dma.vmem_to_smem %s76, 16, [#allocation11], [#allocation5]
    $region29: #{tpu_custom_call.1} parent=1 // pred_fallthru
      _
    // Predicated region
    $region30: #{tpu_custom_call.1} parent=1 // pred_check
      _
    $region31: #{tpu_custom_call.1} parent=1 // pred_check_branch
      %80 = sbr.rel (0) target = $region33
    $region32: #{tpu_custom_call.1} parent=1 // pred_region
      %81 = dma.done [#allocation3], 2048
    $region33: #{tpu_custom_call.1} parent=1 // pred_fallthru
      _
    // Predicated region
    $region34: #{tpu_custom_call.1} parent=1 // pred_check
      _
    $region35: #{tpu_custom_call.1} parent=1 // pred_check_branch
      %83 = sbr.rel (0) target = $region37
    $region36: #{tpu_custom_call.1} parent=1 // pred_region
      %84 = dma.done [#allocation7], 1024
    $region37: #{tpu_custom_call.1} parent=1 // pred_fallthru
      _
    // Predicated region
    $region38: #{tpu_custom_call.1} parent=1 // pred_check
      _
    $region39: #{tpu_custom_call.1} parent=1 // pred_check_branch
      %86 = sbr.rel (0) target = $region41
    $region40: #{tpu_custom_call.1} parent=1 // pred_region
      %87 = dma.done [#allocation7], 128
    $region41: #{tpu_custom_call.1} parent=1 // pred_fallthru
      _
    // Predicated region
    $region42: #{tpu_custom_call.1} parent=1 // pred_check
      _
    $region43: #{tpu_custom_call.1} parent=1 // pred_check_branch
      %89 = sbr.rel (0) target = $region45
    $region44: #{tpu_custom_call.1} parent=1 // pred_region
      %90 = dma.done [#allocation10], 128
    $region45: #{tpu_custom_call.1} parent=1 // pred_fallthru
      _
    // Predicated region
    $region46: #{tpu_custom_call.1} parent=1 // pred_check
      _
    $region47: #{tpu_custom_call.1} parent=1 // pred_check_branch
      %92 = sbr.rel (0) target = $region49
    $region48: #{tpu_custom_call.1} parent=1 // pred_region
      %93 = dma.done [#allocation5], 16
    $region49: #{tpu_custom_call.1} parent=1 // pred_fallthru
      _
    %94 = sfence
    %v96 = vld [vmem:[#allocation8] sm:$0xf]
    %v97 = vld [vmem:[#allocation8 + $0x4] sm:$0xf]
    %v98 = vld [vmem:[%s3] sm:$0xf]
    %v99 = vld [vmem:[%s3 + $0x4] sm:$0xf]
    %v100 = vld [vmem:[#allocation9] sm:$0xf]
    %v101 = vld [vmem:[#allocation9 + $0x4] sm:$0xf]
    %v102 = vld [vmem:[%s5] sm:$0xf]
    %v103 = vld [vmem:[%s5 + $0x4] sm:$0xf]
    %s104 = smul.u32 0, 8
    %v105 = vld [vmem:[#allocation6] sm:$0xf]
    %v106 = vld [vmem:[#allocation6 + $0x4] sm:$0xf]
    %v107 = vld [vmem:[#allocation6 + $0x8] sm:$0xf]
    %v108 = vld [vmem:[#allocation6 + $0xc] sm:$0xf]
    %v109 = vld [vmem:[#allocation6 + $0x10] sm:$0xf]
    %v110 = vld [vmem:[#allocation6 + $0x14] sm:$0xf]
    %v111 = vld [vmem:[#allocation6 + $0x18] sm:$0xf]
    %v112 = vld [vmem:[#allocation6 + $0x1c] sm:$0xf]
    %v113 = vld [vmem:[#allocation6 + $0x20] sm:$0xf]
    %v114 = vld [vmem:[#allocation6 + $0x24] sm:$0xf]
    %v115 = vld [vmem:[#allocation6 + $0x28] sm:$0xf]
    %v116 = vld [vmem:[#allocation6 + $0x2c] sm:$0xf]
    %v117 = vld [vmem:[#allocation6 + $0x30] sm:$0xf]
    %v118 = vld [vmem:[#allocation6 + $0x34] sm:$0xf]
    %v119 = vld [vmem:[#allocation6 + $0x38] sm:$0xf]
    %v120 = vld [vmem:[#allocation6 + $0x3c] sm:$0xf]
    %v137 = vunpack.c.l.b16 %v105
    %v138 = vunpack.c.l.b16 %v106
    %v139 = vunpack.c.l.b16 %v107
    %v140 = vunpack.c.l.b16 %v108
    %v141 = vunpack.c.l.b16 %v109
    %v142 = vunpack.c.l.b16 %v110
    %v143 = vunpack.c.l.b16 %v111
    %v144 = vunpack.c.l.b16 %v112
    %v145 = vunpack.c.l.b16 %v113
    %v146 = vunpack.c.l.b16 %v114
    %v147 = vunpack.c.l.b16 %v115
    %v148 = vunpack.c.l.b16 %v116
    %v149 = vunpack.c.l.b16 %v117
    %v150 = vunpack.c.l.b16 %v118
    %v151 = vunpack.c.l.b16 %v119
    %v152 = vunpack.c.l.b16 %v120
    %v153 = vpack.c.b16 %v138, %v137
    %v154 = vpack.c.b16 %v140, %v139
    %v155 = vpack.c.b16 %v142, %v141
    %v156 = vpack.c.b16 %v144, %v143
    %v157 = vpack.c.b16 %v146, %v145
    %v158 = vpack.c.b16 %v148, %v147
    %v159 = vpack.c.b16 %v150, %v149
    %v160 = vpack.c.b16 %v152, %v151
    %v163 = vunpack.c.l.b16 %v96
    %v164 = vunpack.c.l.b16 %v97
    %v165 = vpack.c.b16 %v164, %v163
    %vm167 = vcmask 130048
    %v169 = vsel %vm167, %v153, 0
    %v172 = vsel %vm167, %v154, 0
    %v175 = vsel %vm167, %v155, 0
    %v178 = vsel %vm167, %v156, 0
    %v181 = vsel %vm167, %v157, 0
    %v184 = vsel %vm167, %v158, 0
    %v187 = vsel %vm167, %v159, 0
    %v190 = vsel %vm167, %v160, 0
    %192 = vmatprep.subr.bf16.mxu0 0
    %193 = vmatpush1.bf16.msra.mxu0 %v165
    %194 = vmatprep.subr.bf16.mxu0 0
    %195 = vmatpush1.bf16.msra.mxu0 0
    %196 = vmatprep.subr.bf16.mxu0 0
    %197 = vmatpush1.bf16.msra.mxu0 0
    %198 = vmatprep.subr.bf16.mxu0 0
    %199 = vmatpush1.bf16.msra.mxu0 0
    %200 = vmatprep.subr.bf16.mxu0 0
    %201 = vmatpush1.bf16.msra.mxu0 0
    %202 = vmatprep.subr.bf16.mxu0 0
    %203 = vmatpush1.bf16.msra.mxu0 0
    %204 = vmatprep.subr.bf16.mxu0 0
    %205 = vmatpush1.bf16.msra.mxu0 0
    %206 = vmatprep.subr.bf16.mxu0 0
    %207 = vmatpush1.bf16.msra.mxu0 0
    %208 = vmatprep.subr.bf16.mxu0 0
    %209 = vmatpush1.bf16.msra.mxu0 0
    %210 = vmatprep.subr.bf16.mxu0 0
    %211 = vmatpush1.bf16.msra.mxu0 0
    %212 = vmatprep.subr.bf16.mxu0 0
    %213 = vmatpush1.bf16.msra.mxu0 0
    %214 = vmatprep.subr.bf16.mxu0 0
    %215 = vmatpush1.bf16.msra.mxu0 0
    %216 = vmatprep.subr.bf16.mxu0 0
    %217 = vmatpush1.bf16.msra.mxu0 0
    %218 = vmatprep.subr.bf16.mxu0 0
    %219 = vmatpush1.bf16.msra.mxu0 0
    %220 = vmatprep.subr.bf16.mxu0 0
    %221 = vmatpush1.bf16.msra.mxu0 0
    %222 = vmatprep.subr.bf16.mxu0 0
    %223 = vmatpush1.bf16.msra.mxu0 0
    %224 = vmatprep.mubr.bf16.mxu0 0
    %225 = vmatmul.mubr.bf16.gmra.mrb[0].mxu0 %v169
    %v226 = vpop.f32.mrb[0].mxu0
    %v227 = vadd.f32 0.0, %v226
    %v228 = vpop.f32.mrb[0].mxu0
    %v229 = vpop.f32.mrb[0].mxu0
    %v230 = vadd.f32 0.0, %v229
    %v231 = vpop.f32.mrb[0].mxu0
    %232 = vmatprep.mubr.bf16.mxu0 0
    %233 = vmatmul.mubr.bf16.gmra.mrb[0].mxu0 %v172
    %v234 = vpop.f32.mrb[0].mxu0
    %v235 = vadd.f32 0.0, %v234
    %v236 = vpop.f32.mrb[0].mxu0
    %v237 = vpop.f32.mrb[0].mxu0
    %v238 = vadd.f32 0.0, %v237
    %v239 = vpop.f32.mrb[0].mxu0
    %240 = vmatprep.mubr.bf16.mxu0 0
    %241 = vmatmul.mubr.bf16.gmra.mrb[0].mxu0 %v175
    %v242 = vpop.f32.mrb[0].mxu0
    %v243 = vadd.f32 0.0, %v242
    %v244 = vpop.f32.mrb[0].mxu0
    %v245 = vpop.f32.mrb[0].mxu0
    %v246 = vadd.f32 0.0, %v245
    %v247 = vpop.f32.mrb[0].mxu0
    %248 = vmatprep.mubr.bf16.mxu0 0
    %249 = vmatmul.mubr.bf16.gmra.mrb[0].mxu0 %v178
    %v250 = vpop.f32.mrb[0].mxu0
    %v251 = vadd.f32 0.0, %v250
    %v252 = vpop.f32.mrb[0].mxu0
    %v253 = vpop.f32.mrb[0].mxu0
    %v254 = vadd.f32 0.0, %v253
    %v255 = vpop.f32.mrb[0].mxu0
    %256 = vmatprep.mubr.bf16.mxu0 0
    %257 = vmatmul.mubr.bf16.gmra.mrb[0].mxu0 %v181
    %v258 = vpop.f32.mrb[0].mxu0
    %v259 = vadd.f32 0.0, %v258
    %v260 = vpop.f32.mrb[0].mxu0
    %v261 = vpop.f32.mrb[0].mxu0
    %v262 = vadd.f32 0.0, %v261
    %v263 = vpop.f32.mrb[0].mxu0
    %264 = vmatprep.mubr.bf16.mxu0 0
    %265 = vmatmul.mubr.bf16.gmra.mrb[0].mxu0 %v184
    %v266 = vpop.f32.mrb[0].mxu0
    %v267 = vadd.f32 0.0, %v266
    %v268 = vpop.f32.mrb[0].mxu0
    %v269 = vpop.f32.mrb[0].mxu0
    %v270 = vadd.f32 0.0, %v269
    %v271 = vpop.f32.mrb[0].mxu0
    %272 = vmatprep.mubr.bf16.mxu0 0
    %273 = vmatmul.mubr.bf16.gmra.mrb[0].mxu0 %v187
    %v274 = vpop.f32.mrb[0].mxu0
    %v275 = vadd.f32 0.0, %v274
    %v276 = vpop.f32.mrb[0].mxu0
    %v277 = vpop.f32.mrb[0].mxu0
    %v278 = vadd.f32 0.0, %v277
    %v279 = vpop.f32.mrb[0].mxu0
    %280 = vmatprep.mubr.bf16.mxu0 0
    %281 = vmatmul.mubr.bf16.gmra.mrb[0].mxu0 %v190
    %v282 = vpop.f32.mrb[0].mxu0
    %v283 = vadd.f32 0.0, %v282
    %v284 = vpop.f32.mrb[0].mxu0
    %v285 = vpop.f32.mrb[0].mxu0
    %v286 = vadd.f32 0.0, %v285
    %v287 = vpop.f32.mrb[0].mxu0
    %288 = vdwg.mxu0
    %v291 = vunpack.c.l.b16 %v98
    %v292 = vunpack.c.l.b16 %v99
    %v293 = vpack.c.b16 %v292, %v291
    %295 = vmatprep.subr.bf16.mxu0 0
    %296 = vmatpush1.bf16.msra.mxu0 %v293
    %297 = vmatprep.subr.bf16.mxu0 0
    %298 = vmatpush1.bf16.msra.mxu0 0
    %299 = vmatprep.subr.bf16.mxu0 0
    %300 = vmatpush1.bf16.msra.mxu0 0
    %301 = vmatprep.subr.bf16.mxu0 0
    %302 = vmatpush1.bf16.msra.mxu0 0
    %303 = vmatprep.subr.bf16.mxu0 0
    %304 = vmatpush1.bf16.msra.mxu0 0
    %305 = vmatprep.subr.bf16.mxu0 0
    %306 = vmatpush1.bf16.msra.mxu0 0
    %307 = vmatprep.subr.bf16.mxu0 0
    %308 = vmatpush1.bf16.msra.mxu0 0
    %309 = vmatprep.subr.bf16.mxu0 0
    %310 = vmatpush1.bf16.msra.mxu0 0
    %311 = vmatprep.subr.bf16.mxu0 0
    %312 = vmatpush1.bf16.msra.mxu0 0
    %313 = vmatprep.subr.bf16.mxu0 0
    %314 = vmatpush1.bf16.msra.mxu0 0
    %315 = vmatprep.subr.bf16.mxu0 0
    %316 = vmatpush1.bf16.msra.mxu0 0
    %317 = vmatprep.subr.bf16.mxu0 0
    %318 = vmatpush1.bf16.msra.mxu0 0
    %319 = vmatprep.subr.bf16.mxu0 0
    %320 = vmatpush1.bf16.msra.mxu0 0
    %321 = vmatprep.subr.bf16.mxu0 0
    %322 = vmatpush1.bf16.msra.mxu0 0
    %323 = vmatprep.subr.bf16.mxu0 0
    %324 = vmatpush1.bf16.msra.mxu0 0
    %325 = vmatprep.subr.bf16.mxu0 0
    %326 = vmatpush1.bf16.msra.mxu0 0
    %327 = vmatprep.mubr.bf16.mxu0 0
    %328 = vmatmul.mubr.bf16.gmra.mrb[0].mxu0 %v169
    %v329 = vpop.f32.mrb[0].mxu0
    %v330 = vadd.f32 0.0, %v329
    %v331 = vpop.f32.mrb[0].mxu0
    %v332 = vpop.f32.mrb[0].mxu0
    %v333 = vadd.f32 0.0, %v332
    %v334 = vpop.f32.mrb[0].mxu0
    %335 = vmatprep.mubr.bf16.mxu0 0
    %336 = vmatmul.mubr.bf16.gmra.mrb[0].mxu0 %v172
    %v337 = vpop.f32.mrb[0].mxu0
    %v338 = vadd.f32 0.0, %v337
    %v339 = vpop.f32.mrb[0].mxu0
    %v340 = vpop.f32.mrb[0].mxu0
    %v341 = vadd.f32 0.0, %v340
    %v342 = vpop.f32.mrb[0].mxu0
    %343 = vmatprep.mubr.bf16.mxu0 0
    %344 = vmatmul.mubr.bf16.gmra.mrb[0].mxu0 %v175
    %v345 = vpop.f32.mrb[0].mxu0
    %v346 = vadd.f32 0.0, %v345
    %v347 = vpop.f32.mrb[0].mxu0
    %v348 = vpop.f32.mrb[0].mxu0
    %v349 = vadd.f32 0.0, %v348
    %v350 = vpop.f32.mrb[0].mxu0
    %351 = vmatprep.mubr.bf16.mxu0 0
    %352 = vmatmul.mubr.bf16.gmra.mrb[0].mxu0 %v178
    %v353 = vpop.f32.mrb[0].mxu0
    %v354 = vadd.f32 0.0, %v353
    %v355 = vpop.f32.mrb[0].mxu0
    %v356 = vpop.f32.mrb[0].mxu0
    %v357 = vadd.f32 0.0, %v356
    %v358 = vpop.f32.mrb[0].mxu0
    %359 = vmatprep.mubr.bf16.mxu0 0
    %360 = vmatmul.mubr.bf16.gmra.mrb[0].mxu0 %v181
    %v361 = vpop.f32.mrb[0].mxu0
    %v362 = vadd.f32 0.0, %v361
    %v363 = vpop.f32.mrb[0].mxu0
    %v364 = vpop.f32.mrb[0].mxu0
    %v365 = vadd.f32 0.0, %v364
    %v366 = vpop.f32.mrb[0].mxu0
    %367 = vmatprep.mubr.bf16.mxu0 0
    %368 = vmatmul.mubr.bf16.gmra.mrb[0].mxu0 %v184
    %v369 = vpop.f32.mrb[0].mxu0
    %v370 = vadd.f32 0.0, %v369
    %v371 = vpop.f32.mrb[0].mxu0
    %v372 = vpop.f32.mrb[0].mxu0
    %v373 = vadd.f32 0.0, %v372
    %v374 = vpop.f32.mrb[0].mxu0
    %375 = vmatprep.mubr.bf16.mxu0 0
    %376 = vmatmul.mubr.bf16.gmra.mrb[0].mxu0 %v187
    %v377 = vpop.f32.mrb[0].mxu0
    %v378 = vadd.f32 0.0, %v377
    %v379 = vpop.f32.mrb[0].mxu0
    %v380 = vpop.f32.mrb[0].mxu0
    %v381 = vadd.f32 0.0, %v380
    %v382 = vpop.f32.mrb[0].mxu0
    %383 = vmatprep.mubr.bf16.mxu0 0
    %384 = vmatmul.mubr.bf16.gmra.mrb[0].mxu0 %v190
    %v385 = vpop.f32.mrb[0].mxu0
    %v386 = vadd.f32 0.0, %v385
    %v387 = vpop.f32.mrb[0].mxu0
    %v388 = vpop.f32.mrb[0].mxu0
    %v389 = vadd.f32 0.0, %v388
    %v390 = vpop.f32.mrb[0].mxu0
    %391 = vdwg.mxu0
    %v392 = vpack.c.bf16 %v230, %v227
    %v393 = vpack.c.bf16 %v238, %v235
    %v394 = vpack.c.bf16 %v246, %v243
    %v395 = vpack.c.bf16 %v254, %v251
    %v396 = vpack.c.bf16 %v262, %v259
    %v397 = vpack.c.bf16 %v270, %v267
    %v398 = vpack.c.bf16 %v278, %v275
    %v399 = vpack.c.bf16 %v286, %v283
    %v400 = vpack.c.bf16 %v333, %v330
    %v401 = vpack.c.bf16 %v341, %v338
    %v402 = vpack.c.bf16 %v349, %v346
    %v403 = vpack.c.bf16 %v357, %v354
    %v404 = vpack.c.bf16 %v365, %v362
    %v405 = vpack.c.bf16 %v373, %v370
    %v406 = vpack.c.bf16 %v381, %v378
    %v407 = vpack.c.bf16 %v389, %v386
    %v410 = vunpack.c.l.b16 %v100
    %v411 = vunpack.c.l.b16 %v101
    %v412 = vpack.c.b16 %v411, %v410
    %v414 = vsel %vm167, %v412, 0
    %416 = vmatprep.subr.bf16.mxu0 0
    %417 = vmatpush1.bf16.msra.mxu0 %v392
    %418 = vmatprep.subr.bf16.mxu0 0
    %419 = vmatpush1.bf16.msra.mxu0 0
    %420 = vmatprep.subr.bf16.mxu0 0
    %421 = vmatpush1.bf16.msra.mxu0 0
    %422 = vmatprep.subr.bf16.mxu0 0
    %423 = vmatpush1.bf16.msra.mxu0 0
    %424 = vmatprep.subr.bf16.mxu0 0
    %425 = vmatpush1.bf16.msra.mxu0 0
    %426 = vmatprep.subr.bf16.mxu0 0
    %427 = vmatpush1.bf16.msra.mxu0 0
    %428 = vmatprep.subr.bf16.mxu0 0
    %429 = vmatpush1.bf16.msra.mxu0 0
    %430 = vmatprep.subr.bf16.mxu0 0
    %431 = vmatpush1.bf16.msra.mxu0 0
    %432 = vmatprep.subr.bf16.mxu0 0
    %433 = vmatpush1.bf16.msra.mxu0 0
    %434 = vmatprep.subr.bf16.mxu0 0
    %435 = vmatpush1.bf16.msra.mxu0 0
    %436 = vmatprep.subr.bf16.mxu0 0
    %437 = vmatpush1.bf16.msra.mxu0 0
    %438 = vmatprep.subr.bf16.mxu0 0
    %439 = vmatpush1.bf16.msra.mxu0 0
    %440 = vmatprep.subr.bf16.mxu0 0
    %441 = vmatpush1.bf16.msra.mxu0 0
    %442 = vmatprep.subr.bf16.mxu0 0
    %443 = vmatpush1.bf16.msra.mxu0 0
    %444 = vmatprep.subr.bf16.mxu0 0
    %445 = vmatpush1.bf16.msra.mxu0 0
    %446 = vmatprep.subr.bf16.mxu0 0
    %447 = vmatpush1.bf16.msra.mxu0 0
    %448 = vmatprep.mubr.bf16.mxu0 0
    %449 = vmatmul.mubr.bf16.gmra.mrb[0].mxu0 %v414
    %v450 = vpop.f32.mrb[0].mxu0
    %v451 = vadd.f32 0.0, %v450
    %v452 = vpop.f32.mrb[0].mxu0
    %v453 = vpop.f32.mrb[0].mxu0
    %v454 = vadd.f32 0.0, %v453
    %v455 = vpop.f32.mrb[0].mxu0
    %456 = vdwg.mxu0
    %v459 = vunpack.c.l.b16 %v102
    %v460 = vunpack.c.l.b16 %v103
    %v461 = vpack.c.b16 %v460, %v459
    %v463 = vsel %vm167, %v461, 0
    %465 = vmatprep.subr.bf16.mxu0 0
    %466 = vmatpush1.bf16.msra.mxu0 %v400
    %467 = vmatprep.subr.bf16.mxu0 0
    %468 = vmatpush1.bf16.msra.mxu0 0
    %469 = vmatprep.subr.bf16.mxu0 0
    %470 = vmatpush1.bf16.msra.mxu0 0
    %471 = vmatprep.subr.bf16.mxu0 0
    %472 = vmatpush1.bf16.msra.mxu0 0
    %473 = vmatprep.subr.bf16.mxu0 0
    %474 = vmatpush1.bf16.msra.mxu0 0
    %475 = vmatprep.subr.bf16.mxu0 0
    %476 = vmatpush1.bf16.msra.mxu0 0
    %477 = vmatprep.subr.bf16.mxu0 0
    %478 = vmatpush1.bf16.msra.mxu0 0
    %479 = vmatprep.subr.bf16.mxu0 0
    %480 = vmatpush1.bf16.msra.mxu0 0
    %481 = vmatprep.subr.bf16.mxu0 0
    %482 = vmatpush1.bf16.msra.mxu0 0
    %483 = vmatprep.subr.bf16.mxu0 0
    %484 = vmatpush1.bf16.msra.mxu0 0
    %485 = vmatprep.subr.bf16.mxu0 0
    %486 = vmatpush1.bf16.msra.mxu0 0
    %487 = vmatprep.subr.bf16.mxu0 0
    %488 = vmatpush1.bf16.msra.mxu0 0
    %489 = vmatprep.subr.bf16.mxu0 0
    %490 = vmatpush1.bf16.msra.mxu0 0
    %491 = vmatprep.subr.bf16.mxu0 0
    %492 = vmatpush1.bf16.msra.mxu0 0
    %493 = vmatprep.subr.bf16.mxu0 0
    %494 = vmatpush1.bf16.msra.mxu0 0
    %495 = vmatprep.subr.bf16.mxu0 0
    %496 = vmatpush1.bf16.msra.mxu0 0
    %497 = vmatprep.mubr.bf16.mxu0 0
    %498 = vmatmul.mubr.bf16.gmra.mrb[0].mxu0 %v463
    %v499 = vpop.f32.mrb[0].mxu0
    %v500 = vadd.f32 0.0, %v499
    %v501 = vpop.f32.mrb[0].mxu0
    %v502 = vpop.f32.mrb[0].mxu0
    %v503 = vadd.f32 0.0, %v502
    %v504 = vpop.f32.mrb[0].mxu0
    %505 = vdwg.mxu0
    %v506 = vsub.f32 %v451, %v500
    %v507 = vsub.f32 %v454, %v503
    %v508 = vmul.f32 %v506, %v506
    %v509 = vmul.f32 %v507, %v507
    %v510 = vsel %vm167, %v508, 0.0
    %v511 = vsel %vm167, %v509, 0.0
    %v512 = vadd.f32 %v510, %v511
    %513 = vadd.xlane.f32.xlu0 %v512
    %v514 = vpop.xlane.xlu0 %513
    %v515 = vrot.slane %v514, 4
    %v516 = vadd.f32 %v514, %v515
    %v517 = vrot.slane %v516, 2
    %v518 = vadd.f32 %v516, %v517
    %v519 = vrot.slane %v518, 1
    %v520 = vadd.f32 %v518, %v519
    %s521 = vtos %v520
    %s522 = sld [smem:[#allocation11 + %s104]]
    %s523 = sadd.f32 %s521, 2.56e-10
    %v524 = vstv %s523
    %v525 = vrsqrt.pop %v524
    %s526 = vtos %v525
    %s527 = smul.f32 %s522, %s526
    %v528 = vld [vmem:[#allocation2] sm:$0xff]
    %v529 = vld [vmem:[#allocation2 + $0x8] sm:$0xff]
    %v530 = vstv %s527
    %v531 = vmul.f32 %v530, %v506
    %v532 = vmul.f32 %v530, %v507
    %v533 = vadd.f32 %v528, %v531
    %v534 = vadd.f32 %v529, %v532
    %v535 = vmax.f32 %v533, 0.0
    %v536 = vmax.f32 %v534, 0.0
    %v537 = vmin.f32 %v535, 1.0
    %v538 = vmin.f32 %v536, 1.0
    %539 = vst.msk [vmem:[#allocation12] sm:$0xff] %vm167, %v537
    %540 = vst.msk [vmem:[#allocation12 + $0x8] sm:$0xff] %vm167, %v538
    %541 = vmatprep.subr.bf16.mxu0 0
    %542 = vmatpush1.bf16.msra.mxu0 %v393
    %543 = vmatprep.subr.bf16.mxu0 0
    %544 = vmatpush1.bf16.msra.mxu0 0
    %545 = vmatprep.subr.bf16.mxu0 0
    %546 = vmatpush1.bf16.msra.mxu0 0
    %547 = vmatprep.subr.bf16.mxu0 0
    %548 = vmatpush1.bf16.msra.mxu0 0
    %549 = vmatprep.subr.bf16.mxu0 0
    %550 = vmatpush1.bf16.msra.mxu0 0
    %551 = vmatprep.subr.bf16.mxu0 0
    %552 = vmatpush1.bf16.msra.mxu0 0
    %553 = vmatprep.subr.bf16.mxu0 0
    %554 = vmatpush1.bf16.msra.mxu0 0
    %555 = vmatprep.subr.bf16.mxu0 0
    %556 = vmatpush1.bf16.msra.mxu0 0
    %557 = vmatprep.subr.bf16.mxu0 0
    %558 = vmatpush1.bf16.msra.mxu0 0
    %559 = vmatprep.subr.bf16.mxu0 0
    %560 = vmatpush1.bf16.msra.mxu0 0
    %561 = vmatprep.subr.bf16.mxu0 0
    %562 = vmatpush1.bf16.msra.mxu0 0
    %563 = vmatprep.subr.bf16.mxu0 0
    %564 = vmatpush1.bf16.msra.mxu0 0
    %565 = vmatprep.subr.bf16.mxu0 0
    %566 = vmatpush1.bf16.msra.mxu0 0
    %567 = vmatprep.subr.bf16.mxu0 0
    %568 = vmatpush1.bf16.msra.mxu0 0
    %569 = vmatprep.subr.bf16.mxu0 0
    %570 = vmatpush1.bf16.msra.mxu0 0
    %571 = vmatprep.subr.bf16.mxu0 0
    %572 = vmatpush1.bf16.msra.mxu0 0
    %573 = vmatprep.mubr.bf16.mxu0 0
    %574 = vmatmul.mubr.bf16.gmra.mrb[0].mxu0 %v414
    %v575 = vpop.f32.mrb[0].mxu0
    %v576 = vadd.f32 0.0, %v575
    %v577 = vpop.f32.mrb[0].mxu0
    %v578 = vpop.f32.mrb[0].mxu0
    %v579 = vadd.f32 0.0, %v578
    %v580 = vpop.f32.mrb[0].mxu0
    %581 = vdwg.mxu0
    %582 = vmatprep.subr.bf16.mxu0 0
    %583 = vmatpush1.bf16.msra.mxu0 %v401
    %584 = vmatprep.subr.bf16.mxu0 0
    %585 = vmatpush1.bf16.msra.mxu0 0
    %586 = vmatprep.subr.bf16.mxu0 0
    %587 = vmatpush1.bf16.msra.mxu0 0
    %588 = vmatprep.subr.bf16.mxu0 0
    %589 = vmatpush1.bf16.msra.mxu0 0
    %590 = vmatprep.subr.bf16.mxu0 0
    %591 = vmatpush1.bf16.msra.mxu0 0
    %592 = vmatprep.subr.bf16.mxu0 0
    %593 = vmatpush1.bf16.msra.mxu0 0
    %594 = vmatprep.subr.bf16.mxu0 0
    %595 = vmatpush1.bf16.msra.mxu0 0
    %596 = vmatprep.subr.bf16.mxu0 0
    %597 = vmatpush1.bf16.msra.mxu0 0
    %598 = vmatprep.subr.bf16.mxu0 0
    %599 = vmatpush1.bf16.msra.mxu0 0
    %600 = vmatprep.subr.bf16.mxu0 0
    %601 = vmatpush1.bf16.msra.mxu0 0
    %602 = vmatprep.subr.bf16.mxu0 0
    %603 = vmatpush1.bf16.msra.mxu0 0
    %604 = vmatprep.subr.bf16.mxu0 0
    %605 = vmatpush1.bf16.msra.mxu0 0
    %606 = vmatprep.subr.bf16.mxu0 0
    %607 = vmatpush1.bf16.msra.mxu0 0
    %608 = vmatprep.subr.bf16.mxu0 0
    %609 = vmatpush1.bf16.msra.mxu0 0
    %610 = vmatprep.subr.bf16.mxu0 0
    %611 = vmatpush1.bf16.msra.mxu0 0
    %612 = vmatprep.subr.bf16.mxu0 0
    %613 = vmatpush1.bf16.msra.mxu0 0
    %614 = vmatprep.mubr.bf16.mxu0 0
    %615 = vmatmul.mubr.bf16.gmra.mrb[0].mxu0 %v463
    %v616 = vpop.f32.mrb[0].mxu0
    %v617 = vadd.f32 0.0, %v616
    %v618 = vpop.f32.mrb[0].mxu0
    %v619 = vpop.f32.mrb[0].mxu0
    %v620 = vadd.f32 0.0, %v619
    %v621 = vpop.f32.mrb[0].mxu0
    %622 = vdwg.mxu0
    %v623 = vsub.f32 %v576, %v617
    %v624 = vsub.f32 %v579, %v620
    %v625 = vmul.f32 %v623, %v623
    %v626 = vmul.f32 %v624, %v624
    %v627 = vsel %vm167, %v625, 0.0
    %v628 = vsel %vm167, %v626, 0.0
    %v629 = vadd.f32 %v627, %v628
    %630 = vadd.xlane.f32.xlu0 %v629
    %v631 = vpop.xlane.xlu0 %630
    %v632 = vrot.slane %v631, 4
    %v633 = vadd.f32 %v631, %v632
    %v634 = vrot.slane %v633, 2
    %v635 = vadd.f32 %v633, %v634
    %v636 = vrot.slane %v635, 1
    %v637 = vadd.f32 %v635, %v636
    %s638 = vtos %v637
    %s639 = sadd.s32 %s104, 1
    %s640 = sld [smem:[#allocation11 + %s639]]
    %s641 = sadd.f32 %s638, 2.56e-10
    %v642 = vstv %s641
    %v643 = vrsqrt.pop %v642
    %s644 = vtos %v643
    %s645 = smul.f32 %s640, %s644
    %s646 = scalar_lea.vmem [#allocation2], 16
    %v647 = vld [vmem:[%s646] sm:$0xff]
    %v648 = vld [vmem:[%s646 + $0x8] sm:$0xff]
    %v649 = vstv %s645
    %v650 = vmul.f32 %v649, %v623
    %v651 = vmul.f32 %v649, %v624
    %v652 = vadd.f32 %v647, %v650
    %v653 = vadd.f32 %v648, %v651
    %v654 = vmax.f32 %v652, 0.0
    %v655 = vmax.f32 %v653, 0.0
    %v656 = vmin.f32 %v654, 1.0
    %v657 = vmin.f32 %v655, 1.0
    %s658 = scalar_lea.vmem [#allocation12], 16
    %659 = vst.msk [vmem:[%s658] sm:$0xff] %vm167, %v656
    %660 = vst.msk [vmem:[%s658 + $0x8] sm:$0xff] %vm167, %v657
    %661 = vmatprep.subr.bf16.mxu0 0
    %662 = vmatpush1.bf16.msra.mxu0 %v394
    %663 = vmatprep.subr.bf16.mxu0 0
    %664 = vmatpush1.bf16.msra.mxu0 0
    %665 = vmatprep.subr.bf16.mxu0 0
    %666 = vmatpush1.bf16.msra.mxu0 0
    %667 = vmatprep.subr.bf16.mxu0 0
    %668 = vmatpush1.bf16.msra.mxu0 0
    %669 = vmatprep.subr.bf16.mxu0 0
    %670 = vmatpush1.bf16.msra.mxu0 0
    %671 = vmatprep.subr.bf16.mxu0 0
    %672 = vmatpush1.bf16.msra.mxu0 0
    %673 = vmatprep.subr.bf16.mxu0 0
    %674 = vmatpush1.bf16.msra.mxu0 0
    %675 = vmatprep.subr.bf16.mxu0 0
    %676 = vmatpush1.bf16.msra.mxu0 0
    %677 = vmatprep.subr.bf16.mxu0 0
    %678 = vmatpush1.bf16.msra.mxu0 0
    %679 = vmatprep.subr.bf16.mxu0 0
    %680 = vmatpush1.bf16.msra.mxu0 0
    %681 = vmatprep.subr.bf16.mxu0 0
    %682 = vmatpush1.bf16.msra.mxu0 0
    %683 = vmatprep.subr.bf16.mxu0 0
    %684 = vmatpush1.bf16.msra.mxu0 0
    %685 = vmatprep.subr.bf16.mxu0 0
    %686 = vmatpush1.bf16.msra.mxu0 0
    %687 = vmatprep.subr.bf16.mxu0 0
    %688 = vmatpush1.bf16.msra.mxu0 0
    %689 = vmatprep.subr.bf16.mxu0 0
    %690 = vmatpush1.bf16.msra.mxu0 0
    %691 = vmatprep.subr.bf16.mxu0 0
    %692 = vmatpush1.bf16.msra.mxu0 0
    %693 = vmatprep.mubr.bf16.mxu0 0
    %694 = vmatmul.mubr.bf16.gmra.mrb[0].mxu0 %v414
    %v695 = vpop.f32.mrb[0].mxu0
    %v696 = vadd.f32 0.0, %v695
    %v697 = vpop.f32.mrb[0].mxu0
    %v698 = vpop.f32.mrb[0].mxu0
    %v699 = vadd.f32 0.0, %v698
    %v700 = vpop.f32.mrb[0].mxu0
    %701 = vdwg.mxu0
    %702 = vmatprep.subr.bf16.mxu0 0
    %703 = vmatpush1.bf16.msra.mxu0 %v402
    %704 = vmatprep.subr.bf16.mxu0 0
    %705 = vmatpush1.bf16.msra.mxu0 0
    %706 = vmatprep.subr.bf16.mxu0 0
    %707 = vmatpush1.bf16.msra.mxu0 0
    %708 = vmatprep.subr.bf16.mxu0 0
    %709 = vmatpush1.bf16.msra.mxu0 0
    %710 = vmatprep.subr.bf16.mxu0 0
    %711 = vmatpush1.bf16.msra.mxu0 0
    %712 = vmatprep.subr.bf16.mxu0 0
    %713 = vmatpush1.bf16.msra.mxu0 0
    %714 = vmatprep.subr.bf16.mxu0 0
    %715 = vmatpush1.bf16.msra.mxu0 0
    %716 = vmatprep.subr.bf16.mxu0 0
    %717 = vmatpush1.bf16.msra.mxu0 0
    %718 = vmatprep.subr.bf16.mxu0 0
    %719 = vmatpush1.bf16.msra.mxu0 0
    %720 = vmatprep.subr.bf16.mxu0 0
    %721 = vmatpush1.bf16.msra.mxu0 0
    %722 = vmatprep.subr.bf16.mxu0 0
    %723 = vmatpush1.bf16.msra.mxu0 0
    %724 = vmatprep.subr.bf16.mxu0 0
    %725 = vmatpush1.bf16.msra.mxu0 0
    %726 = vmatprep.subr.bf16.mxu0 0
    %727 = vmatpush1.bf16.msra.mxu0 0
    %728 = vmatprep.subr.bf16.mxu0 0
    %729 = vmatpush1.bf16.msra.mxu0 0
    %730 = vmatprep.subr.bf16.mxu0 0
    %731 = vmatpush1.bf16.msra.mxu0 0
    %732 = vmatprep.subr.bf16.mxu0 0
    %733 = vmatpush1.bf16.msra.mxu0 0
    %734 = vmatprep.mubr.bf16.mxu0 0
    %735 = vmatmul.mubr.bf16.gmra.mrb[0].mxu0 %v463
    %v736 = vpop.f32.mrb[0].mxu0
    %v737 = vadd.f32 0.0, %v736
    %v738 = vpop.f32.mrb[0].mxu0
    %v739 = vpop.f32.mrb[0].mxu0
    %v740 = vadd.f32 0.0, %v739
    %v741 = vpop.f32.mrb[0].mxu0
    %742 = vdwg.mxu0
    %v743 = vsub.f32 %v696, %v737
    %v744 = vsub.f32 %v699, %v740
    %v745 = vmul.f32 %v743, %v743
    %v746 = vmul.f32 %v744, %v744
    %v747 = vsel %vm167, %v745, 0.0
    %v748 = vsel %vm167, %v746, 0.0
    %v749 = vadd.f32 %v747, %v748
    %750 = vadd.xlane.f32.xlu0 %v749
    %v751 = vpop.xlane.xlu0 %750
    %v752 = vrot.slane %v751, 4
    %v753 = vadd.f32 %v751, %v752
    %v754 = vrot.slane %v753, 2
    %v755 = vadd.f32 %v753, %v754
    %v756 = vrot.slane %v755, 1
    %v757 = vadd.f32 %v755, %v756
    %s758 = vtos %v757
    %s759 = sadd.s32 %s104, 2
    %s760 = sld [smem:[#allocation11 + %s759]]
    %s761 = sadd.f32 %s758, 2.56e-10
    %v762 = vstv %s761
    %v763 = vrsqrt.pop %v762
    %s764 = vtos %v763
    %s765 = smul.f32 %s760, %s764
    %s766 = scalar_lea.vmem [#allocation2], 32
    %v767 = vld [vmem:[%s766] sm:$0xff]
    %v768 = vld [vmem:[%s766 + $0x8] sm:$0xff]
    %v769 = vstv %s765
    %v770 = vmul.f32 %v769, %v743
    %v771 = vmul.f32 %v769, %v744
    %v772 = vadd.f32 %v767, %v770
    %v773 = vadd.f32 %v768, %v771
    %v774 = vmax.f32 %v772, 0.0
    %v775 = vmax.f32 %v773, 0.0
    %v776 = vmin.f32 %v774, 1.0
    %v777 = vmin.f32 %v775, 1.0
    %s778 = scalar_lea.vmem [#allocation12], 32
    %779 = vst.msk [vmem:[%s778] sm:$0xff] %vm167, %v776
    %780 = vst.msk [vmem:[%s778 + $0x8] sm:$0xff] %vm167, %v777
    %781 = vmatprep.subr.bf16.mxu0 0
    %782 = vmatpush1.bf16.msra.mxu0 %v395
    %783 = vmatprep.subr.bf16.mxu0 0
    %784 = vmatpush1.bf16.msra.mxu0 0
    %785 = vmatprep.subr.bf16.mxu0 0
    %786 = vmatpush1.bf16.msra.mxu0 0
    %787 = vmatprep.subr.bf16.mxu0 0
    %788 = vmatpush1.bf16.msra.mxu0 0
    %789 = vmatprep.subr.bf16.mxu0 0
    %790 = vmatpush1.bf16.msra.mxu0 0
    %791 = vmatprep.subr.bf16.mxu0 0
    %792 = vmatpush1.bf16.msra.mxu0 0
    %793 = vmatprep.subr.bf16.mxu0 0
    %794 = vmatpush1.bf16.msra.mxu0 0
    %795 = vmatprep.subr.bf16.mxu0 0
    %796 = vmatpush1.bf16.msra.mxu0 0
    %797 = vmatprep.subr.bf16.mxu0 0
    %798 = vmatpush1.bf16.msra.mxu0 0
    %799 = vmatprep.subr.bf16.mxu0 0
    %800 = vmatpush1.bf16.msra.mxu0 0
    %801 = vmatprep.subr.bf16.mxu0 0
    %802 = vmatpush1.bf16.msra.mxu0 0
    %803 = vmatprep.subr.bf16.mxu0 0
    %804 = vmatpush1.bf16.msra.mxu0 0
    %805 = vmatprep.subr.bf16.mxu0 0
    %806 = vmatpush1.bf16.msra.mxu0 0
    %807 = vmatprep.subr.bf16.mxu0 0
    %808 = vmatpush1.bf16.msra.mxu0 0
    %809 = vmatprep.subr.bf16.mxu0 0
    %810 = vmatpush1.bf16.msra.mxu0 0
    %811 = vmatprep.subr.bf16.mxu0 0
    %812 = vmatpush1.bf16.msra.mxu0 0
    %813 = vmatprep.mubr.bf16.mxu0 0
    %814 = vmatmul.mubr.bf16.gmra.mrb[0].mxu0 %v414
    %v815 = vpop.f32.mrb[0].mxu0
    %v816 = vadd.f32 0.0, %v815
    %v817 = vpop.f32.mrb[0].mxu0
    %v818 = vpop.f32.mrb[0].mxu0
    %v819 = vadd.f32 0.0, %v818
    %v820 = vpop.f32.mrb[0].mxu0
    %821 = vdwg.mxu0
    %822 = vmatprep.subr.bf16.mxu0 0
    %823 = vmatpush1.bf16.msra.mxu0 %v403
    %824 = vmatprep.subr.bf16.mxu0 0
    %825 = vmatpush1.bf16.msra.mxu0 0
    %826 = vmatprep.subr.bf16.mxu0 0
    %827 = vmatpush1.bf16.msra.mxu0 0
    %828 = vmatprep.subr.bf16.mxu0 0
    %829 = vmatpush1.bf16.msra.mxu0 0
    %830 = vmatprep.subr.bf16.mxu0 0
    %831 = vmatpush1.bf16.msra.mxu0 0
    %832 = vmatprep.subr.bf16.mxu0 0
    %833 = vmatpush1.bf16.msra.mxu0 0
    %834 = vmatprep.subr.bf16.mxu0 0
    %835 = vmatpush1.bf16.msra.mxu0 0
    %836 = vmatprep.subr.bf16.mxu0 0
    %837 = vmatpush1.bf16.msra.mxu0 0
    %838 = vmatprep.subr.bf16.mxu0 0
    %839 = vmatpush1.bf16.msra.mxu0 0
    %840 = vmatprep.subr.bf16.mxu0 0
    %841 = vmatpush1.bf16.msra.mxu0 0
    %842 = vmatprep.subr.bf16.mxu0 0
    %843 = vmatpush1.bf16.msra.mxu0 0
    %844 = vmatprep.subr.bf16.mxu0 0
    %845 = vmatpush1.bf16.msra.mxu0 0
    %846 = vmatprep.subr.bf16.mxu0 0
    %847 = vmatpush1.bf16.msra.mxu0 0
    %848 = vmatprep.subr.bf16.mxu0 0
    %849 = vmatpush1.bf16.msra.mxu0 0
    %850 = vmatprep.subr.bf16.mxu0 0
    %851 = vmatpush1.bf16.msra.mxu0 0
    %852 = vmatprep.subr.bf16.mxu0 0
    %853 = vmatpush1.bf16.msra.mxu0 0
    %854 = vmatprep.mubr.bf16.mxu0 0
    %855 = vmatmul.mubr.bf16.gmra.mrb[0].mxu0 %v463
    %v856 = vpop.f32.mrb[0].mxu0
    %v857 = vadd.f32 0.0, %v856
    %v858 = vpop.f32.mrb[0].mxu0
    %v859 = vpop.f32.mrb[0].mxu0
    %v860 = vadd.f32 0.0, %v859
    %v861 = vpop.f32.mrb[0].mxu0
    %862 = vdwg.mxu0
    %v863 = vsub.f32 %v816, %v857
    %v864 = vsub.f32 %v819, %v860
    %v865 = vmul.f32 %v863, %v863
    %v866 = vmul.f32 %v864, %v864
    %v867 = vsel %vm167, %v865, 0.0
    %v868 = vsel %vm167, %v866, 0.0
    %v869 = vadd.f32 %v867, %v868
    %870 = vadd.xlane.f32.xlu0 %v869
    %v871 = vpop.xlane.xlu0 %870
    %v872 = vrot.slane %v871, 4
    %v873 = vadd.f32 %v871, %v872
    %v874 = vrot.slane %v873, 2
    %v875 = vadd.f32 %v873, %v874
    %v876 = vrot.slane %v875, 1
    %v877 = vadd.f32 %v875, %v876
    %s878 = vtos %v877
    %s879 = sadd.s32 %s104, 3
    %s880 = sld [smem:[#allocation11 + %s879]]
    %s881 = sadd.f32 %s878, 2.56e-10
    %v882 = vstv %s881
    %v883 = vrsqrt.pop %v882
    %s884 = vtos %v883
    %s885 = smul.f32 %s880, %s884
    %s886 = scalar_lea.vmem [#allocation2], 48
    %v887 = vld [vmem:[%s886] sm:$0xff]
    %v888 = vld [vmem:[%s886 + $0x8] sm:$0xff]
    %v889 = vstv %s885
    %v890 = vmul.f32 %v889, %v863
    %v891 = vmul.f32 %v889, %v864
    %v892 = vadd.f32 %v887, %v890
    %v893 = vadd.f32 %v888, %v891
    %v894 = vmax.f32 %v892, 0.0
    %v895 = vmax.f32 %v893, 0.0
    %v896 = vmin.f32 %v894, 1.0
    %v897 = vmin.f32 %v895, 1.0
    %s898 = scalar_lea.vmem [#allocation12], 48
    %899 = vst.msk [vmem:[%s898] sm:$0xff] %vm167, %v896
    %900 = vst.msk [vmem:[%s898 + $0x8] sm:$0xff] %vm167, %v897
    %901 = vmatprep.subr.bf16.mxu0 0
    %902 = vmatpush1.bf16.msra.mxu0 %v396
    %903 = vmatprep.subr.bf16.mxu0 0
    %904 = vmatpush1.bf16.msra.mxu0 0
    %905 = vmatprep.subr.bf16.mxu0 0
    %906 = vmatpush1.bf16.msra.mxu0 0
    %907 = vmatprep.subr.bf16.mxu0 0
    %908 = vmatpush1.bf16.msra.mxu0 0
    %909 = vmatprep.subr.bf16.mxu0 0
    %910 = vmatpush1.bf16.msra.mxu0 0
    %911 = vmatprep.subr.bf16.mxu0 0
    %912 = vmatpush1.bf16.msra.mxu0 0
    %913 = vmatprep.subr.bf16.mxu0 0
    %914 = vmatpush1.bf16.msra.mxu0 0
    %915 = vmatprep.subr.bf16.mxu0 0
    %916 = vmatpush1.bf16.msra.mxu0 0
    %917 = vmatprep.subr.bf16.mxu0 0
    %918 = vmatpush1.bf16.msra.mxu0 0
    %919 = vmatprep.subr.bf16.mxu0 0
    %920 = vmatpush1.bf16.msra.mxu0 0
    %921 = vmatprep.subr.bf16.mxu0 0
    %922 = vmatpush1.bf16.msra.mxu0 0
    %923 = vmatprep.subr.bf16.mxu0 0
    %924 = vmatpush1.bf16.msra.mxu0 0
    %925 = vmatprep.subr.bf16.mxu0 0
    %926 = vmatpush1.bf16.msra.mxu0 0
    %927 = vmatprep.subr.bf16.mxu0 0
    %928 = vmatpush1.bf16.msra.mxu0 0
    %929 = vmatprep.subr.bf16.mxu0 0
    %930 = vmatpush1.bf16.msra.mxu0 0
    %931 = vmatprep.subr.bf16.mxu0 0
    %932 = vmatpush1.bf16.msra.mxu0 0
    %933 = vmatprep.mubr.bf16.mxu0 0
    %934 = vmatmul.mubr.bf16.gmra.mrb[0].mxu0 %v414
    %v935 = vpop.f32.mrb[0].mxu0
    %v936 = vadd.f32 0.0, %v935
    %v937 = vpop.f32.mrb[0].mxu0
    %v938 = vpop.f32.mrb[0].mxu0
    %v939 = vadd.f32 0.0, %v938
    %v940 = vpop.f32.mrb[0].mxu0
    %941 = vdwg.mxu0
    %942 = vmatprep.subr.bf16.mxu0 0
    %943 = vmatpush1.bf16.msra.mxu0 %v404
    %944 = vmatprep.subr.bf16.mxu0 0
    %945 = vmatpush1.bf16.msra.mxu0 0
    %946 = vmatprep.subr.bf16.mxu0 0
    %947 = vmatpush1.bf16.msra.mxu0 0
    %948 = vmatprep.subr.bf16.mxu0 0
    %949 = vmatpush1.bf16.msra.mxu0 0
    %950 = vmatprep.subr.bf16.mxu0 0
    %951 = vmatpush1.bf16.msra.mxu0 0
    %952 = vmatprep.subr.bf16.mxu0 0
    %953 = vmatpush1.bf16.msra.mxu0 0
    %954 = vmatprep.subr.bf16.mxu0 0
    %955 = vmatpush1.bf16.msra.mxu0 0
    %956 = vmatprep.subr.bf16.mxu0 0
    %957 = vmatpush1.bf16.msra.mxu0 0
    %958 = vmatprep.subr.bf16.mxu0 0
    %959 = vmatpush1.bf16.msra.mxu0 0
    %960 = vmatprep.subr.bf16.mxu0 0
    %961 = vmatpush1.bf16.msra.mxu0 0
    %962 = vmatprep.subr.bf16.mxu0 0
    %963 = vmatpush1.bf16.msra.mxu0 0
    %964 = vmatprep.subr.bf16.mxu0 0
    %965 = vmatpush1.bf16.msra.mxu0 0
    %966 = vmatprep.subr.bf16.mxu0 0
    %967 = vmatpush1.bf16.msra.mxu0 0
    %968 = vmatprep.subr.bf16.mxu0 0
    %969 = vmatpush1.bf16.msra.mxu0 0
    %970 = vmatprep.subr.bf16.mxu0 0
    %971 = vmatpush1.bf16.msra.mxu0 0
    %972 = vmatprep.subr.bf16.mxu0 0
    %973 = vmatpush1.bf16.msra.mxu0 0
    %974 = vmatprep.mubr.bf16.mxu0 0
    %975 = vmatmul.mubr.bf16.gmra.mrb[0].mxu0 %v463
    %v976 = vpop.f32.mrb[0].mxu0
    %v977 = vadd.f32 0.0, %v976
    %v978 = vpop.f32.mrb[0].mxu0
    %v979 = vpop.f32.mrb[0].mxu0
    %v980 = vadd.f32 0.0, %v979
    %v981 = vpop.f32.mrb[0].mxu0
    %982 = vdwg.mxu0
    %v983 = vsub.f32 %v936, %v977
    %v984 = vsub.f32 %v939, %v980
    %v985 = vmul.f32 %v983, %v983
    %v986 = vmul.f32 %v984, %v984
    %v987 = vsel %vm167, %v985, 0.0
    %v988 = vsel %vm167, %v986, 0.0
    %v989 = vadd.f32 %v987, %v988
    %990 = vadd.xlane.f32.xlu0 %v989
    %v991 = vpop.xlane.xlu0 %990
    %v992 = vrot.slane %v991, 4
    %v993 = vadd.f32 %v991, %v992
    %v994 = vrot.slane %v993, 2
    %v995 = vadd.f32 %v993, %v994
    %v996 = vrot.slane %v995, 1
    %v997 = vadd.f32 %v995, %v996
    %s998 = vtos %v997
    %s999 = sadd.s32 %s104, 4
    %s1000 = sld [smem:[#allocation11 + %s999]]
    %s1001 = sadd.f32 %s998, 2.56e-10
    %v1002 = vstv %s1001
    %v1003 = vrsqrt.pop %v1002
    %s1004 = vtos %v1003
    %s1005 = smul.f32 %s1000, %s1004
    %s1006 = scalar_lea.vmem [#allocation2], 64
    %v1007 = vld [vmem:[%s1006] sm:$0xff]
    %v1008 = vld [vmem:[%s1006 + $0x8] sm:$0xff]
    %v1009 = vstv %s1005
    %v1010 = vmul.f32 %v1009, %v983
    %v1011 = vmul.f32 %v1009, %v984
    %v1012 = vadd.f32 %v1007, %v1010
    %v1013 = vadd.f32 %v1008, %v1011
    %v1014 = vmax.f32 %v1012, 0.0
    %v1015 = vmax.f32 %v1013, 0.0
    %v1016 = vmin.f32 %v1014, 1.0
    %v1017 = vmin.f32 %v1015, 1.0
    %s1018 = scalar_lea.vmem [#allocation12], 64
    %1019 = vst.msk [vmem:[%s1018] sm:$0xff] %vm167, %v1016
    %1020 = vst.msk [vmem:[%s1018 + $0x8] sm:$0xff] %vm167, %v1017
    %1021 = vmatprep.subr.bf16.mxu0 0
    %1022 = vmatpush1.bf16.msra.mxu0 %v397
    %1023 = vmatprep.subr.bf16.mxu0 0
    %1024 = vmatpush1.bf16.msra.mxu0 0
    %1025 = vmatprep.subr.bf16.mxu0 0
    %1026 = vmatpush1.bf16.msra.mxu0 0
    %1027 = vmatprep.subr.bf16.mxu0 0
    %1028 = vmatpush1.bf16.msra.mxu0 0
    %1029 = vmatprep.subr.bf16.mxu0 0
    %1030 = vmatpush1.bf16.msra.mxu0 0
    %1031 = vmatprep.subr.bf16.mxu0 0
    %1032 = vmatpush1.bf16.msra.mxu0 0
    %1033 = vmatprep.subr.bf16.mxu0 0
    %1034 = vmatpush1.bf16.msra.mxu0 0
    %1035 = vmatprep.subr.bf16.mxu0 0
    %1036 = vmatpush1.bf16.msra.mxu0 0
    %1037 = vmatprep.subr.bf16.mxu0 0
    %1038 = vmatpush1.bf16.msra.mxu0 0
    %1039 = vmatprep.subr.bf16.mxu0 0
    %1040 = vmatpush1.bf16.msra.mxu0 0
    %1041 = vmatprep.subr.bf16.mxu0 0
    %1042 = vmatpush1.bf16.msra.mxu0 0
    %1043 = vmatprep.subr.bf16.mxu0 0
    %1044 = vmatpush1.bf16.msra.mxu0 0
    %1045 = vmatprep.subr.bf16.mxu0 0
    %1046 = vmatpush1.bf16.msra.mxu0 0
    %1047 = vmatprep.subr.bf16.mxu0 0
    %1048 = vmatpush1.bf16.msra.mxu0 0
    %1049 = vmatprep.subr.bf16.mxu0 0
    %1050 = vmatpush1.bf16.msra.mxu0 0
    %1051 = vmatprep.subr.bf16.mxu0 0
    %1052 = vmatpush1.bf16.msra.mxu0 0
    %1053 = vmatprep.mubr.bf16.mxu0 0
    %1054 = vmatmul.mubr.bf16.gmra.mrb[0].mxu0 %v414
    %v1055 = vpop.f32.mrb[0].mxu0
    %v1056 = vadd.f32 0.0, %v1055
    %v1057 = vpop.f32.mrb[0].mxu0
    %v1058 = vpop.f32.mrb[0].mxu0
    %v1059 = vadd.f32 0.0, %v1058
    %v1060 = vpop.f32.mrb[0].mxu0
    %1061 = vdwg.mxu0
    %1062 = vmatprep.subr.bf16.mxu0 0
    %1063 = vmatpush1.bf16.msra.mxu0 %v405
    %1064 = vmatprep.subr.bf16.mxu0 0
    %1065 = vmatpush1.bf16.msra.mxu0 0
    %1066 = vmatprep.subr.bf16.mxu0 0
    %1067 = vmatpush1.bf16.msra.mxu0 0
    %1068 = vmatprep.subr.bf16.mxu0 0
    %1069 = vmatpush1.bf16.msra.mxu0 0
    %1070 = vmatprep.subr.bf16.mxu0 0
    %1071 = vmatpush1.bf16.msra.mxu0 0
    %1072 = vmatprep.subr.bf16.mxu0 0
    %1073 = vmatpush1.bf16.msra.mxu0 0
    %1074 = vmatprep.subr.bf16.mxu0 0
    %1075 = vmatpush1.bf16.msra.mxu0 0
    %1076 = vmatprep.subr.bf16.mxu0 0
    %1077 = vmatpush1.bf16.msra.mxu0 0
    %1078 = vmatprep.subr.bf16.mxu0 0
    %1079 = vmatpush1.bf16.msra.mxu0 0
    %1080 = vmatprep.subr.bf16.mxu0 0
    %1081 = vmatpush1.bf16.msra.mxu0 0
    %1082 = vmatprep.subr.bf16.mxu0 0
    %1083 = vmatpush1.bf16.msra.mxu0 0
    %1084 = vmatprep.subr.bf16.mxu0 0
    %1085 = vmatpush1.bf16.msra.mxu0 0
    %1086 = vmatprep.subr.bf16.mxu0 0
    %1087 = vmatpush1.bf16.msra.mxu0 0
    %1088 = vmatprep.subr.bf16.mxu0 0
    %1089 = vmatpush1.bf16.msra.mxu0 0
    %1090 = vmatprep.subr.bf16.mxu0 0
    %1091 = vmatpush1.bf16.msra.mxu0 0
    %1092 = vmatprep.subr.bf16.mxu0 0
    %1093 = vmatpush1.bf16.msra.mxu0 0
    %1094 = vmatprep.mubr.bf16.mxu0 0
    %1095 = vmatmul.mubr.bf16.gmra.mrb[0].mxu0 %v463
    %v1096 = vpop.f32.mrb[0].mxu0
    %v1097 = vadd.f32 0.0, %v1096
    %v1098 = vpop.f32.mrb[0].mxu0
    %v1099 = vpop.f32.mrb[0].mxu0
    %v1100 = vadd.f32 0.0, %v1099
    %v1101 = vpop.f32.mrb[0].mxu0
    %1102 = vdwg.mxu0
    %v1103 = vsub.f32 %v1056, %v1097
    %v1104 = vsub.f32 %v1059, %v1100
    %v1105 = vmul.f32 %v1103, %v1103
    %v1106 = vmul.f32 %v1104, %v1104
    %v1107 = vsel %vm167, %v1105, 0.0
    %v1108 = vsel %vm167, %v1106, 0.0
    %v1109 = vadd.f32 %v1107, %v1108
    %1110 = vadd.xlane.f32.xlu0 %v1109
    %v1111 = vpop.xlane.xlu0 %1110
    %v1112 = vrot.slane %v1111, 4
    %v1113 = vadd.f32 %v1111, %v1112
    %v1114 = vrot.slane %v1113, 2
    %v1115 = vadd.f32 %v1113, %v1114
    %v1116 = vrot.slane %v1115, 1
    %v1117 = vadd.f32 %v1115, %v1116
    %s1118 = vtos %v1117
    %s1119 = sadd.s32 %s104, 5
    %s1120 = sld [smem:[#allocation11 + %s1119]]
    %s1121 = sadd.f32 %s1118, 2.56e-10
    %v1122 = vstv %s1121
    %v1123 = vrsqrt.pop %v1122
    %s1124 = vtos %v1123
    %s1125 = smul.f32 %s1120, %s1124
    %s1126 = scalar_lea.vmem [#allocation2], 80
    %v1127 = vld [vmem:[%s1126] sm:$0xff]
    %v1128 = vld [vmem:[%s1126 + $0x8] sm:$0xff]
    %v1129 = vstv %s1125
    %v1130 = vmul.f32 %v1129, %v1103
    %v1131 = vmul.f32 %v1129, %v1104
    %v1132 = vadd.f32 %v1127, %v1130
    %v1133 = vadd.f32 %v1128, %v1131
    %v1134 = vmax.f32 %v1132, 0.0
    %v1135 = vmax.f32 %v1133, 0.0
    %v1136 = vmin.f32 %v1134, 1.0
    %v1137 = vmin.f32 %v1135, 1.0
    %s1138 = scalar_lea.vmem [#allocation12], 80
    %1139 = vst.msk [vmem:[%s1138] sm:$0xff] %vm167, %v1136
    %1140 = vst.msk [vmem:[%s1138 + $0x8] sm:$0xff] %vm167, %v1137
    %1141 = vmatprep.subr.bf16.mxu0 0
    %1142 = vmatpush1.bf16.msra.mxu0 %v398
    %1143 = vmatprep.subr.bf16.mxu0 0
    %1144 = vmatpush1.bf16.msra.mxu0 0
    %1145 = vmatprep.subr.bf16.mxu0 0
    %1146 = vmatpush1.bf16.msra.mxu0 0
    %1147 = vmatprep.subr.bf16.mxu0 0
    %1148 = vmatpush1.bf16.msra.mxu0 0
    %1149 = vmatprep.subr.bf16.mxu0 0
    %1150 = vmatpush1.bf16.msra.mxu0 0
    %1151 = vmatprep.subr.bf16.mxu0 0
    %1152 = vmatpush1.bf16.msra.mxu0 0
    %1153 = vmatprep.subr.bf16.mxu0 0
    %1154 = vmatpush1.bf16.msra.mxu0 0
    %1155 = vmatprep.subr.bf16.mxu0 0
    %1156 = vmatpush1.bf16.msra.mxu0 0
    %1157 = vmatprep.subr.bf16.mxu0 0
    %1158 = vmatpush1.bf16.msra.mxu0 0
    %1159 = vmatprep.subr.bf16.mxu0 0
    %1160 = vmatpush1.bf16.msra.mxu0 0
    %1161 = vmatprep.subr.bf16.mxu0 0
    %1162 = vmatpush1.bf16.msra.mxu0 0
    %1163 = vmatprep.subr.bf16.mxu0 0
    %1164 = vmatpush1.bf16.msra.mxu0 0
    %1165 = vmatprep.subr.bf16.mxu0 0
    %1166 = vmatpush1.bf16.msra.mxu0 0
    %1167 = vmatprep.subr.bf16.mxu0 0
    %1168 = vmatpush1.bf16.msra.mxu0 0
    %1169 = vmatprep.subr.bf16.mxu0 0
    %1170 = vmatpush1.bf16.msra.mxu0 0
    %1171 = vmatprep.subr.bf16.mxu0 0
    %1172 = vmatpush1.bf16.msra.mxu0 0
    %1173 = vmatprep.mubr.bf16.mxu0 0
    %1174 = vmatmul.mubr.bf16.gmra.mrb[0].mxu0 %v414
    %v1175 = vpop.f32.mrb[0].mxu0
    %v1176 = vadd.f32 0.0, %v1175
    %v1177 = vpop.f32.mrb[0].mxu0
    %v1178 = vpop.f32.mrb[0].mxu0
    %v1179 = vadd.f32 0.0, %v1178
    %v1180 = vpop.f32.mrb[0].mxu0
    %1181 = vdwg.mxu0
    %1182 = vmatprep.subr.bf16.mxu0 0
    %1183 = vmatpush1.bf16.msra.mxu0 %v406
    %1184 = vmatprep.subr.bf16.mxu0 0
    %1185 = vmatpush1.bf16.msra.mxu0 0
    %1186 = vmatprep.subr.bf16.mxu0 0
    %1187 = vmatpush1.bf16.msra.mxu0 0
    %1188 = vmatprep.subr.bf16.mxu0 0
    %1189 = vmatpush1.bf16.msra.mxu0 0
    %1190 = vmatprep.subr.bf16.mxu0 0
    %1191 = vmatpush1.bf16.msra.mxu0 0
    %1192 = vmatprep.subr.bf16.mxu0 0
    %1193 = vmatpush1.bf16.msra.mxu0 0
    %1194 = vmatprep.subr.bf16.mxu0 0
    %1195 = vmatpush1.bf16.msra.mxu0 0
    %1196 = vmatprep.subr.bf16.mxu0 0
    %1197 = vmatpush1.bf16.msra.mxu0 0
    %1198 = vmatprep.subr.bf16.mxu0 0
    %1199 = vmatpush1.bf16.msra.mxu0 0
    %1200 = vmatprep.subr.bf16.mxu0 0
    %1201 = vmatpush1.bf16.msra.mxu0 0
    %1202 = vmatprep.subr.bf16.mxu0 0
    %1203 = vmatpush1.bf16.msra.mxu0 0
    %1204 = vmatprep.subr.bf16.mxu0 0
    %1205 = vmatpush1.bf16.msra.mxu0 0
    %1206 = vmatprep.subr.bf16.mxu0 0
    %1207 = vmatpush1.bf16.msra.mxu0 0
    %1208 = vmatprep.subr.bf16.mxu0 0
    %1209 = vmatpush1.bf16.msra.mxu0 0
    %1210 = vmatprep.subr.bf16.mxu0 0
    %1211 = vmatpush1.bf16.msra.mxu0 0
    %1212 = vmatprep.subr.bf16.mxu0 0
    %1213 = vmatpush1.bf16.msra.mxu0 0
    %1214 = vmatprep.mubr.bf16.mxu0 0
    %1215 = vmatmul.mubr.bf16.gmra.mrb[0].mxu0 %v463
    %v1216 = vpop.f32.mrb[0].mxu0
    %v1217 = vadd.f32 0.0, %v1216
    %v1218 = vpop.f32.mrb[0].mxu0
    %v1219 = vpop.f32.mrb[0].mxu0
    %v1220 = vadd.f32 0.0, %v1219
    %v1221 = vpop.f32.mrb[0].mxu0
    %1222 = vdwg.mxu0
    %v1223 = vsub.f32 %v1176, %v1217
    %v1224 = vsub.f32 %v1179, %v1220
    %v1225 = vmul.f32 %v1223, %v1223
    %v1226 = vmul.f32 %v1224, %v1224
    %v1227 = vsel %vm167, %v1225, 0.0
    %v1228 = vsel %vm167, %v1226, 0.0
    %v1229 = vadd.f32 %v1227, %v1228
    %1230 = vadd.xlane.f32.xlu0 %v1229
    %v1231 = vpop.xlane.xlu0 %1230
    %v1232 = vrot.slane %v1231, 4
    %v1233 = vadd.f32 %v1231, %v1232
    %v1234 = vrot.slane %v1233, 2
    %v1235 = vadd.f32 %v1233, %v1234
    %v1236 = vrot.slane %v1235, 1
    %v1237 = vadd.f32 %v1235, %v1236
    %s1238 = vtos %v1237
    %s1239 = sadd.s32 %s104, 6
    %s1240 = sld [smem:[#allocation11 + %s1239]]
    %s1241 = sadd.f32 %s1238, 2.56e-10
    %v1242 = vstv %s1241
    %v1243 = vrsqrt.pop %v1242
    %s1244 = vtos %v1243
    %s1245 = smul.f32 %s1240, %s1244
    %s1246 = scalar_lea.vmem [#allocation2], 96
    %v1247 = vld [vmem:[%s1246] sm:$0xff]
    %v1248 = vld [vmem:[%s1246 + $0x8] sm:$0xff]
    %v1249 = vstv %s1245
    %v1250 = vmul.f32 %v1249, %v1223
    %v1251 = vmul.f32 %v1249, %v1224
    %v1252 = vadd.f32 %v1247, %v1250
    %v1253 = vadd.f32 %v1248, %v1251
    %v1254 = vmax.f32 %v1252, 0.0
    %v1255 = vmax.f32 %v1253, 0.0
    %v1256 = vmin.f32 %v1254, 1.0
    %v1257 = vmin.f32 %v1255, 1.0
    %s1258 = scalar_lea.vmem [#allocation12], 96
    %1259 = vst.msk [vmem:[%s1258] sm:$0xff] %vm167, %v1256
    %1260 = vst.msk [vmem:[%s1258 + $0x8] sm:$0xff] %vm167, %v1257
    %1261 = vmatprep.subr.bf16.mxu0 0
    %1262 = vmatpush1.bf16.msra.mxu0 %v399
    %1263 = vmatprep.subr.bf16.mxu0 0
    %1264 = vmatpush1.bf16.msra.mxu0 0
    %1265 = vmatprep.subr.bf16.mxu0 0
    %1266 = vmatpush1.bf16.msra.mxu0 0
    %1267 = vmatprep.subr.bf16.mxu0 0
    %1268 = vmatpush1.bf16.msra.mxu0 0
    %1269 = vmatprep.subr.bf16.mxu0 0
    %1270 = vmatpush1.bf16.msra.mxu0 0
    %1271 = vmatprep.subr.bf16.mxu0 0
    %1272 = vmatpush1.bf16.msra.mxu0 0
    %1273 = vmatprep.subr.bf16.mxu0 0
    %1274 = vmatpush1.bf16.msra.mxu0 0
    %1275 = vmatprep.subr.bf16.mxu0 0
    %1276 = vmatpush1.bf16.msra.mxu0 0
    %1277 = vmatprep.subr.bf16.mxu0 0
    %1278 = vmatpush1.bf16.msra.mxu0 0
    %1279 = vmatprep.subr.bf16.mxu0 0
    %1280 = vmatpush1.bf16.msra.mxu0 0
    %1281 = vmatprep.subr.bf16.mxu0 0
    %1282 = vmatpush1.bf16.msra.mxu0 0
    %1283 = vmatprep.subr.bf16.mxu0 0
    %1284 = vmatpush1.bf16.msra.mxu0 0
    %1285 = vmatprep.subr.bf16.mxu0 0
    %1286 = vmatpush1.bf16.msra.mxu0 0
    %1287 = vmatprep.subr.bf16.mxu0 0
    %1288 = vmatpush1.bf16.msra.mxu0 0
    %1289 = vmatprep.subr.bf16.mxu0 0
    %1290 = vmatpush1.bf16.msra.mxu0 0
    %1291 = vmatprep.subr.bf16.mxu0 0
    %1292 = vmatpush1.bf16.msra.mxu0 0
    %1293 = vmatprep.mubr.bf16.mxu0 0
    %1294 = vmatmul.mubr.bf16.gmra.mrb[0].mxu0 %v414
    %v1295 = vpop.f32.mrb[0].mxu0
    %v1296 = vadd.f32 0.0, %v1295
    %v1297 = vpop.f32.mrb[0].mxu0
    %v1298 = vpop.f32.mrb[0].mxu0
    %v1299 = vadd.f32 0.0, %v1298
    %v1300 = vpop.f32.mrb[0].mxu0
    %1301 = vdwg.mxu0
    %1302 = vmatprep.subr.bf16.mxu0 0
    %1303 = vmatpush1.bf16.msra.mxu0 %v407
    %1304 = vmatprep.subr.bf16.mxu0 0
    %1305 = vmatpush1.bf16.msra.mxu0 0
    %1306 = vmatprep.subr.bf16.mxu0 0
    %1307 = vmatpush1.bf16.msra.mxu0 0
    %1308 = vmatprep.subr.bf16.mxu0 0
    %1309 = vmatpush1.bf16.msra.mxu0 0
    %1310 = vmatprep.subr.bf16.mxu0 0
    %1311 = vmatpush1.bf16.msra.mxu0 0
    %1312 = vmatprep.subr.bf16.mxu0 0
    %1313 = vmatpush1.bf16.msra.mxu0 0
    %1314 = vmatprep.subr.bf16.mxu0 0
    %1315 = vmatpush1.bf16.msra.mxu0 0
    %1316 = vmatprep.subr.bf16.mxu0 0
    %1317 = vmatpush1.bf16.msra.mxu0 0
    %1318 = vmatprep.subr.bf16.mxu0 0
    %1319 = vmatpush1.bf16.msra.mxu0 0
    %1320 = vmatprep.subr.bf16.mxu0 0
    %1321 = vmatpush1.bf16.msra.mxu0 0
    %1322 = vmatprep.subr.bf16.mxu0 0
    %1323 = vmatpush1.bf16.msra.mxu0 0
    %1324 = vmatprep.subr.bf16.mxu0 0
    %1325 = vmatpush1.bf16.msra.mxu0 0
    %1326 = vmatprep.subr.bf16.mxu0 0
    %1327 = vmatpush1.bf16.msra.mxu0 0
    %1328 = vmatprep.subr.bf16.mxu0 0
    %1329 = vmatpush1.bf16.msra.mxu0 0
    %1330 = vmatprep.subr.bf16.mxu0 0
    %1331 = vmatpush1.bf16.msra.mxu0 0
    %1332 = vmatprep.subr.bf16.mxu0 0
    %1333 = vmatpush1.bf16.msra.mxu0 0
    %1334 = vmatprep.mubr.bf16.mxu0 0
    %1335 = vmatmul.mubr.bf16.gmra.mrb[0].mxu0 %v463
    %v1336 = vpop.f32.mrb[0].mxu0
    %v1337 = vadd.f32 0.0, %v1336
    %v1338 = vpop.f32.mrb[0].mxu0
    %v1339 = vpop.f32.mrb[0].mxu0
    %v1340 = vadd.f32 0.0, %v1339
    %v1341 = vpop.f32.mrb[0].mxu0
    %1342 = vdwg.mxu0
    %v1343 = vsub.f32 %v1296, %v1337
    %v1344 = vsub.f32 %v1299, %v1340
    %v1345 = vmul.f32 %v1343, %v1343
    %v1346 = vmul.f32 %v1344, %v1344
    %v1347 = vsel %vm167, %v1345, 0.0
    %v1348 = vsel %vm167, %v1346, 0.0
    %v1349 = vadd.f32 %v1347, %v1348
    %1350 = vadd.xlane.f32.xlu0 %v1349
    %v1351 = vpop.xlane.xlu0 %1350
    %v1352 = vrot.slane %v1351, 4
    %v1353 = vadd.f32 %v1351, %v1352
    %v1354 = vrot.slane %v1353, 2
    %v1355 = vadd.f32 %v1353, %v1354
    %v1356 = vrot.slane %v1355, 1
    %v1357 = vadd.f32 %v1355, %v1356
    %s1358 = vtos %v1357
    %s1359 = sadd.s32 %s104, 7
    %s1360 = sld [smem:[#allocation11 + %s1359]]
    %s1361 = sadd.f32 %s1358, 2.56e-10
    %v1362 = vstv %s1361
    %v1363 = vrsqrt.pop %v1362
    %s1364 = vtos %v1363
    %s1365 = smul.f32 %s1360, %s1364
    %s1366 = scalar_lea.vmem [#allocation2], 112
    %v1367 = vld [vmem:[%s1366] sm:$0xff]
    %v1368 = vld [vmem:[%s1366 + $0x8] sm:$0xff]
    %v1369 = vstv %s1365
    %v1370 = vmul.f32 %v1369, %v1343
    %v1371 = vmul.f32 %v1369, %v1344
    %v1372 = vadd.f32 %v1367, %v1370
    %v1373 = vadd.f32 %v1368, %v1371
    %v1374 = vmax.f32 %v1372, 0.0
    %v1375 = vmax.f32 %v1373, 0.0
    %v1376 = vmin.f32 %v1374, 1.0
    %v1377 = vmin.f32 %v1375, 1.0
    %s1378 = scalar_lea.vmem [#allocation12], 112
    %1379 = vst.msk [vmem:[%s1378] sm:$0xff] %vm167, %v1376
    %1380 = vst.msk [vmem:[%s1378 + $0x8] sm:$0xff] %vm167, %v1377
    // Predicated region
    $region50: #{tpu_custom_call.1} parent=1 // pred_check
      _
    $region51: #{tpu_custom_call.1} parent=1 // pred_check_branch
      %1382 = sbr.rel (0) target = $region53
    $region52: #{tpu_custom_call.1} parent=1 // pred_region
      %s1384 = ssub.s32 2048, 2048
      %1385 = vsyncadd [#allocation4], %s1384
      %s1386 = sshll.u32 [#allocation12], 4
      %s1387 = int_to_ptr.vmem [resolvable:$true] %s1386
      %1392 = dma.vmem_to_hbm [thread:$0]  %s1387, 2048, %s7, [#allocation4], 128, 128, 8
    $region53: #{tpu_custom_call.1} parent=1 // pred_fallthru
      _
    // Predicated region
    $region54: #{tpu_custom_call.1} parent=1 // pred_check
      _
    $region55: #{tpu_custom_call.1} parent=1 // pred_check_branch
      %1394 = sbr.rel (0) target = $region57
    $region56: #{tpu_custom_call.1} parent=1 // pred_region
      %1395 = dma.done [#allocation4], 2048
    $region57: #{tpu_custom_call.1} parent=1 // pred_fallthru
      _
    %1396 = vsyncpa [#allocation3], 1
    %1397 = vsyncpa [#allocation7], 1
    %1398 = vsyncpa [#allocation10], 1
    %1399 = vsyncpa [#allocation4], 1
    %1400 = vsyncpa [#allocation5], 1

</llo_original>
